<compile_context>
chip_gen: v7x
topology: tpu7x:2x2x1
jax: 0.10.0
libtpu: 0.0.40
codegen_flags: <defaults>
</compile_context>

<pallas_src>
import functools

import jax
import jax.numpy as jnp
from jax.experimental import pallas as pl
from jax.experimental.pallas import tpu as pltpu

LN_EPS = 1e-5


def _encoder_layer_kernel(src_ref, pos_ref, wq_ref, bq_ref, wk_ref, bk_ref,
                          wv_ref, bv_ref, wo_ref, bo_ref, gamma_ref, beta_ref,
                          out_ref, k_sc, v_sc, *, nhead, head_dim, q_tile):
    S, B, F = src_ref.shape          # src/pos are full-resident (constant index map)
    St = q_tile
    qi = pl.program_id(0)

    # ---- first grid step: full-sequence K / V projections into batch-major scratch ----
    @pl.when(qi == 0)
    def _():
        x3 = src_ref[...]                                       # (S, B, F)
        x2d = x3.reshape(S * B, F)                              # leading-dim merge (free)
        xp2d = (x3 + pos_ref[...]).reshape(S * B, F)            # key input = src + pos
        k2d = jnp.dot(xp2d, wk_ref[...],
                      preferred_element_type=jnp.float32) + bk_ref[...]
        v2d = jnp.dot(x2d, wv_ref[...],
                      preferred_element_type=jnp.float32) + bv_ref[...]
        k3 = k2d.reshape(S, B, F)
        v3 = v2d.reshape(S, B, F)
        for b in range(B):                                      # B lane-dense (S, F) stores
            k_sc[b] = k3[:, b, :]
            v_sc[b] = v3[:, b, :]

    # ---- per query tile: Q projection (scale pre-folded into wq/bq) ----
    row0 = pl.multiple_of(qi * St, St)
    src_t = src_ref[pl.ds(row0, St), :, :]                      # (St, B, F)
    xp_t2d = (src_t + pos_ref[pl.ds(row0, St), :, :]).reshape(St * B, F)
    q2d = jnp.dot(xp_t2d, wq_ref[...],
                  preferred_element_type=jnp.float32) + bq_ref[...]
    q3 = q2d.reshape(St, B, F)

    wo = wo_ref[...]                                            # resident parameters
    bo = bo_ref[...]
    gamma = gamma_ref[...]
    beta = beta_ref[...]

    # ---- attention + fused output projection + residual + LayerNorm ----
    # TODO(synk): attn_mask / key_padding_mask and attention dropout are not implemented
    # (eval-mode, mask=None semantics only).
    for b in range(B):
        q_b = q3[:, b, :]                                       # (St, F)
        k_b = k_sc[b]                                           # (S, F)
        v_b = v_sc[b]
        src2 = jnp.zeros((St, F), jnp.float32)                  # lane-dense accumulator
        for h in range(nhead):
            lo = h * head_dim
            qh = q_b[:, lo:lo + head_dim]                       # (St, Dh), already scaled
            kh = k_b[:, lo:lo + head_dim]                       # (S, Dh)
            vh = v_b[:, lo:lo + head_dim]
            s = jnp.einsum('sd,td->st', qh, kh,
                           preferred_element_type=jnp.float32)  # (St, S)
            m = jnp.max(s, axis=-1, keepdims=True)
            p = jnp.exp(s - m)
            den = jnp.sum(p, axis=-1, keepdims=True)
            ctx_un = jnp.einsum('st,td->sd', p, vh,
                                preferred_element_type=jnp.float32)     # (St, Dh)
            # Deferred normalization: scale the (St, Dh) context, not the (St, S) probs.
            ctx = ctx_un * pl.reciprocal(den, approx=False)
            # Fused output projection, lane-dense F-wide accumulation (no ctx scratch).
            src2 = src2 + jnp.dot(ctx, wo[lo:lo + head_dim, :],
                                  preferred_element_type=jnp.float32)

        res = src_t[:, b, :] + src2 + bo                        # residual
        mean = jnp.mean(res, axis=-1, keepdims=True)
        var = jnp.mean((res - mean) ** 2, axis=-1, keepdims=True)
        normed = (res - mean) * jax.lax.rsqrt(var + LN_EPS)
        out_ref[:, b:b + 1, :] = (normed * gamma + beta).reshape(St, 1, F)


def prepare_encoder_params(params, *, nhead):
    """One-time parameter transform: transpose weights to x@W layout, fold softmax scale."""
    F = params["wq"].shape[0]
    head_dim = F // nhead
    scale = 1.0 / (head_dim ** 0.5)
    return {
        "wq": (scale * params["wq"]).T,            # (F, F), softmax scale folded
        "bq": (scale * params["bq"]).reshape(1, F),
        "wk": params["wk"].T,
        "bk": params["bk"].reshape(1, F),
        "wv": params["wv"].T,
        "bv": params["bv"].reshape(1, F),
        "wo": params["wo"].T,
        "bo": params["bo"].reshape(1, F),
        "gamma": params["ln_gamma"].reshape(1, F),
        "beta": params["ln_beta"].reshape(1, F),
    }


def pos_transformer_encoder_layer_no_ffn(src, pos, prepped, *, nhead, num_q_blocks=1):
    """src, pos: (S, B, F) float32 (PyTorch layout, no transposes).

    num_q_blocks: number of query tiles along S.  Use 1 for tiny S; at production S
    pick a tile of 128-512 rows so the per-tile score matrix fits VMEM on v7x.
    """
    S, B, F = src.shape
    assert F % nhead == 0
    head_dim = F // nhead

    nq = max(1, num_q_blocks)
    if S % nq != 0:
        nq = 1
    St = S // nq

    buf1 = pl.Buffered(1)   # constant-index blocks: no need to double-buffer
    full_spec = pl.BlockSpec((S, B, F), lambda q: (0, 0, 0), pipeline_mode=buf1)
    mat_spec = pl.BlockSpec((F, F), lambda q: (0, 0), pipeline_mode=buf1)
    vec_spec = pl.BlockSpec((1, F), lambda q: (0, 0), pipeline_mode=buf1)
    out_spec = pl.BlockSpec((St, B, F), lambda q: (q, 0, 0))

    kernel = functools.partial(_encoder_layer_kernel, nhead=nhead,
                               head_dim=head_dim, q_tile=St)

    return pl.pallas_call(
        kernel,
        out_shape=jax.ShapeDtypeStruct((S, B, F), jnp.float32),
        grid=(nq,),
        in_specs=[
            full_spec, full_spec,        # src, pos (resident, fetched once)
            mat_spec, vec_spec,          # wq, bq (scale folded)
            mat_spec, vec_spec,          # wk, bk
            mat_spec, vec_spec,          # wv, bv
            mat_spec, vec_spec,          # wo, bo
            vec_spec, vec_spec,          # gamma, beta
        ],
        out_specs=out_spec,
        scratch_shapes=[pltpu.VMEM((B, S, F), jnp.float32),    # K (batch-major)
                        pltpu.VMEM((B, S, F), jnp.float32)],   # V (batch-major)
        compiler_params=pltpu.CompilerParams(
            # K/V scratch is written on step 0 and reused -> sequential grid.
            dimension_semantics=("arbitrary",),
            vmem_limit_bytes=64 * 1024 * 1024,
        ),
    )(src, pos, prepped["wq"], prepped["bq"], prepped["wk"], prepped["bk"],
      prepped["wv"], prepped["bv"], prepped["wo"], prepped["bo"],
      prepped["gamma"], prepped["beta"])


def _reference(src, pos, params, *, nhead):
    """Pure-JAX reference of the same forward pass for verification."""
    S, B, F = src.shape
    head_dim = F // nhead
    xp = src + pos
    q = jnp.einsum("sbf,gf->sbg", xp, params["wq"]) + params["bq"]
    k = jnp.einsum("sbf,gf->sbg", xp, params["wk"]) + params["bk"]
    v = jnp.einsum("sbf,gf->sbg", src, params["wv"]) + params["bv"]
    qh = q.reshape(S, B, nhead, head_dim) / (head_dim ** 0.5)
    kh = k.reshape(S, B, nhead, head_dim)
    vh = v.reshape(S, B, nhead, head_dim)
    scores = jnp.einsum("sbhd,tbhd->bhst", qh, kh)
    attn = jax.nn.softmax(scores, axis=-1)
    ctx = jnp.einsum("bhst,tbhd->sbhd", attn, vh).reshape(S, B, F)
    src2 = jnp.einsum("sbf,gf->sbg", ctx, params["wo"]) + params["bo"]
    res = src + src2
    mean = res.mean(-1, keepdims=True)
    var = ((res - mean) ** 2).mean(-1, keepdims=True)
    return (res - mean) / jnp.sqrt(var + LN_EPS) * params["ln_gamma"] + params["ln_beta"]


if __name__ == "__main__":
    # Small, module-consistent shapes: seq S=8, batch B=2, d_model F=32, nhead=4.
    # (Toy config for correctness only -- not representative for performance.)
    S, B, F, NHEAD = 8, 2, 32, 4

    key = jax.random.PRNGKey(0)
    ks = jax.random.split(key, 8)

    src = jax.random.normal(ks[0], (S, B, F), dtype=jnp.float32)
    pos = jax.random.normal(ks[1], (S, B, F), dtype=jnp.float32)

    scale = 0.05
    params = {
        "wq": scale * jax.random.normal(ks[2], (F, F), dtype=jnp.float32),
        "wk": scale * jax.random.normal(ks[3], (F, F), dtype=jnp.float32),
        "wv": scale * jax.random.normal(ks[4], (F, F), dtype=jnp.float32),
        "bq": scale * jax.random.normal(ks[5], (F,), dtype=jnp.float32),
        "bk": jnp.zeros((F,), dtype=jnp.float32),
        "bv": jnp.zeros((F,), dtype=jnp.float32),
        "wo": scale * jax.random.normal(ks[6], (F, F), dtype=jnp.float32),
        "bo": scale * jax.random.normal(ks[7], (F,), dtype=jnp.float32),
        "ln_gamma": jnp.ones((F,), dtype=jnp.float32),
        "ln_beta": jnp.zeros((F,), dtype=jnp.float32),
    }

    prepped = prepare_encoder_params(params, nhead=NHEAD)

    # num_q_blocks=2 exercises the multi-step pipeline (K/V computed once, reused).
    out = pos_transformer_encoder_layer_no_ffn(src, pos, prepped, nhead=NHEAD,
                                               num_q_blocks=2)
    out = jax.block_until_ready(out)

    ref = _reference(src, pos, params, nhead=NHEAD)
    assert out.shape == (S, B, F)
    assert jnp.allclose(out, ref, atol=1e-4, rtol=1e-4), "Pallas output mismatch vs reference"

    print("KERNEL_OK")
</pallas_src>

<mosaic_0001>
module attributes {stable_mosaic.version = 11 : i64} {
  func.func @_encoder_layer_kernel(%arg0: i32, %arg1: memref<8x2x32xf32, #tpu.memory_space<vmem>>, %arg2: memref<8x2x32xf32, #tpu.memory_space<vmem>>, %arg3: memref<32x32xf32, #tpu.memory_space<vmem>>, %arg4: memref<1x32xf32, #tpu.memory_space<vmem>>, %arg5: memref<32x32xf32, #tpu.memory_space<vmem>>, %arg6: memref<1x32xf32, #tpu.memory_space<vmem>>, %arg7: memref<32x32xf32, #tpu.memory_space<vmem>>, %arg8: memref<1x32xf32, #tpu.memory_space<vmem>>, %arg9: memref<32x32xf32, #tpu.memory_space<vmem>>, %arg10: memref<1x32xf32, #tpu.memory_space<vmem>>, %arg11: memref<1x32xf32, #tpu.memory_space<vmem>>, %arg12: memref<1x32xf32, #tpu.memory_space<vmem>>, %arg13: memref<4x2x32xf32, #tpu.memory_space<vmem>>, %arg14: memref<2x8x32xf32, #tpu.memory_space<vmem>>, %arg15: memref<2x8x32xf32, #tpu.memory_space<vmem>>) attributes {dimension_semantics = [#tpu.dimension_semantics<arbitrary>], iteration_bounds = array<i64: 2>, scalar_prefetch = 0 : i64, scratch_operands = 2 : i64, tpu.core_type = #tpu.core_type<tc>, window_params = [{pipeline_mode = #tpu.pipeline_mode<synchronous>, transform_indices = @transform_0, window_bounds = array<i64: 8, 2, 32>}, {pipeline_mode = #tpu.pipeline_mode<synchronous>, transform_indices = @transform_1, window_bounds = array<i64: 8, 2, 32>}, {pipeline_mode = #tpu.pipeline_mode<synchronous>, transform_indices = @transform_2, window_bounds = array<i64: 32, 32>}, {pipeline_mode = #tpu.pipeline_mode<synchronous>, transform_indices = @transform_3, window_bounds = array<i64: 1, 32>}, {pipeline_mode = #tpu.pipeline_mode<synchronous>, transform_indices = @transform_4, window_bounds = array<i64: 32, 32>}, {pipeline_mode = #tpu.pipeline_mode<synchronous>, transform_indices = @transform_5, window_bounds = array<i64: 1, 32>}, {pipeline_mode = #tpu.pipeline_mode<synchronous>, transform_indices = @transform_6, window_bounds = array<i64: 32, 32>}, {pipeline_mode = #tpu.pipeline_mode<synchronous>, transform_indices = @transform_7, window_bounds = array<i64: 1, 32>}, {pipeline_mode = #tpu.pipeline_mode<synchronous>, transform_indices = @transform_8, window_bounds = array<i64: 32, 32>}, {pipeline_mode = #tpu.pipeline_mode<synchronous>, transform_indices = @transform_9, window_bounds = array<i64: 1, 32>}, {pipeline_mode = #tpu.pipeline_mode<synchronous>, transform_indices = @transform_10, window_bounds = array<i64: 1, 32>}, {pipeline_mode = #tpu.pipeline_mode<synchronous>, transform_indices = @transform_11, window_bounds = array<i64: 1, 32>}, {transform_indices = @transform_12, window_bounds = array<i64: 4, 2, 32>}]} {
    %c0_i32 = arith.constant 0 : i32
    %0 = arith.cmpi eq, %arg0, %c0_i32 : i32
    %1 = arith.extui %0 : i1 to i32
    %c0_i32_0 = arith.constant 0 : i32
    %2 = arith.cmpi ne, %1, %c0_i32_0 : i32
    scf.if %2 {
      %c0_85 = arith.constant 0 : index
      %c0_86 = arith.constant 0 : index
      %c0_87 = arith.constant 0 : index
      %237 = vector.load %arg1[%c0_85, %c0_86, %c0_87] : memref<8x2x32xf32, #tpu.memory_space<vmem>>, vector<8x2x32xf32>
      %238 = vector.shape_cast %237 : vector<8x2x32xf32> to vector<16x32xf32>
      %c0_88 = arith.constant 0 : index
      %c0_89 = arith.constant 0 : index
      %c0_90 = arith.constant 0 : index
      %239 = vector.load %arg2[%c0_88, %c0_89, %c0_90] : memref<8x2x32xf32, #tpu.memory_space<vmem>>, vector<8x2x32xf32>
      %240 = arith.addf %237, %239 : vector<8x2x32xf32>
      %241 = vector.shape_cast %240 : vector<8x2x32xf32> to vector<16x32xf32>
      %c0_91 = arith.constant 0 : index
      %c0_92 = arith.constant 0 : index
      %242 = vector.load %arg5[%c0_91, %c0_92] : memref<32x32xf32, #tpu.memory_space<vmem>>, vector<32x32xf32>
      %cst_93 = arith.constant dense<0.000000e+00> : vector<16x32xf32>
      %243 = tpu.matmul %241, %242, %cst_93 {dimension_numbers = #tpu.dot_dimension_numbers<[1], [0], [0], [1], [0, 0, 1, 1], [], []>} : vector<16x32xf32>, vector<32x32xf32>, vector<16x32xf32> -> vector<16x32xf32>
      %c0_94 = arith.constant 0 : index
      %c0_95 = arith.constant 0 : index
      %244 = vector.load %arg6[%c0_94, %c0_95] : memref<1x32xf32, #tpu.memory_space<vmem>>, vector<1x32xf32>
      %245 = vector.broadcast %244 : vector<1x32xf32> to vector<16x32xf32>
      %246 = arith.addf %243, %245 : vector<16x32xf32>
      %c0_96 = arith.constant 0 : index
      %c0_97 = arith.constant 0 : index
      %247 = vector.load %arg7[%c0_96, %c0_97] : memref<32x32xf32, #tpu.memory_space<vmem>>, vector<32x32xf32>
      %cst_98 = arith.constant dense<0.000000e+00> : vector<16x32xf32>
      %248 = tpu.matmul %238, %247, %cst_98 {dimension_numbers = #tpu.dot_dimension_numbers<[1], [0], [0], [1], [0, 0, 1, 1], [], []>} : vector<16x32xf32>, vector<32x32xf32>, vector<16x32xf32> -> vector<16x32xf32>
      %c0_99 = arith.constant 0 : index
      %c0_100 = arith.constant 0 : index
      %249 = vector.load %arg8[%c0_99, %c0_100] : memref<1x32xf32, #tpu.memory_space<vmem>>, vector<1x32xf32>
      %250 = vector.broadcast %249 : vector<1x32xf32> to vector<16x32xf32>
      %251 = arith.addf %248, %250 : vector<16x32xf32>
      %252 = vector.shape_cast %246 : vector<16x32xf32> to vector<8x2x32xf32>
      %253 = vector.shape_cast %251 : vector<16x32xf32> to vector<8x2x32xf32>
      %254 = vector.extract_strided_slice %252 {offsets = [0, 0, 0], sizes = [8, 1, 32], strides = [1, 1, 1]} : vector<8x2x32xf32> to vector<8x1x32xf32>
      %255 = vector.shape_cast %254 : vector<8x1x32xf32> to vector<8x32xf32>
      %c0_101 = arith.constant 0 : index
      %c0_102 = arith.constant 0 : index
      %c0_103 = arith.constant 0 : index
      %256 = vector.load %arg14[%c0_101, %c0_102, %c0_103] : memref<2x8x32xf32, #tpu.memory_space<vmem>>, vector<1x8x32xf32>
      %257 = vector.shape_cast %256 : vector<1x8x32xf32> to vector<8x32xf32>
      %258 = vector.shape_cast %255 : vector<8x32xf32> to vector<1x8x32xf32>
      tpu.vector_store %arg14[%c0_101, %c0_102, %c0_103], %258 {strides = array<i32>} : memref<2x8x32xf32, #tpu.memory_space<vmem>>, vector<1x8x32xf32>,
      %259 = vector.extract_strided_slice %253 {offsets = [0, 0, 0], sizes = [8, 1, 32], strides = [1, 1, 1]} : vector<8x2x32xf32> to vector<8x1x32xf32>
      %260 = vector.shape_cast %259 : vector<8x1x32xf32> to vector<8x32xf32>
      %c0_104 = arith.constant 0 : index
      %c0_105 = arith.constant 0 : index
      %c0_106 = arith.constant 0 : index
      %261 = vector.load %arg15[%c0_104, %c0_105, %c0_106] : memref<2x8x32xf32, #tpu.memory_space<vmem>>, vector<1x8x32xf32>
      %262 = vector.shape_cast %261 : vector<1x8x32xf32> to vector<8x32xf32>
      %263 = vector.shape_cast %260 : vector<8x32xf32> to vector<1x8x32xf32>
      tpu.vector_store %arg15[%c0_104, %c0_105, %c0_106], %263 {strides = array<i32>} : memref<2x8x32xf32, #tpu.memory_space<vmem>>, vector<1x8x32xf32>,
      %264 = vector.extract_strided_slice %252 {offsets = [0, 1, 0], sizes = [8, 1, 32], strides = [1, 1, 1]} : vector<8x2x32xf32> to vector<8x1x32xf32>
      %265 = vector.shape_cast %264 : vector<8x1x32xf32> to vector<8x32xf32>
      %c1_107 = arith.constant 1 : index
      %c0_108 = arith.constant 0 : index
      %c0_109 = arith.constant 0 : index
      %266 = vector.load %arg14[%c1_107, %c0_108, %c0_109] : memref<2x8x32xf32, #tpu.memory_space<vmem>>, vector<1x8x32xf32>
      %267 = vector.shape_cast %266 : vector<1x8x32xf32> to vector<8x32xf32>
      %268 = vector.shape_cast %265 : vector<8x32xf32> to vector<1x8x32xf32>
      tpu.vector_store %arg14[%c1_107, %c0_108, %c0_109], %268 {strides = array<i32>} : memref<2x8x32xf32, #tpu.memory_space<vmem>>, vector<1x8x32xf32>,
      %269 = vector.extract_strided_slice %253 {offsets = [0, 1, 0], sizes = [8, 1, 32], strides = [1, 1, 1]} : vector<8x2x32xf32> to vector<8x1x32xf32>
      %270 = vector.shape_cast %269 : vector<8x1x32xf32> to vector<8x32xf32>
      %c1_110 = arith.constant 1 : index
      %c0_111 = arith.constant 0 : index
      %c0_112 = arith.constant 0 : index
      %271 = vector.load %arg15[%c1_110, %c0_111, %c0_112] : memref<2x8x32xf32, #tpu.memory_space<vmem>>, vector<1x8x32xf32>
      %272 = vector.shape_cast %271 : vector<1x8x32xf32> to vector<8x32xf32>
      %273 = vector.shape_cast %270 : vector<8x32xf32> to vector<1x8x32xf32>
      tpu.vector_store %arg15[%c1_110, %c0_111, %c0_112], %273 {strides = array<i32>} : memref<2x8x32xf32, #tpu.memory_space<vmem>>, vector<1x8x32xf32>,
    } else {
    }
    %c4_i32 = arith.constant 4 : i32
    %3 = arith.muli %arg0, %c4_i32 : i32
    %4 = tpu.assume_multiple %3, 4 : i32
    %5 = arith.index_cast %4 : i32 to index
    %c0 = arith.constant 0 : index
    %c0_1 = arith.constant 0 : index
    %6 = vector.load %arg1[%5, %c0, %c0_1] : memref<8x2x32xf32, #tpu.memory_space<vmem>>, vector<4x2x32xf32>
    %7 = arith.index_cast %4 : i32 to index
    %c0_2 = arith.constant 0 : index
    %c0_3 = arith.constant 0 : index
    %8 = vector.load %arg2[%7, %c0_2, %c0_3] : memref<8x2x32xf32, #tpu.memory_space<vmem>>, vector<4x2x32xf32>
    %9 = arith.addf %6, %8 : vector<4x2x32xf32>
    %10 = vector.shape_cast %9 : vector<4x2x32xf32> to vector<8x32xf32>
    %c0_4 = arith.constant 0 : index
    %c0_5 = arith.constant 0 : index
    %11 = vector.load %arg3[%c0_4, %c0_5] : memref<32x32xf32, #tpu.memory_space<vmem>>, vector<32x32xf32>
    %cst = arith.constant dense<0.000000e+00> : vector<8x32xf32>
    %12 = tpu.matmul %10, %11, %cst {dimension_numbers = #tpu.dot_dimension_numbers<[1], [0], [0], [1], [0, 0, 1, 1], [], []>} : vector<8x32xf32>, vector<32x32xf32>, vector<8x32xf32> -> vector<8x32xf32>
    %c0_6 = arith.constant 0 : index
    %c0_7 = arith.constant 0 : index
    %13 = vector.load %arg4[%c0_6, %c0_7] : memref<1x32xf32, #tpu.memory_space<vmem>>, vector<1x32xf32>
    %14 = vector.broadcast %13 : vector<1x32xf32> to vector<8x32xf32>
    %15 = arith.addf %12, %14 : vector<8x32xf32>
    %16 = vector.shape_cast %15 : vector<8x32xf32> to vector<4x2x32xf32>
    %c0_8 = arith.constant 0 : index
    %c0_9 = arith.constant 0 : index
    %17 = vector.load %arg9[%c0_8, %c0_9] : memref<32x32xf32, #tpu.memory_space<vmem>>, vector<32x32xf32>
    %c0_10 = arith.constant 0 : index
    %c0_11 = arith.constant 0 : index
    %18 = vector.load %arg10[%c0_10, %c0_11] : memref<1x32xf32, #tpu.memory_space<vmem>>, vector<1x32xf32>
    %c0_12 = arith.constant 0 : index
    %c0_13 = arith.constant 0 : index
    %19 = vector.load %arg11[%c0_12, %c0_13] : memref<1x32xf32, #tpu.memory_space<vmem>>, vector<1x32xf32>
    %c0_14 = arith.constant 0 : index
    %c0_15 = arith.constant 0 : index
    %20 = vector.load %arg12[%c0_14, %c0_15] : memref<1x32xf32, #tpu.memory_space<vmem>>, vector<1x32xf32>
    %21 = vector.extract_strided_slice %16 {offsets = [0, 0, 0], sizes = [4, 1, 32], strides = [1, 1, 1]} : vector<4x2x32xf32> to vector<4x1x32xf32>
    %22 = vector.shape_cast %21 : vector<4x1x32xf32> to vector<4x32xf32>
    %c0_16 = arith.constant 0 : index
    %c0_17 = arith.constant 0 : index
    %c0_18 = arith.constant 0 : index
    %23 = vector.load %arg14[%c0_16, %c0_17, %c0_18] : memref<2x8x32xf32, #tpu.memory_space<vmem>>, vector<1x8x32xf32>
    %24 = vector.shape_cast %23 : vector<1x8x32xf32> to vector<8x32xf32>
    %c0_19 = arith.constant 0 : index
    %c0_20 = arith.constant 0 : index
    %c0_21 = arith.constant 0 : index
    %25 = vector.load %arg15[%c0_19, %c0_20, %c0_21] : memref<2x8x32xf32, #tpu.memory_space<vmem>>, vector<1x8x32xf32>
    %26 = vector.shape_cast %25 : vector<1x8x32xf32> to vector<8x32xf32>
    %cst_22 = arith.constant 0.000000e+00 : f32
    %27 = vector.broadcast %cst_22 : f32 to vector<4x32xf32>
    %28 = vector.extract_strided_slice %22 {offsets = [0, 0], sizes = [4, 8], strides = [1, 1]} : vector<4x32xf32> to vector<4x8xf32>
    %29 = vector.extract_strided_slice %24 {offsets = [0, 0], sizes = [8, 8], strides = [1, 1]} : vector<8x32xf32> to vector<8x8xf32>
    %30 = vector.extract_strided_slice %26 {offsets = [0, 0], sizes = [8, 8], strides = [1, 1]} : vector<8x32xf32> to vector<8x8xf32>
    "tpu.trace_start"() <{level = 10 : i32, message = "sd,td->st"}> : () -> ()
    %cst_23 = arith.constant dense<0.000000e+00> : vector<4x8xf32>
    %31 = tpu.matmul %28, %29, %cst_23 {dimension_numbers = #tpu.dot_dimension_numbers<[1], [1], [0], [0], [0, 0, 1, 0], [], []>} : vector<4x8xf32>, vector<8x8xf32>, vector<4x8xf32> -> vector<4x8xf32>
    "tpu.trace_stop"() : () -> ()
    %cst_24 = arith.constant dense<0xFF800000> : vector<4xf32>
    %32 = vector.multi_reduction <maximumf>, %31, %cst_24 [1] : vector<4x8xf32> to vector<4xf32>
    %33 = vector.shape_cast %32 : vector<4xf32> to vector<4x1xf32>
    %34 = vector.broadcast %33 : vector<4x1xf32> to vector<4x8xf32>
    %35 = arith.subf %31, %34 : vector<4x8xf32>
    %36 = math.exp %35 : vector<4x8xf32>
    %cst_25 = arith.constant dense<0.000000e+00> : vector<4xf32>
    %37 = vector.multi_reduction <add>, %36, %cst_25 [1] : vector<4x8xf32> to vector<4xf32>
    %38 = vector.shape_cast %37 : vector<4xf32> to vector<4x1xf32>
    "tpu.trace_start"() <{level = 10 : i32, message = "st,td->sd"}> : () -> ()
    %cst_26 = arith.constant dense<0.000000e+00> : vector<4x8xf32>
    %39 = tpu.matmul %36, %30, %cst_26 {dimension_numbers = #tpu.dot_dimension_numbers<[1], [0], [0], [1], [0, 0, 1, 1], [], []>} : vector<4x8xf32>, vector<8x8xf32>, vector<4x8xf32> -> vector<4x8xf32>
    "tpu.trace_stop"() : () -> ()
    %40 = tpu.reciprocal %38 : vector<4x1xf32> -> vector<4x1xf32>
    %41 = vector.broadcast %40 : vector<4x1xf32> to vector<4x8xf32>
    %42 = arith.mulf %39, %41 : vector<4x8xf32>
    %43 = vector.extract_strided_slice %17 {offsets = [0, 0], sizes = [8, 32], strides = [1, 1]} : vector<32x32xf32> to vector<8x32xf32>
    %cst_27 = arith.constant dense<0.000000e+00> : vector<4x32xf32>
    %44 = tpu.matmul %42, %43, %cst_27 {dimension_numbers = #tpu.dot_dimension_numbers<[1], [0], [0], [1], [0, 0, 1, 1], [], []>} : vector<4x8xf32>, vector<8x32xf32>, vector<4x32xf32> -> vector<4x32xf32>
    %45 = arith.addf %27, %44 : vector<4x32xf32>
    %46 = vector.extract_strided_slice %22 {offsets = [0, 8], sizes = [4, 8], strides = [1, 1]} : vector<4x32xf32> to vector<4x8xf32>
    %47 = vector.extract_strided_slice %24 {offsets = [0, 8], sizes = [8, 8], strides = [1, 1]} : vector<8x32xf32> to vector<8x8xf32>
    %48 = vector.extract_strided_slice %26 {offsets = [0, 8], sizes = [8, 8], strides = [1, 1]} : vector<8x32xf32> to vector<8x8xf32>
    "tpu.trace_start"() <{level = 10 : i32, message = "sd,td->st"}> : () -> ()
    %cst_28 = arith.constant dense<0.000000e+00> : vector<4x8xf32>
    %49 = tpu.matmul %46, %47, %cst_28 {dimension_numbers = #tpu.dot_dimension_numbers<[1], [1], [0], [0], [0, 0, 1, 0], [], []>} : vector<4x8xf32>, vector<8x8xf32>, vector<4x8xf32> -> vector<4x8xf32>
    "tpu.trace_stop"() : () -> ()
    %cst_29 = arith.constant dense<0xFF800000> : vector<4xf32>
    %50 = vector.multi_reduction <maximumf>, %49, %cst_29 [1] : vector<4x8xf32> to vector<4xf32>
    %51 = vector.shape_cast %50 : vector<4xf32> to vector<4x1xf32>
    %52 = vector.broadcast %51 : vector<4x1xf32> to vector<4x8xf32>
    %53 = arith.subf %49, %52 : vector<4x8xf32>
    %54 = math.exp %53 : vector<4x8xf32>
    %cst_30 = arith.constant dense<0.000000e+00> : vector<4xf32>
    %55 = vector.multi_reduction <add>, %54, %cst_30 [1] : vector<4x8xf32> to vector<4xf32>
    %56 = vector.shape_cast %55 : vector<4xf32> to vector<4x1xf32>
    "tpu.trace_start"() <{level = 10 : i32, message = "st,td->sd"}> : () -> ()
    %cst_31 = arith.constant dense<0.000000e+00> : vector<4x8xf32>
    %57 = tpu.matmul %54, %48, %cst_31 {dimension_numbers = #tpu.dot_dimension_numbers<[1], [0], [0], [1], [0, 0, 1, 1], [], []>} : vector<4x8xf32>, vector<8x8xf32>, vector<4x8xf32> -> vector<4x8xf32>
    "tpu.trace_stop"() : () -> ()
    %58 = tpu.reciprocal %56 : vector<4x1xf32> -> vector<4x1xf32>
    %59 = vector.broadcast %58 : vector<4x1xf32> to vector<4x8xf32>
    %60 = arith.mulf %57, %59 : vector<4x8xf32>
    %61 = vector.extract_strided_slice %17 {offsets = [8, 0], sizes = [8, 32], strides = [1, 1]} : vector<32x32xf32> to vector<8x32xf32>
    %cst_32 = arith.constant dense<0.000000e+00> : vector<4x32xf32>
    %62 = tpu.matmul %60, %61, %cst_32 {dimension_numbers = #tpu.dot_dimension_numbers<[1], [0], [0], [1], [0, 0, 1, 1], [], []>} : vector<4x8xf32>, vector<8x32xf32>, vector<4x32xf32> -> vector<4x32xf32>
    %63 = arith.addf %45, %62 : vector<4x32xf32>
    %64 = vector.extract_strided_slice %22 {offsets = [0, 16], sizes = [4, 8], strides = [1, 1]} : vector<4x32xf32> to vector<4x8xf32>
    %65 = vector.extract_strided_slice %24 {offsets = [0, 16], sizes = [8, 8], strides = [1, 1]} : vector<8x32xf32> to vector<8x8xf32>
    %66 = vector.extract_strided_slice %26 {offsets = [0, 16], sizes = [8, 8], strides = [1, 1]} : vector<8x32xf32> to vector<8x8xf32>
    "tpu.trace_start"() <{level = 10 : i32, message = "sd,td->st"}> : () -> ()
    %cst_33 = arith.constant dense<0.000000e+00> : vector<4x8xf32>
    %67 = tpu.matmul %64, %65, %cst_33 {dimension_numbers = #tpu.dot_dimension_numbers<[1], [1], [0], [0], [0, 0, 1, 0], [], []>} : vector<4x8xf32>, vector<8x8xf32>, vector<4x8xf32> -> vector<4x8xf32>
    "tpu.trace_stop"() : () -> ()
    %cst_34 = arith.constant dense<0xFF800000> : vector<4xf32>
    %68 = vector.multi_reduction <maximumf>, %67, %cst_34 [1] : vector<4x8xf32> to vector<4xf32>
    %69 = vector.shape_cast %68 : vector<4xf32> to vector<4x1xf32>
    %70 = vector.broadcast %69 : vector<4x1xf32> to vector<4x8xf32>
    %71 = arith.subf %67, %70 : vector<4x8xf32>
    %72 = math.exp %71 : vector<4x8xf32>
    %cst_35 = arith.constant dense<0.000000e+00> : vector<4xf32>
    %73 = vector.multi_reduction <add>, %72, %cst_35 [1] : vector<4x8xf32> to vector<4xf32>
    %74 = vector.shape_cast %73 : vector<4xf32> to vector<4x1xf32>
    "tpu.trace_start"() <{level = 10 : i32, message = "st,td->sd"}> : () -> ()
    %cst_36 = arith.constant dense<0.000000e+00> : vector<4x8xf32>
    %75 = tpu.matmul %72, %66, %cst_36 {dimension_numbers = #tpu.dot_dimension_numbers<[1], [0], [0], [1], [0, 0, 1, 1], [], []>} : vector<4x8xf32>, vector<8x8xf32>, vector<4x8xf32> -> vector<4x8xf32>
    "tpu.trace_stop"() : () -> ()
    %76 = tpu.reciprocal %74 : vector<4x1xf32> -> vector<4x1xf32>
    %77 = vector.broadcast %76 : vector<4x1xf32> to vector<4x8xf32>
    %78 = arith.mulf %75, %77 : vector<4x8xf32>
    %79 = vector.extract_strided_slice %17 {offsets = [16, 0], sizes = [8, 32], strides = [1, 1]} : vector<32x32xf32> to vector<8x32xf32>
    %cst_37 = arith.constant dense<0.000000e+00> : vector<4x32xf32>
    %80 = tpu.matmul %78, %79, %cst_37 {dimension_numbers = #tpu.dot_dimension_numbers<[1], [0], [0], [1], [0, 0, 1, 1], [], []>} : vector<4x8xf32>, vector<8x32xf32>, vector<4x32xf32> -> vector<4x32xf32>
    %81 = arith.addf %63, %80 : vector<4x32xf32>
    %82 = vector.extract_strided_slice %22 {offsets = [0, 24], sizes = [4, 8], strides = [1, 1]} : vector<4x32xf32> to vector<4x8xf32>
    %83 = vector.extract_strided_slice %24 {offsets = [0, 24], sizes = [8, 8], strides = [1, 1]} : vector<8x32xf32> to vector<8x8xf32>
    %84 = vector.extract_strided_slice %26 {offsets = [0, 24], sizes = [8, 8], strides = [1, 1]} : vector<8x32xf32> to vector<8x8xf32>
    "tpu.trace_start"() <{level = 10 : i32, message = "sd,td->st"}> : () -> ()
    %cst_38 = arith.constant dense<0.000000e+00> : vector<4x8xf32>
    %85 = tpu.matmul %82, %83, %cst_38 {dimension_numbers = #tpu.dot_dimension_numbers<[1], [1], [0], [0], [0, 0, 1, 0], [], []>} : vector<4x8xf32>, vector<8x8xf32>, vector<4x8xf32> -> vector<4x8xf32>
    "tpu.trace_stop"() : () -> ()
    %cst_39 = arith.constant dense<0xFF800000> : vector<4xf32>
    %86 = vector.multi_reduction <maximumf>, %85, %cst_39 [1] : vector<4x8xf32> to vector<4xf32>
    %87 = vector.shape_cast %86 : vector<4xf32> to vector<4x1xf32>
    %88 = vector.broadcast %87 : vector<4x1xf32> to vector<4x8xf32>
    %89 = arith.subf %85, %88 : vector<4x8xf32>
    %90 = math.exp %89 : vector<4x8xf32>
    %cst_40 = arith.constant dense<0.000000e+00> : vector<4xf32>
    %91 = vector.multi_reduction <add>, %90, %cst_40 [1] : vector<4x8xf32> to vector<4xf32>
    %92 = vector.shape_cast %91 : vector<4xf32> to vector<4x1xf32>
    "tpu.trace_start"() <{level = 10 : i32, message = "st,td->sd"}> : () -> ()
    %cst_41 = arith.constant dense<0.000000e+00> : vector<4x8xf32>
    %93 = tpu.matmul %90, %84, %cst_41 {dimension_numbers = #tpu.dot_dimension_numbers<[1], [0], [0], [1], [0, 0, 1, 1], [], []>} : vector<4x8xf32>, vector<8x8xf32>, vector<4x8xf32> -> vector<4x8xf32>
    "tpu.trace_stop"() : () -> ()
    %94 = tpu.reciprocal %92 : vector<4x1xf32> -> vector<4x1xf32>
    %95 = vector.broadcast %94 : vector<4x1xf32> to vector<4x8xf32>
    %96 = arith.mulf %93, %95 : vector<4x8xf32>
    %97 = vector.extract_strided_slice %17 {offsets = [24, 0], sizes = [8, 32], strides = [1, 1]} : vector<32x32xf32> to vector<8x32xf32>
    %cst_42 = arith.constant dense<0.000000e+00> : vector<4x32xf32>
    %98 = tpu.matmul %96, %97, %cst_42 {dimension_numbers = #tpu.dot_dimension_numbers<[1], [0], [0], [1], [0, 0, 1, 1], [], []>} : vector<4x8xf32>, vector<8x32xf32>, vector<4x32xf32> -> vector<4x32xf32>
    %99 = arith.addf %81, %98 : vector<4x32xf32>
    %100 = vector.extract_strided_slice %6 {offsets = [0, 0, 0], sizes = [4, 1, 32], strides = [1, 1, 1]} : vector<4x2x32xf32> to vector<4x1x32xf32>
    %101 = vector.shape_cast %100 : vector<4x1x32xf32> to vector<4x32xf32>
    %102 = arith.addf %101, %99 : vector<4x32xf32>
    %103 = vector.broadcast %18 : vector<1x32xf32> to vector<4x32xf32>
    %104 = arith.addf %102, %103 : vector<4x32xf32>
    %cst_43 = arith.constant dense<0.000000e+00> : vector<4xf32>
    %105 = vector.multi_reduction <add>, %104, %cst_43 [1] : vector<4x32xf32> to vector<4xf32>
    %106 = vector.shape_cast %105 : vector<4xf32> to vector<4x1xf32>
    %cst_44 = arith.constant 3.200000e+01 : f32
    %107 = vector.broadcast %cst_44 : f32 to vector<4x1xf32>
    %108 = arith.divf %106, %107 : vector<4x1xf32>
    %109 = vector.broadcast %108 : vector<4x1xf32> to vector<4x32xf32>
    %110 = arith.subf %104, %109 : vector<4x32xf32>
    %111 = arith.mulf %110, %110 : vector<4x32xf32>
    %cst_45 = arith.constant dense<0.000000e+00> : vector<4xf32>
    %112 = vector.multi_reduction <add>, %111, %cst_45 [1] : vector<4x32xf32> to vector<4xf32>
    %113 = vector.shape_cast %112 : vector<4xf32> to vector<4x1xf32>
    %cst_46 = arith.constant 3.200000e+01 : f32
    %114 = vector.broadcast %cst_46 : f32 to vector<4x1xf32>
    %115 = arith.divf %113, %114 : vector<4x1xf32>
    %116 = vector.broadcast %108 : vector<4x1xf32> to vector<4x32xf32>
    %117 = arith.subf %104, %116 : vector<4x32xf32>
    %cst_47 = arith.constant 9.99999974E-6 : f32
    %118 = vector.broadcast %cst_47 : f32 to vector<4x1xf32>
    %119 = arith.addf %115, %118 : vector<4x1xf32>
    %120 = math.rsqrt %119 : vector<4x1xf32>
    %121 = vector.broadcast %120 : vector<4x1xf32> to vector<4x32xf32>
    %122 = arith.mulf %117, %121 : vector<4x32xf32>
    %123 = vector.broadcast %19 : vector<1x32xf32> to vector<4x32xf32>
    %124 = arith.mulf %122, %123 : vector<4x32xf32>
    %125 = vector.broadcast %20 : vector<1x32xf32> to vector<4x32xf32>
    %126 = arith.addf %124, %125 : vector<4x32xf32>
    %127 = vector.shape_cast %126 : vector<4x32xf32> to vector<4x1x32xf32>
    %c0_48 = arith.constant 0 : index
    %c0_49 = arith.constant 0 : index
    %c0_50 = arith.constant 0 : index
    %128 = vector.load %arg13[%c0_48, %c0_49, %c0_50] : memref<4x2x32xf32, #tpu.memory_space<vmem>>, vector<4x1x32xf32>
    tpu.vector_store %arg13[%c0_48, %c0_49, %c0_50], %127 {strides = array<i32>} : memref<4x2x32xf32, #tpu.memory_space<vmem>>, vector<4x1x32xf32>,
    %129 = vector.extract_strided_slice %16 {offsets = [0, 1, 0], sizes = [4, 1, 32], strides = [1, 1, 1]} : vector<4x2x32xf32> to vector<4x1x32xf32>
    %130 = vector.shape_cast %129 : vector<4x1x32xf32> to vector<4x32xf32>
    %c1 = arith.constant 1 : index
    %c0_51 = arith.constant 0 : index
    %c0_52 = arith.constant 0 : index
    %131 = vector.load %arg14[%c1, %c0_51, %c0_52] : memref<2x8x32xf32, #tpu.memory_space<vmem>>, vector<1x8x32xf32>
    %132 = vector.shape_cast %131 : vector<1x8x32xf32> to vector<8x32xf32>
    %c1_53 = arith.constant 1 : index
    %c0_54 = arith.constant 0 : index
    %c0_55 = arith.constant 0 : index
    %133 = vector.load %arg15[%c1_53, %c0_54, %c0_55] : memref<2x8x32xf32, #tpu.memory_space<vmem>>, vector<1x8x32xf32>
    %134 = vector.shape_cast %133 : vector<1x8x32xf32> to vector<8x32xf32>
    %cst_56 = arith.constant 0.000000e+00 : f32
    %135 = vector.broadcast %cst_56 : f32 to vector<4x32xf32>
    %136 = vector.extract_strided_slice %130 {offsets = [0, 0], sizes = [4, 8], strides = [1, 1]} : vector<4x32xf32> to vector<4x8xf32>
    %137 = vector.extract_strided_slice %132 {offsets = [0, 0], sizes = [8, 8], strides = [1, 1]} : vector<8x32xf32> to vector<8x8xf32>
    %138 = vector.extract_strided_slice %134 {offsets = [0, 0], sizes = [8, 8], strides = [1, 1]} : vector<8x32xf32> to vector<8x8xf32>
    "tpu.trace_start"() <{level = 10 : i32, message = "sd,td->st"}> : () -> ()
    %cst_57 = arith.constant dense<0.000000e+00> : vector<4x8xf32>
    %139 = tpu.matmul %136, %137, %cst_57 {dimension_numbers = #tpu.dot_dimension_numbers<[1], [1], [0], [0], [0, 0, 1, 0], [], []>} : vector<4x8xf32>, vector<8x8xf32>, vector<4x8xf32> -> vector<4x8xf32>
    "tpu.trace_stop"() : () -> ()
    %cst_58 = arith.constant dense<0xFF800000> : vector<4xf32>
    %140 = vector.multi_reduction <maximumf>, %139, %cst_58 [1] : vector<4x8xf32> to vector<4xf32>
    %141 = vector.shape_cast %140 : vector<4xf32> to vector<4x1xf32>
    %142 = vector.broadcast %141 : vector<4x1xf32> to vector<4x8xf32>
    %143 = arith.subf %139, %142 : vector<4x8xf32>
    %144 = math.exp %143 : vector<4x8xf32>
    %cst_59 = arith.constant dense<0.000000e+00> : vector<4xf32>
    %145 = vector.multi_reduction <add>, %144, %cst_59 [1] : vector<4x8xf32> to vector<4xf32>
    %146 = vector.shape_cast %145 : vector<4xf32> to vector<4x1xf32>
    "tpu.trace_start"() <{level = 10 : i32, message = "st,td->sd"}> : () -> ()
    %cst_60 = arith.constant dense<0.000000e+00> : vector<4x8xf32>
    %147 = tpu.matmul %144, %138, %cst_60 {dimension_numbers = #tpu.dot_dimension_numbers<[1], [0], [0], [1], [0, 0, 1, 1], [], []>} : vector<4x8xf32>, vector<8x8xf32>, vector<4x8xf32> -> vector<4x8xf32>
    "tpu.trace_stop"() : () -> ()
    %148 = tpu.reciprocal %146 : vector<4x1xf32> -> vector<4x1xf32>
    %149 = vector.broadcast %148 : vector<4x1xf32> to vector<4x8xf32>
    %150 = arith.mulf %147, %149 : vector<4x8xf32>
    %151 = vector.extract_strided_slice %17 {offsets = [0, 0], sizes = [8, 32], strides = [1, 1]} : vector<32x32xf32> to vector<8x32xf32>
    %cst_61 = arith.constant dense<0.000000e+00> : vector<4x32xf32>
    %152 = tpu.matmul %150, %151, %cst_61 {dimension_numbers = #tpu.dot_dimension_numbers<[1], [0], [0], [1], [0, 0, 1, 1], [], []>} : vector<4x8xf32>, vector<8x32xf32>, vector<4x32xf32> -> vector<4x32xf32>
    %153 = arith.addf %135, %152 : vector<4x32xf32>
    %154 = vector.extract_strided_slice %130 {offsets = [0, 8], sizes = [4, 8], strides = [1, 1]} : vector<4x32xf32> to vector<4x8xf32>
    %155 = vector.extract_strided_slice %132 {offsets = [0, 8], sizes = [8, 8], strides = [1, 1]} : vector<8x32xf32> to vector<8x8xf32>
    %156 = vector.extract_strided_slice %134 {offsets = [0, 8], sizes = [8, 8], strides = [1, 1]} : vector<8x32xf32> to vector<8x8xf32>
    "tpu.trace_start"() <{level = 10 : i32, message = "sd,td->st"}> : () -> ()
    %cst_62 = arith.constant dense<0.000000e+00> : vector<4x8xf32>
    %157 = tpu.matmul %154, %155, %cst_62 {dimension_numbers = #tpu.dot_dimension_numbers<[1], [1], [0], [0], [0, 0, 1, 0], [], []>} : vector<4x8xf32>, vector<8x8xf32>, vector<4x8xf32> -> vector<4x8xf32>
    "tpu.trace_stop"() : () -> ()
    %cst_63 = arith.constant dense<0xFF800000> : vector<4xf32>
    %158 = vector.multi_reduction <maximumf>, %157, %cst_63 [1] : vector<4x8xf32> to vector<4xf32>
    %159 = vector.shape_cast %158 : vector<4xf32> to vector<4x1xf32>
    %160 = vector.broadcast %159 : vector<4x1xf32> to vector<4x8xf32>
    %161 = arith.subf %157, %160 : vector<4x8xf32>
    %162 = math.exp %161 : vector<4x8xf32>
    %cst_64 = arith.constant dense<0.000000e+00> : vector<4xf32>
    %163 = vector.multi_reduction <add>, %162, %cst_64 [1] : vector<4x8xf32> to vector<4xf32>
    %164 = vector.shape_cast %163 : vector<4xf32> to vector<4x1xf32>
    "tpu.trace_start"() <{level = 10 : i32, message = "st,td->sd"}> : () -> ()
    %cst_65 = arith.constant dense<0.000000e+00> : vector<4x8xf32>
    %165 = tpu.matmul %162, %156, %cst_65 {dimension_numbers = #tpu.dot_dimension_numbers<[1], [0], [0], [1], [0, 0, 1, 1], [], []>} : vector<4x8xf32>, vector<8x8xf32>, vector<4x8xf32> -> vector<4x8xf32>
    "tpu.trace_stop"() : () -> ()
    %166 = tpu.reciprocal %164 : vector<4x1xf32> -> vector<4x1xf32>
    %167 = vector.broadcast %166 : vector<4x1xf32> to vector<4x8xf32>
    %168 = arith.mulf %165, %167 : vector<4x8xf32>
    %169 = vector.extract_strided_slice %17 {offsets = [8, 0], sizes = [8, 32], strides = [1, 1]} : vector<32x32xf32> to vector<8x32xf32>
    %cst_66 = arith.constant dense<0.000000e+00> : vector<4x32xf32>
    %170 = tpu.matmul %168, %169, %cst_66 {dimension_numbers = #tpu.dot_dimension_numbers<[1], [0], [0], [1], [0, 0, 1, 1], [], []>} : vector<4x8xf32>, vector<8x32xf32>, vector<4x32xf32> -> vector<4x32xf32>
    %171 = arith.addf %153, %170 : vector<4x32xf32>
    %172 = vector.extract_strided_slice %130 {offsets = [0, 16], sizes = [4, 8], strides = [1, 1]} : vector<4x32xf32> to vector<4x8xf32>
    %173 = vector.extract_strided_slice %132 {offsets = [0, 16], sizes = [8, 8], strides = [1, 1]} : vector<8x32xf32> to vector<8x8xf32>
    %174 = vector.extract_strided_slice %134 {offsets = [0, 16], sizes = [8, 8], strides = [1, 1]} : vector<8x32xf32> to vector<8x8xf32>
    "tpu.trace_start"() <{level = 10 : i32, message = "sd,td->st"}> : () -> ()
    %cst_67 = arith.constant dense<0.000000e+00> : vector<4x8xf32>
    %175 = tpu.matmul %172, %173, %cst_67 {dimension_numbers = #tpu.dot_dimension_numbers<[1], [1], [0], [0], [0, 0, 1, 0], [], []>} : vector<4x8xf32>, vector<8x8xf32>, vector<4x8xf32> -> vector<4x8xf32>
    "tpu.trace_stop"() : () -> ()
    %cst_68 = arith.constant dense<0xFF800000> : vector<4xf32>
    %176 = vector.multi_reduction <maximumf>, %175, %cst_68 [1] : vector<4x8xf32> to vector<4xf32>
    %177 = vector.shape_cast %176 : vector<4xf32> to vector<4x1xf32>
    %178 = vector.broadcast %177 : vector<4x1xf32> to vector<4x8xf32>
    %179 = arith.subf %175, %178 : vector<4x8xf32>
    %180 = math.exp %179 : vector<4x8xf32>
    %cst_69 = arith.constant dense<0.000000e+00> : vector<4xf32>
    %181 = vector.multi_reduction <add>, %180, %cst_69 [1] : vector<4x8xf32> to vector<4xf32>
    %182 = vector.shape_cast %181 : vector<4xf32> to vector<4x1xf32>
    "tpu.trace_start"() <{level = 10 : i32, message = "st,td->sd"}> : () -> ()
    %cst_70 = arith.constant dense<0.000000e+00> : vector<4x8xf32>
    %183 = tpu.matmul %180, %174, %cst_70 {dimension_numbers = #tpu.dot_dimension_numbers<[1], [0], [0], [1], [0, 0, 1, 1], [], []>} : vector<4x8xf32>, vector<8x8xf32>, vector<4x8xf32> -> vector<4x8xf32>
    "tpu.trace_stop"() : () -> ()
    %184 = tpu.reciprocal %182 : vector<4x1xf32> -> vector<4x1xf32>
    %185 = vector.broadcast %184 : vector<4x1xf32> to vector<4x8xf32>
    %186 = arith.mulf %183, %185 : vector<4x8xf32>
    %187 = vector.extract_strided_slice %17 {offsets = [16, 0], sizes = [8, 32], strides = [1, 1]} : vector<32x32xf32> to vector<8x32xf32>
    %cst_71 = arith.constant dense<0.000000e+00> : vector<4x32xf32>
    %188 = tpu.matmul %186, %187, %cst_71 {dimension_numbers = #tpu.dot_dimension_numbers<[1], [0], [0], [1], [0, 0, 1, 1], [], []>} : vector<4x8xf32>, vector<8x32xf32>, vector<4x32xf32> -> vector<4x32xf32>
    %189 = arith.addf %171, %188 : vector<4x32xf32>
    %190 = vector.extract_strided_slice %130 {offsets = [0, 24], sizes = [4, 8], strides = [1, 1]} : vector<4x32xf32> to vector<4x8xf32>
    %191 = vector.extract_strided_slice %132 {offsets = [0, 24], sizes = [8, 8], strides = [1, 1]} : vector<8x32xf32> to vector<8x8xf32>
    %192 = vector.extract_strided_slice %134 {offsets = [0, 24], sizes = [8, 8], strides = [1, 1]} : vector<8x32xf32> to vector<8x8xf32>
    "tpu.trace_start"() <{level = 10 : i32, message = "sd,td->st"}> : () -> ()
    %cst_72 = arith.constant dense<0.000000e+00> : vector<4x8xf32>
    %193 = tpu.matmul %190, %191, %cst_72 {dimension_numbers = #tpu.dot_dimension_numbers<[1], [1], [0], [0], [0, 0, 1, 0], [], []>} : vector<4x8xf32>, vector<8x8xf32>, vector<4x8xf32> -> vector<4x8xf32>
    "tpu.trace_stop"() : () -> ()
    %cst_73 = arith.constant dense<0xFF800000> : vector<4xf32>
    %194 = vector.multi_reduction <maximumf>, %193, %cst_73 [1] : vector<4x8xf32> to vector<4xf32>
    %195 = vector.shape_cast %194 : vector<4xf32> to vector<4x1xf32>
    %196 = vector.broadcast %195 : vector<4x1xf32> to vector<4x8xf32>
    %197 = arith.subf %193, %196 : vector<4x8xf32>
    %198 = math.exp %197 : vector<4x8xf32>
    %cst_74 = arith.constant dense<0.000000e+00> : vector<4xf32>
    %199 = vector.multi_reduction <add>, %198, %cst_74 [1] : vector<4x8xf32> to vector<4xf32>
    %200 = vector.shape_cast %199 : vector<4xf32> to vector<4x1xf32>
    "tpu.trace_start"() <{level = 10 : i32, message = "st,td->sd"}> : () -> ()
    %cst_75 = arith.constant dense<0.000000e+00> : vector<4x8xf32>
    %201 = tpu.matmul %198, %192, %cst_75 {dimension_numbers = #tpu.dot_dimension_numbers<[1], [0], [0], [1], [0, 0, 1, 1], [], []>} : vector<4x8xf32>, vector<8x8xf32>, vector<4x8xf32> -> vector<4x8xf32>
    "tpu.trace_stop"() : () -> ()
    %202 = tpu.reciprocal %200 : vector<4x1xf32> -> vector<4x1xf32>
    %203 = vector.broadcast %202 : vector<4x1xf32> to vector<4x8xf32>
    %204 = arith.mulf %201, %203 : vector<4x8xf32>
    %205 = vector.extract_strided_slice %17 {offsets = [24, 0], sizes = [8, 32], strides = [1, 1]} : vector<32x32xf32> to vector<8x32xf32>
    %cst_76 = arith.constant dense<0.000000e+00> : vector<4x32xf32>
    %206 = tpu.matmul %204, %205, %cst_76 {dimension_numbers = #tpu.dot_dimension_numbers<[1], [0], [0], [1], [0, 0, 1, 1], [], []>} : vector<4x8xf32>, vector<8x32xf32>, vector<4x32xf32> -> vector<4x32xf32>
    %207 = arith.addf %189, %206 : vector<4x32xf32>
    %208 = vector.extract_strided_slice %6 {offsets = [0, 1, 0], sizes = [4, 1, 32], strides = [1, 1, 1]} : vector<4x2x32xf32> to vector<4x1x32xf32>
    %209 = vector.shape_cast %208 : vector<4x1x32xf32> to vector<4x32xf32>
    %210 = arith.addf %209, %207 : vector<4x32xf32>
    %211 = vector.broadcast %18 : vector<1x32xf32> to vector<4x32xf32>
    %212 = arith.addf %210, %211 : vector<4x32xf32>
    %cst_77 = arith.constant dense<0.000000e+00> : vector<4xf32>
    %213 = vector.multi_reduction <add>, %212, %cst_77 [1] : vector<4x32xf32> to vector<4xf32>
    %214 = vector.shape_cast %213 : vector<4xf32> to vector<4x1xf32>
    %cst_78 = arith.constant 3.200000e+01 : f32
    %215 = vector.broadcast %cst_78 : f32 to vector<4x1xf32>
    %216 = arith.divf %214, %215 : vector<4x1xf32>
    %217 = vector.broadcast %216 : vector<4x1xf32> to vector<4x32xf32>
    %218 = arith.subf %212, %217 : vector<4x32xf32>
    %219 = arith.mulf %218, %218 : vector<4x32xf32>
    %cst_79 = arith.constant dense<0.000000e+00> : vector<4xf32>
    %220 = vector.multi_reduction <add>, %219, %cst_79 [1] : vector<4x32xf32> to vector<4xf32>
    %221 = vector.shape_cast %220 : vector<4xf32> to vector<4x1xf32>
    %cst_80 = arith.constant 3.200000e+01 : f32
    %222 = vector.broadcast %cst_80 : f32 to vector<4x1xf32>
    %223 = arith.divf %221, %222 : vector<4x1xf32>
    %224 = vector.broadcast %216 : vector<4x1xf32> to vector<4x32xf32>
    %225 = arith.subf %212, %224 : vector<4x32xf32>
    %cst_81 = arith.constant 9.99999974E-6 : f32
    %226 = vector.broadcast %cst_81 : f32 to vector<4x1xf32>
    %227 = arith.addf %223, %226 : vector<4x1xf32>
    %228 = math.rsqrt %227 : vector<4x1xf32>
    %229 = vector.broadcast %228 : vector<4x1xf32> to vector<4x32xf32>
    %230 = arith.mulf %225, %229 : vector<4x32xf32>
    %231 = vector.broadcast %19 : vector<1x32xf32> to vector<4x32xf32>
    %232 = arith.mulf %230, %231 : vector<4x32xf32>
    %233 = vector.broadcast %20 : vector<1x32xf32> to vector<4x32xf32>
    %234 = arith.addf %232, %233 : vector<4x32xf32>
    %235 = vector.shape_cast %234 : vector<4x32xf32> to vector<4x1x32xf32>
    %c0_82 = arith.constant 0 : index
    %c1_83 = arith.constant 1 : index
    %c0_84 = arith.constant 0 : index
    %236 = vector.load %arg13[%c0_82, %c1_83, %c0_84] : memref<4x2x32xf32, #tpu.memory_space<vmem>>, vector<4x1x32xf32>
    tpu.vector_store %arg13[%c0_82, %c1_83, %c0_84], %235 {strides = array<i32>} : memref<4x2x32xf32, #tpu.memory_space<vmem>>, vector<4x1x32xf32>,
    return
  }
  func.func @transform_0(%arg0: i32) -> (i32, i32, i32) {
    %c0_i32 = arith.constant 0 : i32
    %c0_i32_0 = arith.constant 0 : i32
    %c0_i32_1 = arith.constant 0 : i32
    %c0_i32_2 = arith.constant 0 : i32
    return %c0_i32, %c0_i32_0, %c0_i32_1 : i32, i32, i32
  }
  func.func @transform_1(%arg0: i32) -> (i32, i32, i32) {
    %c0_i32 = arith.constant 0 : i32
    %c0_i32_0 = arith.constant 0 : i32
    %c0_i32_1 = arith.constant 0 : i32
    %c0_i32_2 = arith.constant 0 : i32
    return %c0_i32, %c0_i32_0, %c0_i32_1 : i32, i32, i32
  }
  func.func @transform_2(%arg0: i32) -> (i32, i32) {
    %c0_i32 = arith.constant 0 : i32
    %c0_i32_0 = arith.constant 0 : i32
    %c0_i32_1 = arith.constant 0 : i32
    return %c0_i32, %c0_i32_0 : i32, i32
  }
  func.func @transform_3(%arg0: i32) -> (i32, i32) {
    %c0_i32 = arith.constant 0 : i32
    %c0_i32_0 = arith.constant 0 : i32
    %c0_i32_1 = arith.constant 0 : i32
    return %c0_i32, %c0_i32_0 : i32, i32
  }
  func.func @transform_4(%arg0: i32) -> (i32, i32) {
    %c0_i32 = arith.constant 0 : i32
    %c0_i32_0 = arith.constant 0 : i32
    %c0_i32_1 = arith.constant 0 : i32
    return %c0_i32, %c0_i32_0 : i32, i32
  }
  func.func @transform_5(%arg0: i32) -> (i32, i32) {
    %c0_i32 = arith.constant 0 : i32
    %c0_i32_0 = arith.constant 0 : i32
    %c0_i32_1 = arith.constant 0 : i32
    return %c0_i32, %c0_i32_0 : i32, i32
  }
  func.func @transform_6(%arg0: i32) -> (i32, i32) {
    %c0_i32 = arith.constant 0 : i32
    %c0_i32_0 = arith.constant 0 : i32
    %c0_i32_1 = arith.constant 0 : i32
    return %c0_i32, %c0_i32_0 : i32, i32
  }
  func.func @transform_7(%arg0: i32) -> (i32, i32) {
    %c0_i32 = arith.constant 0 : i32
    %c0_i32_0 = arith.constant 0 : i32
    %c0_i32_1 = arith.constant 0 : i32
    return %c0_i32, %c0_i32_0 : i32, i32
  }
  func.func @transform_8(%arg0: i32) -> (i32, i32) {
    %c0_i32 = arith.constant 0 : i32
    %c0_i32_0 = arith.constant 0 : i32
    %c0_i32_1 = arith.constant 0 : i32
    return %c0_i32, %c0_i32_0 : i32, i32
  }
  func.func @transform_9(%arg0: i32) -> (i32, i32) {
    %c0_i32 = arith.constant 0 : i32
    %c0_i32_0 = arith.constant 0 : i32
    %c0_i32_1 = arith.constant 0 : i32
    return %c0_i32, %c0_i32_0 : i32, i32
  }
  func.func @transform_10(%arg0: i32) -> (i32, i32) {
    %c0_i32 = arith.constant 0 : i32
    %c0_i32_0 = arith.constant 0 : i32
    %c0_i32_1 = arith.constant 0 : i32
    return %c0_i32, %c0_i32_0 : i32, i32
  }
  func.func @transform_11(%arg0: i32) -> (i32, i32) {
    %c0_i32 = arith.constant 0 : i32
    %c0_i32_0 = arith.constant 0 : i32
    %c0_i32_1 = arith.constant 0 : i32
    return %c0_i32, %c0_i32_0 : i32, i32
  }
  func.func @transform_12(%arg0: i32) -> (i32, i32, i32) {
    %c0_i32 = arith.constant 0 : i32
    %c0_i32_0 = arith.constant 0 : i32
    %c0_i32_1 = arith.constant 0 : i32
    return %arg0, %c0_i32, %c0_i32_0 : i32, i32, i32
  }
}

</mosaic_0001>

<llo_original>
// kernel: tpu_custom_call.1
$region0: #{tpu_custom_call.1}
  #allocation0 [shape = 'u32[]', space=smem, size = 0x4, offset = 0x4, fixed_abs, tag = 'smem constant byte address 0x4 - core index']
  #allocation1 [shape = 'u32[144,128]{1,0:T(1,128)}', space=vmem, size = 0x12000, scoped, tag = 'internal scratch']
  #allocation2 [shape = 'f32[2,8,32]{2,1,0:T(8,128)}', space=vmem, size = 0x2000, scoped, tag = 'scratch operand']
  #allocation3 [shape = 'f32[2,8,32]{2,1,0:T(8,128)}', space=vmem, size = 0x2000, scoped, tag = 'scratch operand']
  %s0 = inlined_call_operand.hbm [shape: f32[8,2,32], index: 0, kind: input, shape index: {}]
  %s1 = inlined_call_operand.hbm [shape: f32[8,2,32], index: 1, kind: input, shape index: {}]
  %s2 = inlined_call_operand.hbm [shape: f32[32,32], index: 2, kind: input, shape index: {}]
  %s3 = inlined_call_operand.hbm [shape: f32[1,32], index: 3, kind: input, shape index: {}]
  %s4 = inlined_call_operand.hbm [shape: f32[32,32], index: 4, kind: input, shape index: {}]
  %s5 = inlined_call_operand.hbm [shape: f32[1,32], index: 5, kind: input, shape index: {}]
  %s6 = inlined_call_operand.hbm [shape: f32[32,32], index: 6, kind: input, shape index: {}]
  %s7 = inlined_call_operand.hbm [shape: f32[1,32], index: 7, kind: input, shape index: {}]
  %s8 = inlined_call_operand.hbm [shape: f32[32,32], index: 8, kind: input, shape index: {}]
  %s9 = inlined_call_operand.hbm [shape: f32[1,32], index: 9, kind: input, shape index: {}]
  %s10 = inlined_call_operand.hbm [shape: f32[1,32], index: 10, kind: input, shape index: {}]
  %s11 = inlined_call_operand.hbm [shape: f32[1,32], index: 11, kind: input, shape index: {}]
  %s12 = inlined_call_operand.hbm [shape: f32[8,2,32], index: 12, kind: output, shape index: {}]
  %s13 = sld [smem:[#allocation0]]
  $region133: #{tpu_custom_call.1} parent=0
    _
  %s15 = ssub.s32 1, %s13
  %s16 = scalar_select 0, %s15, %s13
  $region1: #{tpu_custom_call.1} parent=0
    #allocation4 [shape = 'u8[8192]{0}', space=vmem, size = 0x2000, scoped, tag = 'input window, operand 0, single buffered']
    #allocation5 [shape = 's32[2]{0}', space=sflag, size = 0x8, scoped, tag = 'scoped memory for tpu_custom_call.1']
    #allocation6 [shape = 's32[2]{0}', space=sflag, size = 0x8, scoped, tag = 'scoped memory for tpu_custom_call.1']
    #allocation7 [shape = 'u8[8192]{0}', space=vmem, size = 0x2000, scoped, tag = 'input window, operand 1, single buffered']
    #allocation8 [shape = 's32[1]{0}', space=sflag, size = 0x4, scoped, tag = 'scoped memory for tpu_custom_call.1']
    #allocation9 [shape = 'u8[16384]{0}', space=vmem, size = 0x4000, scoped, tag = 'input window, operand 2, single buffered']
    #allocation10 [shape = 'u8[512]{0}', space=vmem, size = 0x400, scoped, tag = 'input window, operand 3, single buffered']
    #allocation11 [shape = 's32[1]{0}', space=sflag, size = 0x4, scoped, tag = 'scoped memory for tpu_custom_call.1']
    #allocation12 [shape = 'u8[16384]{0}', space=vmem, size = 0x4000, scoped, tag = 'input window, operand 4, single buffered']
    #allocation13 [shape = 'u8[512]{0}', space=vmem, size = 0x400, scoped, tag = 'input window, operand 5, single buffered']
    #allocation14 [shape = 's32[1]{0}', space=sflag, size = 0x4, scoped, tag = 'scoped memory for tpu_custom_call.1']
    #allocation15 [shape = 'u8[16384]{0}', space=vmem, size = 0x4000, scoped, tag = 'input window, operand 6, single buffered']
    #allocation16 [shape = 'u8[512]{0}', space=vmem, size = 0x400, scoped, tag = 'input window, operand 7, single buffered']
    #allocation17 [shape = 's32[1]{0}', space=sflag, size = 0x4, scoped, tag = 'scoped memory for tpu_custom_call.1']
    #allocation18 [shape = 'u8[16384]{0}', space=vmem, size = 0x4000, scoped, tag = 'input window, operand 8, single buffered']
    #allocation19 [shape = 'u8[512]{0}', space=vmem, size = 0x400, scoped, tag = 'input window, operand 9, single buffered']
    #allocation20 [shape = 's32[1]{0}', space=sflag, size = 0x4, scoped, tag = 'scoped memory for tpu_custom_call.1']
    #allocation21 [shape = 'u8[512]{0}', space=vmem, size = 0x400, scoped, tag = 'input window, operand 10, single buffered']
    #allocation22 [shape = 'u8[512]{0}', space=vmem, size = 0x400, scoped, tag = 'input window, operand 11, single buffered']
    #allocation23 [shape = 's32[1]{0}', space=sflag, size = 0x4, scoped, tag = 'scoped memory for tpu_custom_call.1']
    #allocation24 [shape = 'u8[8192]{0}', space=vmem, size = 0x2000, scoped, tag = 'output window, operand 0']
    %17 = vsyncpa [#allocation5], 0
    %18 = vsyncpa [#allocation8], 0
    %19 = vsyncpa [#allocation11], 0
    %20 = vsyncpa [#allocation14], 0
    %21 = vsyncpa [#allocation17], 0
    %22 = vsyncpa [#allocation20], 0
    %23 = vsyncpa [#allocation23], 0
    %24 = vsyncpa [#allocation6], 0
    %s25 = scalar_lea.sflag [#allocation6], 1
    %26 = vsyncpa %s25, 0
    loop: start=0, step=1, limit=4
    $region2: #{tpu_custom_call.1} parent=1 // loop_pre_header
      _
    $region3: #{tpu_custom_call.1} parent=1 // loop_header
      %s28 = sphi 0, %s32
      %p29 = scmp.ge.s32.totalorder %s28, 4
      %s36 = sphi 0, %s36
      %s38 = sphi 0, %s36
      %s39 = sphi 0, %s38
      %s53 = sphi 0, %s39
      %s57 = sphi 0, %s57
      %s59 = sphi 0, %s57
      %s60 = sphi 0, %s59
      %s74 = sphi 0, %s60
      %s78 = sphi 0, %s78
      %s80 = sphi 0, %s78
      %s81 = sphi 0, %s80
      %s95 = sphi 0, %s81
      %s99 = sphi 0, %s99
      %s101 = sphi 0, %s99
      %s102 = sphi 0, %s101
      %s116 = sphi 0, %s102
      %s120 = sphi 0, %s120
      %s122 = sphi 0, %s120
      %s123 = sphi 0, %s122
      %s137 = sphi 0, %s123
      %s141 = sphi 0, %s141
      %s143 = sphi 0, %s141
      %s144 = sphi 0, %s143
      %s158 = sphi 0, %s144
      %s162 = sphi 0, %s162
      %s164 = sphi 0, %s162
      %s165 = sphi 0, %s164
      %s179 = sphi 0, %s165
      %s183 = sphi 0, %s183
      %s185 = sphi 0, %s183
      %s186 = sphi 0, %s185
      %s200 = sphi 0, %s186
      %s204 = sphi 0, %s204
      %s206 = sphi 0, %s204
      %s207 = sphi 0, %s206
      %s221 = sphi 0, %s207
      %s225 = sphi 0, %s225
      %s227 = sphi 0, %s225
      %s228 = sphi 0, %s227
      %s242 = sphi 0, %s228
      %s246 = sphi 0, %s246
      %s248 = sphi 0, %s246
      %s249 = sphi 0, %s248
      %s263 = sphi 0, %s249
      %s267 = sphi 0, %s267
      %s269 = sphi 0, %s267
      %s270 = sphi 0, %s269
      %s284 = sphi 0, %s270
      %s290 = sphi 0, %s292
      %s293 = sphi 0, %s290
      %s294 = sphi 0, %s293
      %s310 = sphi 0, %s294
    $region4: #{tpu_custom_call.1} parent=1 // loop_header_branch
      %31 = sbr.rel (%p29) target = $region8
    $region5: #{tpu_custom_call.1} parent=1 // loop_body
      %s33 = ssub.s32 %s28, 1
      %s34 = ssub.s32 %s28, 2
      %s35 = sadd.s32 %s28, 1
      %s37 = sadd.s32 %s36, 1
      %p40 = scmp.eq.s32.totalorder %s28, 1
      %p41 = scmp.ne.s32.totalorder %s36, %s38
      %p42 = scmp.eq.s32.totalorder %s28, 0
      %p43 = por %p41, %p42
      %p44 = scmp.ne.s32.totalorder %s36, %s38
      %p45 = scmp.eq.s32.totalorder %s33, 1
      %p46 = por %p44, %p45
      %p47 = scmp.ne.s32.totalorder %s38, %s39
      %p48 = scmp.eq.s32.totalorder %s33, 0
      %p49 = por %p47, %p48
      %p50 = scmp.ne.s32.totalorder %s38, %s39
      %p51 = scmp.eq.s32.totalorder %s34, 1
      %p52 = por %p50, %p51
      %p54 = scmp.ne.s32.totalorder %s39, %s53
      %p55 = scmp.eq.s32.totalorder %s34, 0
      %p56 = por %p54, %p55
      %s58 = sadd.s32 %s57, 1
      %p61 = scmp.eq.s32.totalorder %s28, 1
      %p62 = scmp.ne.s32.totalorder %s57, %s59
      %p63 = scmp.eq.s32.totalorder %s28, 0
      %p64 = por %p62, %p63
      %p65 = scmp.ne.s32.totalorder %s57, %s59
      %p66 = scmp.eq.s32.totalorder %s33, 1
      %p67 = por %p65, %p66
      %p68 = scmp.ne.s32.totalorder %s59, %s60
      %p69 = scmp.eq.s32.totalorder %s33, 0
      %p70 = por %p68, %p69
      %p71 = scmp.ne.s32.totalorder %s59, %s60
      %p72 = scmp.eq.s32.totalorder %s34, 1
      %p73 = por %p71, %p72
      %p75 = scmp.ne.s32.totalorder %s60, %s74
      %p76 = scmp.eq.s32.totalorder %s34, 0
      %p77 = por %p75, %p76
      %s79 = sadd.s32 %s78, 1
      %p82 = scmp.eq.s32.totalorder %s28, 1
      %p83 = scmp.ne.s32.totalorder %s78, %s80
      %p84 = scmp.eq.s32.totalorder %s28, 0
      %p85 = por %p83, %p84
      %p86 = scmp.ne.s32.totalorder %s78, %s80
      %p87 = scmp.eq.s32.totalorder %s33, 1
      %p88 = por %p86, %p87
      %p89 = scmp.ne.s32.totalorder %s80, %s81
      %p90 = scmp.eq.s32.totalorder %s33, 0
      %p91 = por %p89, %p90
      %p92 = scmp.ne.s32.totalorder %s80, %s81
      %p93 = scmp.eq.s32.totalorder %s34, 1
      %p94 = por %p92, %p93
      %p96 = scmp.ne.s32.totalorder %s81, %s95
      %p97 = scmp.eq.s32.totalorder %s34, 0
      %p98 = por %p96, %p97
      %s100 = sadd.s32 %s99, 1
      %p103 = scmp.eq.s32.totalorder %s28, 1
      %p104 = scmp.ne.s32.totalorder %s99, %s101
      %p105 = scmp.eq.s32.totalorder %s28, 0
      %p106 = por %p104, %p105
      %p107 = scmp.ne.s32.totalorder %s99, %s101
      %p108 = scmp.eq.s32.totalorder %s33, 1
      %p109 = por %p107, %p108
      %p110 = scmp.ne.s32.totalorder %s101, %s102
      %p111 = scmp.eq.s32.totalorder %s33, 0
      %p112 = por %p110, %p111
      %p113 = scmp.ne.s32.totalorder %s101, %s102
      %p114 = scmp.eq.s32.totalorder %s34, 1
      %p115 = por %p113, %p114
      %p117 = scmp.ne.s32.totalorder %s102, %s116
      %p118 = scmp.eq.s32.totalorder %s34, 0
      %p119 = por %p117, %p118
      %s121 = sadd.s32 %s120, 1
      %p124 = scmp.eq.s32.totalorder %s28, 1
      %p125 = scmp.ne.s32.totalorder %s120, %s122
      %p126 = scmp.eq.s32.totalorder %s28, 0
      %p127 = por %p125, %p126
      %p128 = scmp.ne.s32.totalorder %s120, %s122
      %p129 = scmp.eq.s32.totalorder %s33, 1
      %p130 = por %p128, %p129
      %p131 = scmp.ne.s32.totalorder %s122, %s123
      %p132 = scmp.eq.s32.totalorder %s33, 0
      %p133 = por %p131, %p132
      %p134 = scmp.ne.s32.totalorder %s122, %s123
      %p135 = scmp.eq.s32.totalorder %s34, 1
      %p136 = por %p134, %p135
      %p138 = scmp.ne.s32.totalorder %s123, %s137
      %p139 = scmp.eq.s32.totalorder %s34, 0
      %p140 = por %p138, %p139
      %s142 = sadd.s32 %s141, 1
      %p145 = scmp.eq.s32.totalorder %s28, 1
      %p146 = scmp.ne.s32.totalorder %s141, %s143
      %p147 = scmp.eq.s32.totalorder %s28, 0
      %p148 = por %p146, %p147
      %p149 = scmp.ne.s32.totalorder %s141, %s143
      %p150 = scmp.eq.s32.totalorder %s33, 1
      %p151 = por %p149, %p150
      %p152 = scmp.ne.s32.totalorder %s143, %s144
      %p153 = scmp.eq.s32.totalorder %s33, 0
      %p154 = por %p152, %p153
      %p155 = scmp.ne.s32.totalorder %s143, %s144
      %p156 = scmp.eq.s32.totalorder %s34, 1
      %p157 = por %p155, %p156
      %p159 = scmp.ne.s32.totalorder %s144, %s158
      %p160 = scmp.eq.s32.totalorder %s34, 0
      %p161 = por %p159, %p160
      %s163 = sadd.s32 %s162, 1
      %p166 = scmp.eq.s32.totalorder %s28, 1
      %p167 = scmp.ne.s32.totalorder %s162, %s164
      %p168 = scmp.eq.s32.totalorder %s28, 0
      %p169 = por %p167, %p168
      %p170 = scmp.ne.s32.totalorder %s162, %s164
      %p171 = scmp.eq.s32.totalorder %s33, 1
      %p172 = por %p170, %p171
      %p173 = scmp.ne.s32.totalorder %s164, %s165
      %p174 = scmp.eq.s32.totalorder %s33, 0
      %p175 = por %p173, %p174
      %p176 = scmp.ne.s32.totalorder %s164, %s165
      %p177 = scmp.eq.s32.totalorder %s34, 1
      %p178 = por %p176, %p177
      %p180 = scmp.ne.s32.totalorder %s165, %s179
      %p181 = scmp.eq.s32.totalorder %s34, 0
      %p182 = por %p180, %p181
      %s184 = sadd.s32 %s183, 1
      %p187 = scmp.eq.s32.totalorder %s28, 1
      %p188 = scmp.ne.s32.totalorder %s183, %s185
      %p189 = scmp.eq.s32.totalorder %s28, 0
      %p190 = por %p188, %p189
      %p191 = scmp.ne.s32.totalorder %s183, %s185
      %p192 = scmp.eq.s32.totalorder %s33, 1
      %p193 = por %p191, %p192
      %p194 = scmp.ne.s32.totalorder %s185, %s186
      %p195 = scmp.eq.s32.totalorder %s33, 0
      %p196 = por %p194, %p195
      %p197 = scmp.ne.s32.totalorder %s185, %s186
      %p198 = scmp.eq.s32.totalorder %s34, 1
      %p199 = por %p197, %p198
      %p201 = scmp.ne.s32.totalorder %s186, %s200
      %p202 = scmp.eq.s32.totalorder %s34, 0
      %p203 = por %p201, %p202
      %s205 = sadd.s32 %s204, 1
      %p208 = scmp.eq.s32.totalorder %s28, 1
      %p209 = scmp.ne.s32.totalorder %s204, %s206
      %p210 = scmp.eq.s32.totalorder %s28, 0
      %p211 = por %p209, %p210
      %p212 = scmp.ne.s32.totalorder %s204, %s206
      %p213 = scmp.eq.s32.totalorder %s33, 1
      %p214 = por %p212, %p213
      %p215 = scmp.ne.s32.totalorder %s206, %s207
      %p216 = scmp.eq.s32.totalorder %s33, 0
      %p217 = por %p215, %p216
      %p218 = scmp.ne.s32.totalorder %s206, %s207
      %p219 = scmp.eq.s32.totalorder %s34, 1
      %p220 = por %p218, %p219
      %p222 = scmp.ne.s32.totalorder %s207, %s221
      %p223 = scmp.eq.s32.totalorder %s34, 0
      %p224 = por %p222, %p223
      %s226 = sadd.s32 %s225, 1
      %p229 = scmp.eq.s32.totalorder %s28, 1
      %p230 = scmp.ne.s32.totalorder %s225, %s227
      %p231 = scmp.eq.s32.totalorder %s28, 0
      %p232 = por %p230, %p231
      %p233 = scmp.ne.s32.totalorder %s225, %s227
      %p234 = scmp.eq.s32.totalorder %s33, 1
      %p235 = por %p233, %p234
      %p236 = scmp.ne.s32.totalorder %s227, %s228
      %p237 = scmp.eq.s32.totalorder %s33, 0
      %p238 = por %p236, %p237
      %p239 = scmp.ne.s32.totalorder %s227, %s228
      %p240 = scmp.eq.s32.totalorder %s34, 1
      %p241 = por %p239, %p240
      %p243 = scmp.ne.s32.totalorder %s228, %s242
      %p244 = scmp.eq.s32.totalorder %s34, 0
      %p245 = por %p243, %p244
      %s247 = sadd.s32 %s246, 1
      %p250 = scmp.eq.s32.totalorder %s28, 1
      %p251 = scmp.ne.s32.totalorder %s246, %s248
      %p252 = scmp.eq.s32.totalorder %s28, 0
      %p253 = por %p251, %p252
      %p254 = scmp.ne.s32.totalorder %s246, %s248
      %p255 = scmp.eq.s32.totalorder %s33, 1
      %p256 = por %p254, %p255
      %p257 = scmp.ne.s32.totalorder %s248, %s249
      %p258 = scmp.eq.s32.totalorder %s33, 0
      %p259 = por %p257, %p258
      %p260 = scmp.ne.s32.totalorder %s248, %s249
      %p261 = scmp.eq.s32.totalorder %s34, 1
      %p262 = por %p260, %p261
      %p264 = scmp.ne.s32.totalorder %s249, %s263
      %p265 = scmp.eq.s32.totalorder %s34, 0
      %p266 = por %p264, %p265
      %s268 = sadd.s32 %s267, 1
      %p271 = scmp.eq.s32.totalorder %s28, 1
      %p272 = scmp.ne.s32.totalorder %s267, %s269
      %p273 = scmp.eq.s32.totalorder %s28, 0
      %p274 = por %p272, %p273
      %p275 = scmp.ne.s32.totalorder %s267, %s269
      %p276 = scmp.eq.s32.totalorder %s33, 1
      %p277 = por %p275, %p276
      %p278 = scmp.ne.s32.totalorder %s269, %s270
      %p279 = scmp.eq.s32.totalorder %s33, 0
      %p280 = por %p278, %p279
      %p281 = scmp.ne.s32.totalorder %s269, %s270
      %p282 = scmp.eq.s32.totalorder %s34, 1
      %p283 = por %p281, %p282
      %p285 = scmp.ne.s32.totalorder %s270, %s284
      %p286 = scmp.eq.s32.totalorder %s34, 0
      %p287 = por %p285, %p286
      %s288 = ssub.s32 %s28, %s35
      %p289 = scmp.eq.s32.totalorder %s288, 0
      %s291 = sadd.s32 %s290, 1
      %s292 = scalar_select %p289, %s290, %s291
      %p295 = pneg %p289
      %p296 = scmp.eq.s32.totalorder %s28, 1
      %p297 = por %p295, %p296
      %p298 = scmp.ne.s32.totalorder %s290, %s293
      %p299 = scmp.eq.s32.totalorder %s28, 0
      %p300 = por %p298, %p299
      %p301 = scmp.ne.s32.totalorder %s290, %s293
      %p302 = scmp.eq.s32.totalorder %s33, 1
      %p303 = por %p301, %p302
      %p304 = scmp.ne.s32.totalorder %s293, %s294
      %p305 = scmp.eq.s32.totalorder %s33, 0
      %p306 = por %p304, %p305
      %p307 = scmp.ne.s32.totalorder %s293, %s294
      %p308 = scmp.eq.s32.totalorder %s34, 1
      %p309 = por %p307, %p308
      %p311 = scmp.ne.s32.totalorder %s294, %s310
      %p312 = scmp.eq.s32.totalorder %s34, 0
      %p313 = por %p311, %p312
      %p314 = scmp.le.s32.totalorder 1, %s28
      %p315 = scmp.lt.s32.totalorder %s28, 3
      %p316 = pnand %p314, %p315
      %p317 = pneg %p316
      // Predicated region
      $region9: #{tpu_custom_call.1} parent=5 // pred_check
        _
      $region10: #{tpu_custom_call.1} parent=5 // pred_check_branch
        %319 = sbr.rel (%p316) target = $region12
      $region11: #{tpu_custom_call.1} parent=5 // pred_region
        %s320 = ssub.s32 %s28, 1
        // Predicated region
        $region13: #{tpu_custom_call.1} parent=11 // pred_check
          %p321 = pneg %p49
        $region14: #{tpu_custom_call.1} parent=11 // pred_check_branch
          %323 = sbr.rel (%p321) target = $region16
        $region15: #{tpu_custom_call.1} parent=11 // pred_region
          %s325 = ssub.s32 256, 256
          %326 = vsyncadd [#allocation5], %s325
          %s327 = sshll.u32 [#allocation4], 4
          %s328 = int_to_ptr.vmem [resolvable:$true] %s327
          %333 = dma.hbm_to_vmem [thread:$0]  %s0, 256, %s328, [#allocation5], 32, 32, 2
        $region16: #{tpu_custom_call.1} parent=11 // pred_fallthru
          _
        // Predicated region
        $region17: #{tpu_custom_call.1} parent=11 // pred_check
          %p334 = pneg %p70
        $region18: #{tpu_custom_call.1} parent=11 // pred_check_branch
          %336 = sbr.rel (%p334) target = $region20
        $region19: #{tpu_custom_call.1} parent=11 // pred_region
          %s338 = ssub.s32 256, 256
          %339 = vsyncadd [#allocation8], %s338
          %s340 = sshll.u32 [#allocation7], 4
          %s341 = int_to_ptr.vmem [resolvable:$true] %s340
          %346 = dma.hbm_to_vmem [thread:$0]  %s1, 256, %s341, [#allocation8], 32, 32, 2
        $region20: #{tpu_custom_call.1} parent=11 // pred_fallthru
          _
        // Predicated region
        $region21: #{tpu_custom_call.1} parent=11 // pred_check
          %p347 = pneg %p91
        $region22: #{tpu_custom_call.1} parent=11 // pred_check_branch
          %349 = sbr.rel (%p347) target = $region24
        $region23: #{tpu_custom_call.1} parent=11 // pred_region
          %s351 = ssub.s32 512, 512
          %352 = vsyncadd [#allocation8], %s351
          %s353 = sshll.u32 [#allocation9], 4
          %s354 = int_to_ptr.vmem [resolvable:$true] %s353
          %359 = dma.hbm_to_vmem [thread:$0]  %s2, 512, %s354, [#allocation8], 128, 128, 8
        $region24: #{tpu_custom_call.1} parent=11 // pred_fallthru
          _
        // Predicated region
        $region25: #{tpu_custom_call.1} parent=11 // pred_check
          %p360 = pneg %p112
        $region26: #{tpu_custom_call.1} parent=11 // pred_check_branch
          %362 = sbr.rel (%p360) target = $region28
        $region27: #{tpu_custom_call.1} parent=11 // pred_region
          %s364 = ssub.s32 16, 16
          %365 = vsyncadd [#allocation11], %s364
          %s367 = sshll.u32 [#allocation10], 4
          %s368 = int_to_ptr.vmem [resolvable:$true] %s367
          %370 = dma.hbm_to_vmem [thread:$0]  %s3, 16, %s368, [#allocation11]
        $region28: #{tpu_custom_call.1} parent=11 // pred_fallthru
          _
        // Predicated region
        $region29: #{tpu_custom_call.1} parent=11 // pred_check
          %p371 = pneg %p133
        $region30: #{tpu_custom_call.1} parent=11 // pred_check_branch
          %373 = sbr.rel (%p371) target = $region32
        $region31: #{tpu_custom_call.1} parent=11 // pred_region
          %s375 = ssub.s32 512, 512
          %376 = vsyncadd [#allocation11], %s375
          %s377 = sshll.u32 [#allocation12], 4
          %s378 = int_to_ptr.vmem [resolvable:$true] %s377
          %383 = dma.hbm_to_vmem [thread:$0]  %s4, 512, %s378, [#allocation11], 128, 128, 8
        $region32: #{tpu_custom_call.1} parent=11 // pred_fallthru
          _
        // Predicated region
        $region33: #{tpu_custom_call.1} parent=11 // pred_check
          %p384 = pneg %p154
        $region34: #{tpu_custom_call.1} parent=11 // pred_check_branch
          %386 = sbr.rel (%p384) target = $region36
        $region35: #{tpu_custom_call.1} parent=11 // pred_region
          %s388 = ssub.s32 16, 16
          %389 = vsyncadd [#allocation14], %s388
          %s391 = sshll.u32 [#allocation13], 4
          %s392 = int_to_ptr.vmem [resolvable:$true] %s391
          %394 = dma.hbm_to_vmem [thread:$0]  %s5, 16, %s392, [#allocation14]
        $region36: #{tpu_custom_call.1} parent=11 // pred_fallthru
          _
        // Predicated region
        $region37: #{tpu_custom_call.1} parent=11 // pred_check
          %p395 = pneg %p175
        $region38: #{tpu_custom_call.1} parent=11 // pred_check_branch
          %397 = sbr.rel (%p395) target = $region40
        $region39: #{tpu_custom_call.1} parent=11 // pred_region
          %s399 = ssub.s32 512, 512
          %400 = vsyncadd [#allocation14], %s399
          %s401 = sshll.u32 [#allocation15], 4
          %s402 = int_to_ptr.vmem [resolvable:$true] %s401
          %407 = dma.hbm_to_vmem [thread:$0]  %s6, 512, %s402, [#allocation14], 128, 128, 8
        $region40: #{tpu_custom_call.1} parent=11 // pred_fallthru
          _
        // Predicated region
        $region41: #{tpu_custom_call.1} parent=11 // pred_check
          %p408 = pneg %p196
        $region42: #{tpu_custom_call.1} parent=11 // pred_check_branch
          %410 = sbr.rel (%p408) target = $region44
        $region43: #{tpu_custom_call.1} parent=11 // pred_region
          %s412 = ssub.s32 16, 16
          %413 = vsyncadd [#allocation17], %s412
          %s415 = sshll.u32 [#allocation16], 4
          %s416 = int_to_ptr.vmem [resolvable:$true] %s415
          %418 = dma.hbm_to_vmem [thread:$0]  %s7, 16, %s416, [#allocation17]
        $region44: #{tpu_custom_call.1} parent=11 // pred_fallthru
          _
        // Predicated region
        $region45: #{tpu_custom_call.1} parent=11 // pred_check
          %p419 = pneg %p217
        $region46: #{tpu_custom_call.1} parent=11 // pred_check_branch
          %421 = sbr.rel (%p419) target = $region48
        $region47: #{tpu_custom_call.1} parent=11 // pred_region
          %s423 = ssub.s32 512, 512
          %424 = vsyncadd [#allocation17], %s423
          %s425 = sshll.u32 [#allocation18], 4
          %s426 = int_to_ptr.vmem [resolvable:$true] %s425
          %431 = dma.hbm_to_vmem [thread:$0]  %s8, 512, %s426, [#allocation17], 128, 128, 8
        $region48: #{tpu_custom_call.1} parent=11 // pred_fallthru
          _
        // Predicated region
        $region49: #{tpu_custom_call.1} parent=11 // pred_check
          %p432 = pneg %p238
        $region50: #{tpu_custom_call.1} parent=11 // pred_check_branch
          %434 = sbr.rel (%p432) target = $region52
        $region51: #{tpu_custom_call.1} parent=11 // pred_region
          %s436 = ssub.s32 16, 16
          %437 = vsyncadd [#allocation20], %s436
          %s439 = sshll.u32 [#allocation19], 4
          %s440 = int_to_ptr.vmem [resolvable:$true] %s439
          %442 = dma.hbm_to_vmem [thread:$0]  %s9, 16, %s440, [#allocation20]
        $region52: #{tpu_custom_call.1} parent=11 // pred_fallthru
          _
        // Predicated region
        $region53: #{tpu_custom_call.1} parent=11 // pred_check
          %p443 = pneg %p259
        $region54: #{tpu_custom_call.1} parent=11 // pred_check_branch
          %445 = sbr.rel (%p443) target = $region56
        $region55: #{tpu_custom_call.1} parent=11 // pred_region
          %s447 = ssub.s32 16, 16
          %448 = vsyncadd [#allocation20], %s447
          %s450 = sshll.u32 [#allocation21], 4
          %s451 = int_to_ptr.vmem [resolvable:$true] %s450
          %453 = dma.hbm_to_vmem [thread:$0]  %s10, 16, %s451, [#allocation20]
        $region56: #{tpu_custom_call.1} parent=11 // pred_fallthru
          _
        // Predicated region
        $region57: #{tpu_custom_call.1} parent=11 // pred_check
          %p454 = pneg %p280
        $region58: #{tpu_custom_call.1} parent=11 // pred_check_branch
          %456 = sbr.rel (%p454) target = $region60
        $region59: #{tpu_custom_call.1} parent=11 // pred_region
          %s458 = ssub.s32 16, 16
          %459 = vsyncadd [#allocation23], %s458
          %s461 = sshll.u32 [#allocation22], 4
          %s462 = int_to_ptr.vmem [resolvable:$true] %s461
          %464 = dma.hbm_to_vmem [thread:$0]  %s11, 16, %s462, [#allocation23]
        $region60: #{tpu_custom_call.1} parent=11 // pred_fallthru
          _
      $region12: #{tpu_custom_call.1} parent=5 // pred_fallthru
        _
      %p465 = scmp.lt.s32.totalorder %s28, 2
      // Predicated region
      $region61: #{tpu_custom_call.1} parent=5 // pred_check
        %p466 = pneg %p465
      $region62: #{tpu_custom_call.1} parent=5 // pred_check_branch
        %468 = sbr.rel (%p466) target = $region64
      $region63: #{tpu_custom_call.1} parent=5 // pred_region
        _
      $region64: #{tpu_custom_call.1} parent=5 // pred_fallthru
        _
      %p469 = scmp.le.s32.totalorder 1, %s28
      %p470 = scmp.lt.s32.totalorder %s28, 3
      %p471 = pnand %p469, %p470
      %p472 = pneg %p471
      // Predicated region
      $region65: #{tpu_custom_call.1} parent=5 // pred_check
        _
      $region66: #{tpu_custom_call.1} parent=5 // pred_check_branch
        %474 = sbr.rel (%p471) target = $region68
      $region67: #{tpu_custom_call.1} parent=5 // pred_region
        %s475 = ssub.s32 %s28, 1
        // Predicated region
        $region69: #{tpu_custom_call.1} parent=67 // pred_check
          %p476 = pneg %p49
        $region70: #{tpu_custom_call.1} parent=67 // pred_check_branch
          %478 = sbr.rel (%p476) target = $region72
        $region71: #{tpu_custom_call.1} parent=67 // pred_region
          %479 = dma.done [#allocation5], 256
        $region72: #{tpu_custom_call.1} parent=67 // pred_fallthru
          _
        // Predicated region
        $region73: #{tpu_custom_call.1} parent=67 // pred_check
          %p480 = pneg %p70
        $region74: #{tpu_custom_call.1} parent=67 // pred_check_branch
          %482 = sbr.rel (%p480) target = $region76
        $region75: #{tpu_custom_call.1} parent=67 // pred_region
          %483 = dma.done [#allocation8], 256
        $region76: #{tpu_custom_call.1} parent=67 // pred_fallthru
          _
        // Predicated region
        $region77: #{tpu_custom_call.1} parent=67 // pred_check
          %p484 = pneg %p91
        $region78: #{tpu_custom_call.1} parent=67 // pred_check_branch
          %486 = sbr.rel (%p484) target = $region80
        $region79: #{tpu_custom_call.1} parent=67 // pred_region
          %487 = dma.done [#allocation8], 512
        $region80: #{tpu_custom_call.1} parent=67 // pred_fallthru
          _
        // Predicated region
        $region81: #{tpu_custom_call.1} parent=67 // pred_check
          %p488 = pneg %p112
        $region82: #{tpu_custom_call.1} parent=67 // pred_check_branch
          %490 = sbr.rel (%p488) target = $region84
        $region83: #{tpu_custom_call.1} parent=67 // pred_region
          %491 = dma.done [#allocation11], 16
        $region84: #{tpu_custom_call.1} parent=67 // pred_fallthru
          _
        // Predicated region
        $region85: #{tpu_custom_call.1} parent=67 // pred_check
          %p492 = pneg %p133
        $region86: #{tpu_custom_call.1} parent=67 // pred_check_branch
          %494 = sbr.rel (%p492) target = $region88
        $region87: #{tpu_custom_call.1} parent=67 // pred_region
          %495 = dma.done [#allocation11], 512
        $region88: #{tpu_custom_call.1} parent=67 // pred_fallthru
          _
        // Predicated region
        $region89: #{tpu_custom_call.1} parent=67 // pred_check
          %p496 = pneg %p154
        $region90: #{tpu_custom_call.1} parent=67 // pred_check_branch
          %498 = sbr.rel (%p496) target = $region92
        $region91: #{tpu_custom_call.1} parent=67 // pred_region
          %499 = dma.done [#allocation14], 16
        $region92: #{tpu_custom_call.1} parent=67 // pred_fallthru
          _
        // Predicated region
        $region93: #{tpu_custom_call.1} parent=67 // pred_check
          %p500 = pneg %p175
        $region94: #{tpu_custom_call.1} parent=67 // pred_check_branch
          %502 = sbr.rel (%p500) target = $region96
        $region95: #{tpu_custom_call.1} parent=67 // pred_region
          %503 = dma.done [#allocation14], 512
        $region96: #{tpu_custom_call.1} parent=67 // pred_fallthru
          _
        // Predicated region
        $region97: #{tpu_custom_call.1} parent=67 // pred_check
          %p504 = pneg %p196
        $region98: #{tpu_custom_call.1} parent=67 // pred_check_branch
          %506 = sbr.rel (%p504) target = $region100
        $region99: #{tpu_custom_call.1} parent=67 // pred_region
          %507 = dma.done [#allocation17], 16
        $region100: #{tpu_custom_call.1} parent=67 // pred_fallthru
          _
        // Predicated region
        $region101: #{tpu_custom_call.1} parent=67 // pred_check
          %p508 = pneg %p217
        $region102: #{tpu_custom_call.1} parent=67 // pred_check_branch
          %510 = sbr.rel (%p508) target = $region104
        $region103: #{tpu_custom_call.1} parent=67 // pred_region
          %511 = dma.done [#allocation17], 512
        $region104: #{tpu_custom_call.1} parent=67 // pred_fallthru
          _
        // Predicated region
        $region105: #{tpu_custom_call.1} parent=67 // pred_check
          %p512 = pneg %p238
        $region106: #{tpu_custom_call.1} parent=67 // pred_check_branch
          %514 = sbr.rel (%p512) target = $region108
        $region107: #{tpu_custom_call.1} parent=67 // pred_region
          %515 = dma.done [#allocation20], 16
        $region108: #{tpu_custom_call.1} parent=67 // pred_fallthru
          _
        // Predicated region
        $region109: #{tpu_custom_call.1} parent=67 // pred_check
          %p516 = pneg %p259
        $region110: #{tpu_custom_call.1} parent=67 // pred_check_branch
          %518 = sbr.rel (%p516) target = $region112
        $region111: #{tpu_custom_call.1} parent=67 // pred_region
          %519 = dma.done [#allocation20], 16
        $region112: #{tpu_custom_call.1} parent=67 // pred_fallthru
          _
        // Predicated region
        $region113: #{tpu_custom_call.1} parent=67 // pred_check
          %p520 = pneg %p280
        $region114: #{tpu_custom_call.1} parent=67 // pred_check_branch
          %522 = sbr.rel (%p520) target = $region116
        $region115: #{tpu_custom_call.1} parent=67 // pred_region
          %523 = dma.done [#allocation23], 16
        $region116: #{tpu_custom_call.1} parent=67 // pred_fallthru
          _
        %p524 = pneg %p49
        %p525 = pneg %p46
        %p526 = pneg %p70
        %p527 = pneg %p67
        %p528 = pneg %p91
        %p529 = pneg %p88
        %p530 = pneg %p112
        %p531 = pneg %p109
        %p532 = pneg %p133
        %p533 = pneg %p130
        %p534 = pneg %p154
        %p535 = pneg %p151
        %p536 = pneg %p175
        %p537 = pneg %p172
        %p538 = pneg %p196
        %p539 = pneg %p193
        %p540 = pneg %p217
        %p541 = pneg %p214
        %p542 = pneg %p238
        %p543 = pneg %p235
        %p544 = pneg %p259
        %p545 = pneg %p256
        %p546 = pneg %p280
        %p547 = pneg %p277
        %p548 = pneg %p306
        %p549 = pneg %p303
        %s550 = sand.u32 %s293, 1
        %s551 = scalar_lea.sflag [#allocation6], %s550
        %s552 = sand.u32 %s293, 1
        %s553 = smul.addr %s552, 8
        %s554 = scalar_lea.vmem [#allocation24], %s553
        %s555 = smul.u32 4, %s33
        %p556 = scmp.eq.s32.totalorder %s33, 0
        // Predicated region
        $region117: #{tpu_custom_call.1} parent=67 // pred_check
          %p557 = pneg %p556
        $region118: #{tpu_custom_call.1} parent=67 // pred_check_branch
          %559 = sbr.rel (%p557) target = $region120
        $region119: #{tpu_custom_call.1} parent=67 // pred_region
          %v560 = vld [vmem:[#allocation4] sm:$0x3]
          %v561 = vld [vmem:[#allocation4 + $0x2] sm:$0x3]
          %v562 = vld [vmem:[#allocation4 + $0x4] sm:$0x3]
          %v563 = vld [vmem:[#allocation4 + $0x6] sm:$0x3]
          %v564 = vld [vmem:[#allocation4 + $0x8] sm:$0x3]
          %v565 = vld [vmem:[#allocation4 + $0xa] sm:$0x3]
          %v566 = vld [vmem:[#allocation4 + $0xc] sm:$0x3]
          %v567 = vld [vmem:[#allocation4 + $0xe] sm:$0x3]
          %v568 = vld [vmem:[#allocation7] sm:$0x3]
          %v569 = vld [vmem:[#allocation7 + $0x2] sm:$0x3]
          %v570 = vld [vmem:[#allocation7 + $0x4] sm:$0x3]
          %v571 = vld [vmem:[#allocation7 + $0x6] sm:$0x3]
          %v572 = vld [vmem:[#allocation7 + $0x8] sm:$0x3]
          %v573 = vld [vmem:[#allocation7 + $0xa] sm:$0x3]
          %v574 = vld [vmem:[#allocation7 + $0xc] sm:$0x3]
          %v575 = vld [vmem:[#allocation7 + $0xe] sm:$0x3]
          %v576 = vadd.f32 %v560, %v568
          %v577 = vadd.f32 %v561, %v569
          %v578 = vadd.f32 %v562, %v570
          %v579 = vadd.f32 %v563, %v571
          %v580 = vadd.f32 %v564, %v572
          %v581 = vadd.f32 %v565, %v573
          %v582 = vadd.f32 %v566, %v574
          %v583 = vadd.f32 %v567, %v575
          %v584 = vld [vmem:[#allocation12] sm:$0xff]
          %v585 = vld [vmem:[#allocation12 + $0x8] sm:$0xff]
          %v586 = vld [vmem:[#allocation12 + $0x10] sm:$0xff]
          %v587 = vld [vmem:[#allocation12 + $0x18] sm:$0xff]
          %v588 = vld [vmem:[#allocation13] sm:$0x1]
          %v590 = vlaneseq
          %v591 = vshrl.u32 %v590, 7
          %v592 = vsub.s32 0, %v591
          %v593 = vrot.slane %v588, %v592
          %v603 = vcombine.low %v576, %v577
          %v604 = vcombine.low %v578, %v579
          %v606 = vunpack.c.l.s4 1983009808
          %v607 = vunpack.c.0.s8 %v606
          %v608 = vlaneseq
          %v609 = vshrl.u32 %v608, 7
          %v610 = vsub.s32 %v607, %v609
          %v611 = vrot.slane %v603, %v610
          %v613 = vunpack.c.l.s4 1983009808
          %v614 = vunpack.c.0.s8 %v613
          %v615 = vlaneseq
          %v616 = vshrl.u32 %v615, 7
          %v617 = vsub.s32 %v614, %v616
          %v618 = vrot.slane %v604, %v617
          %v619 = vcombine.low %v611, %v618
          %v620 = vcombine.low %v580, %v581
          %v621 = vcombine.low %v582, %v583
          %v623 = vunpack.c.l.s4 1983009808
          %v624 = vunpack.c.0.s8 %v623
          %v625 = vlaneseq
          %v626 = vshrl.u32 %v625, 7
          %v627 = vsub.s32 %v624, %v626
          %v628 = vrot.slane %v620, %v627
          %v630 = vunpack.c.l.s4 1983009808
          %v631 = vunpack.c.0.s8 %v630
          %v632 = vlaneseq
          %v633 = vshrl.u32 %v632, 7
          %v634 = vsub.s32 %v631, %v633
          %v635 = vrot.slane %v621, %v634
          %v636 = vcombine.low %v628, %v635
          %vm637 = vcmask 261120
          %v638 = vsel %vm637, %v619, 0
          %v640 = vsel %vm637, %v636, 0
          %642 = vmatprep.subr.mxu0 0.0
          %643 = vmatpush1.msra.mxu0 %v584
          %644 = vmatprep.subr.mxu0 0.0
          %645 = vmatpush1.msra.mxu0 %v585
          %646 = vmatprep.subr.mxu0 0.0
          %647 = vmatpush1.msra.mxu0 %v586
          %648 = vmatprep.subr.mxu0 0.0
          %649 = vmatpush1.msra.mxu0 %v587
          %650 = vmatprep.subr.mxu0 0.0
          %651 = vmatpush1.msra.mxu0 0.0
          %652 = vmatprep.subr.mxu0 0.0
          %653 = vmatpush1.msra.mxu0 0.0
          %654 = vmatprep.subr.mxu0 0.0
          %655 = vmatpush1.msra.mxu0 0.0
          %656 = vmatprep.subr.mxu0 0.0
          %657 = vmatpush1.msra.mxu0 0.0
          %658 = vmatprep.subr.mxu0 0.0
          %659 = vmatpush1.msra.mxu0 0.0
          %660 = vmatprep.subr.mxu0 0.0
          %661 = vmatpush1.msra.mxu0 0.0
          %662 = vmatprep.subr.mxu0 0.0
          %663 = vmatpush1.msra.mxu0 0.0
          %664 = vmatprep.subr.mxu0 0.0
          %665 = vmatpush1.msra.mxu0 0.0
          %666 = vmatprep.subr.mxu0 0.0
          %667 = vmatpush1.msra.mxu0 0.0
          %668 = vmatprep.subr.mxu0 0.0
          %669 = vmatpush1.msra.mxu0 0.0
          %670 = vmatprep.subr.mxu0 0.0
          %671 = vmatpush1.msra.mxu0 0.0
          %672 = vmatprep.subr.mxu0 0.0
          %673 = vmatpush1.msra.mxu0 0.0
          %674 = vmatprep.subr.mxu0 0.0
          %675 = vmatpush1.msra.mxu0 0.0
          %676 = vmatprep.subr.mxu0 0.0
          %677 = vmatpush1.msra.mxu0 0.0
          %678 = vmatprep.subr.mxu0 0.0
          %679 = vmatpush1.msra.mxu0 0.0
          %680 = vmatprep.subr.mxu0 0.0
          %681 = vmatpush1.msra.mxu0 0.0
          %682 = vmatprep.subr.mxu0 0.0
          %683 = vmatpush1.msra.mxu0 0.0
          %684 = vmatprep.subr.mxu0 0.0
          %685 = vmatpush1.msra.mxu0 0.0
          %686 = vmatprep.subr.mxu0 0.0
          %687 = vmatpush1.msra.mxu0 0.0
          %688 = vmatprep.subr.mxu0 0.0
          %689 = vmatpush1.msra.mxu0 0.0
          %690 = vmatprep.subr.mxu0 0.0
          %691 = vmatpush1.msra.mxu0 0.0
          %692 = vmatprep.subr.mxu0 0.0
          %693 = vmatpush1.msra.mxu0 0.0
          %694 = vmatprep.subr.mxu0 0.0
          %695 = vmatpush1.msra.mxu0 0.0
          %696 = vmatprep.subr.mxu0 0.0
          %697 = vmatpush1.msra.mxu0 0.0
          %698 = vmatprep.subr.mxu0 0.0
          %699 = vmatpush1.msra.mxu0 0.0
          %700 = vmatprep.subr.mxu0 0.0
          %701 = vmatpush1.msra.mxu0 0.0
          %702 = vmatprep.subr.mxu0 0.0
          %703 = vmatpush1.msra.mxu0 0.0
          %704 = vmatprep.subr.mxu0 0.0
          %705 = vmatpush1.msra.mxu0 0.0
          %706 = vmatprep.mubr.f32.mxu0 0.0
          %707 = vmatmul.mubr.f32.gmra.mrb[0].mxu0 %v638
          %v708 = vpop.f32.mrb[0].mxu0
          %v709 = vadd.f32 %v593, %v708
          %v710 = vpop.f32.mrb[0].mxu0
          %711 = vmatprep.mubr.f32.mxu0 0.0
          %712 = vmatmul.mubr.f32.gmra.mrb[0].mxu0 %v640
          %v713 = vpop.f32.mrb[0].mxu0
          %v714 = vadd.f32 %v593, %v713
          %v715 = vpop.f32.mrb[0].mxu0
          %716 = vdwg.mxu0
          %v717 = vld [vmem:[#allocation15] sm:$0xff]
          %v718 = vld [vmem:[#allocation15 + $0x8] sm:$0xff]
          %v719 = vld [vmem:[#allocation15 + $0x10] sm:$0xff]
          %v720 = vld [vmem:[#allocation15 + $0x18] sm:$0xff]
          %v721 = vld [vmem:[#allocation16] sm:$0x1]
          %v723 = vlaneseq
          %v724 = vshrl.u32 %v723, 7
          %v725 = vsub.s32 0, %v724
          %v726 = vrot.slane %v721, %v725
          %v736 = vcombine.low %v560, %v561
          %v737 = vcombine.low %v562, %v563
          %v739 = vunpack.c.l.s4 1983009808
          %v740 = vunpack.c.0.s8 %v739
          %v741 = vlaneseq
          %v742 = vshrl.u32 %v741, 7
          %v743 = vsub.s32 %v740, %v742
          %v744 = vrot.slane %v736, %v743
          %v746 = vunpack.c.l.s4 1983009808
          %v747 = vunpack.c.0.s8 %v746
          %v748 = vlaneseq
          %v749 = vshrl.u32 %v748, 7
          %v750 = vsub.s32 %v747, %v749
          %v751 = vrot.slane %v737, %v750
          %v752 = vcombine.low %v744, %v751
          %v753 = vcombine.low %v564, %v565
          %v754 = vcombine.low %v566, %v567
          %v756 = vunpack.c.l.s4 1983009808
          %v757 = vunpack.c.0.s8 %v756
          %v758 = vlaneseq
          %v759 = vshrl.u32 %v758, 7
          %v760 = vsub.s32 %v757, %v759
          %v761 = vrot.slane %v753, %v760
          %v763 = vunpack.c.l.s4 1983009808
          %v764 = vunpack.c.0.s8 %v763
          %v765 = vlaneseq
          %v766 = vshrl.u32 %v765, 7
          %v767 = vsub.s32 %v764, %v766
          %v768 = vrot.slane %v754, %v767
          %v769 = vcombine.low %v761, %v768
          %v770 = vsel %vm637, %v752, 0
          %v772 = vsel %vm637, %v769, 0
          %774 = vmatprep.subr.mxu0 0.0
          %775 = vmatpush1.msra.mxu0 %v717
          %776 = vmatprep.subr.mxu0 0.0
          %777 = vmatpush1.msra.mxu0 %v718
          %778 = vmatprep.subr.mxu0 0.0
          %779 = vmatpush1.msra.mxu0 %v719
          %780 = vmatprep.subr.mxu0 0.0
          %781 = vmatpush1.msra.mxu0 %v720
          %782 = vmatprep.subr.mxu0 0.0
          %783 = vmatpush1.msra.mxu0 0.0
          %784 = vmatprep.subr.mxu0 0.0
          %785 = vmatpush1.msra.mxu0 0.0
          %786 = vmatprep.subr.mxu0 0.0
          %787 = vmatpush1.msra.mxu0 0.0
          %788 = vmatprep.subr.mxu0 0.0
          %789 = vmatpush1.msra.mxu0 0.0
          %790 = vmatprep.subr.mxu0 0.0
          %791 = vmatpush1.msra.mxu0 0.0
          %792 = vmatprep.subr.mxu0 0.0
          %793 = vmatpush1.msra.mxu0 0.0
          %794 = vmatprep.subr.mxu0 0.0
          %795 = vmatpush1.msra.mxu0 0.0
          %796 = vmatprep.subr.mxu0 0.0
          %797 = vmatpush1.msra.mxu0 0.0
          %798 = vmatprep.subr.mxu0 0.0
          %799 = vmatpush1.msra.mxu0 0.0
          %800 = vmatprep.subr.mxu0 0.0
          %801 = vmatpush1.msra.mxu0 0.0
          %802 = vmatprep.subr.mxu0 0.0
          %803 = vmatpush1.msra.mxu0 0.0
          %804 = vmatprep.subr.mxu0 0.0
          %805 = vmatpush1.msra.mxu0 0.0
          %806 = vmatprep.subr.mxu0 0.0
          %807 = vmatpush1.msra.mxu0 0.0
          %808 = vmatprep.subr.mxu0 0.0
          %809 = vmatpush1.msra.mxu0 0.0
          %810 = vmatprep.subr.mxu0 0.0
          %811 = vmatpush1.msra.mxu0 0.0
          %812 = vmatprep.subr.mxu0 0.0
          %813 = vmatpush1.msra.mxu0 0.0
          %814 = vmatprep.subr.mxu0 0.0
          %815 = vmatpush1.msra.mxu0 0.0
          %816 = vmatprep.subr.mxu0 0.0
          %817 = vmatpush1.msra.mxu0 0.0
          %818 = vmatprep.subr.mxu0 0.0
          %819 = vmatpush1.msra.mxu0 0.0
          %820 = vmatprep.subr.mxu0 0.0
          %821 = vmatpush1.msra.mxu0 0.0
          %822 = vmatprep.subr.mxu0 0.0
          %823 = vmatpush1.msra.mxu0 0.0
          %824 = vmatprep.subr.mxu0 0.0
          %825 = vmatpush1.msra.mxu0 0.0
          %826 = vmatprep.subr.mxu0 0.0
          %827 = vmatpush1.msra.mxu0 0.0
          %828 = vmatprep.subr.mxu0 0.0
          %829 = vmatpush1.msra.mxu0 0.0
          %830 = vmatprep.subr.mxu0 0.0
          %831 = vmatpush1.msra.mxu0 0.0
          %832 = vmatprep.subr.mxu0 0.0
          %833 = vmatpush1.msra.mxu0 0.0
          %834 = vmatprep.subr.mxu0 0.0
          %835 = vmatpush1.msra.mxu0 0.0
          %836 = vmatprep.subr.mxu0 0.0
          %837 = vmatpush1.msra.mxu0 0.0
          %838 = vmatprep.mubr.f32.mxu0 0.0
          %839 = vmatmul.mubr.f32.gmra.mrb[0].mxu0 %v770
          %v840 = vpop.f32.mrb[0].mxu0
          %v841 = vadd.f32 %v726, %v840
          %v842 = vpop.f32.mrb[0].mxu0
          %843 = vmatprep.mubr.f32.mxu0 0.0
          %844 = vmatmul.mubr.f32.gmra.mrb[0].mxu0 %v772
          %v845 = vpop.f32.mrb[0].mxu0
          %v846 = vadd.f32 %v726, %v845
          %v847 = vpop.f32.mrb[0].mxu0
          %848 = vdwg.mxu0
          %v851 = vcombine.high %v709, %v709
          %v853 = vunpack.c.l.s4 1983009808
          %v854 = vunpack.c.0.s8 %v853
          %v855 = vlaneseq
          %v856 = vshrl.u32 %v855, 7
          %v857 = vsub.s32 %v854, %v856
          %v858 = vrot.slane %v709, %v857
          %v860 = vunpack.c.l.s4 1983009808
          %v861 = vunpack.c.0.s8 %v860
          %v862 = vlaneseq
          %v863 = vshrl.u32 %v862, 7
          %v864 = vsub.s32 %v861, %v863
          %v865 = vrot.slane %v851, %v864
          %v866 = vcombine.high %v858, %v858
          %v867 = vcombine.high %v865, %v865
          %v868 = vcombine.high %v714, %v714
          %v870 = vunpack.c.l.s4 1983009808
          %v871 = vunpack.c.0.s8 %v870
          %v872 = vlaneseq
          %v873 = vshrl.u32 %v872, 7
          %v874 = vsub.s32 %v871, %v873
          %v875 = vrot.slane %v714, %v874
          %v877 = vunpack.c.l.s4 1983009808
          %v878 = vunpack.c.0.s8 %v877
          %v879 = vlaneseq
          %v880 = vshrl.u32 %v879, 7
          %v881 = vsub.s32 %v878, %v880
          %v882 = vrot.slane %v868, %v881
          %v883 = vcombine.high %v875, %v875
          %v884 = vcombine.high %v882, %v882
          %v887 = vcombine.high %v841, %v841
          %v889 = vunpack.c.l.s4 1983009808
          %v890 = vunpack.c.0.s8 %v889
          %v891 = vlaneseq
          %v892 = vshrl.u32 %v891, 7
          %v893 = vsub.s32 %v890, %v892
          %v894 = vrot.slane %v841, %v893
          %v896 = vunpack.c.l.s4 1983009808
          %v897 = vunpack.c.0.s8 %v896
          %v898 = vlaneseq
          %v899 = vshrl.u32 %v898, 7
          %v900 = vsub.s32 %v897, %v899
          %v901 = vrot.slane %v887, %v900
          %v902 = vcombine.high %v894, %v894
          %v903 = vcombine.high %v901, %v901
          %v904 = vcombine.high %v846, %v846
          %v906 = vunpack.c.l.s4 1983009808
          %v907 = vunpack.c.0.s8 %v906
          %v908 = vlaneseq
          %v909 = vshrl.u32 %v908, 7
          %v910 = vsub.s32 %v907, %v909
          %v911 = vrot.slane %v846, %v910
          %v913 = vunpack.c.l.s4 1983009808
          %v914 = vunpack.c.0.s8 %v913
          %v915 = vlaneseq
          %v916 = vshrl.u32 %v915, 7
          %v917 = vsub.s32 %v914, %v916
          %v918 = vrot.slane %v904, %v917
          %v919 = vcombine.high %v911, %v911
          %v920 = vcombine.high %v918, %v918
          %v921 = vlaneseq
          %v922 = vshrl.u32 %v921, 7
          %v923 = vsub.s32 0, %v922
          %v924 = vrot.slane %v858, %v923
          %v925 = vlaneseq
          %v926 = vshrl.u32 %v925, 7
          %v927 = vsub.s32 0, %v926
          %v928 = vrot.slane %v866, %v927
          %v929 = vlaneseq
          %v930 = vshrl.u32 %v929, 7
          %v931 = vsub.s32 0, %v930
          %v932 = vrot.slane %v865, %v931
          %v933 = vlaneseq
          %v934 = vshrl.u32 %v933, 7
          %v935 = vsub.s32 0, %v934
          %v936 = vrot.slane %v867, %v935
          %v937 = vlaneseq
          %v938 = vshrl.u32 %v937, 7
          %v939 = vsub.s32 0, %v938
          %v940 = vrot.slane %v875, %v939
          %v941 = vlaneseq
          %v942 = vshrl.u32 %v941, 7
          %v943 = vsub.s32 0, %v942
          %v944 = vrot.slane %v883, %v943
          %v945 = vlaneseq
          %v946 = vshrl.u32 %v945, 7
          %v947 = vsub.s32 0, %v946
          %v948 = vrot.slane %v882, %v947
          %v949 = vlaneseq
          %v950 = vshrl.u32 %v949, 7
          %v951 = vsub.s32 0, %v950
          %v952 = vrot.slane %v884, %v951
          %vm953 = vcmask 1041409
          %v954 = vsel %vm953, %v928, %v924
          %vm955 = vcmask 1042434
          %v956 = vsel %vm955, %v932, %v954
          %vm957 = vcmask 1043459
          %v958 = vsel %vm957, %v936, %v956
          %vm959 = vcmask 1044484
          %v960 = vsel %vm959, %v940, %v958
          %vm961 = vcmask 1045509
          %v962 = vsel %vm961, %v944, %v960
          %vm963 = vcmask 1046534
          %v964 = vsel %vm963, %v948, %v962
          %vm965 = vcmask 1047559
          %v966 = vsel %vm965, %v952, %v964
          %968 = vst.msk [vmem:[#allocation2] sm:$0xff] %vm637, %v966
          %v969 = vlaneseq
          %v970 = vshrl.u32 %v969, 7
          %v971 = vsub.s32 0, %v970
          %v972 = vrot.slane %v894, %v971
          %v973 = vlaneseq
          %v974 = vshrl.u32 %v973, 7
          %v975 = vsub.s32 0, %v974
          %v976 = vrot.slane %v902, %v975
          %v977 = vlaneseq
          %v978 = vshrl.u32 %v977, 7
          %v979 = vsub.s32 0, %v978
          %v980 = vrot.slane %v901, %v979
          %v981 = vlaneseq
          %v982 = vshrl.u32 %v981, 7
          %v983 = vsub.s32 0, %v982
          %v984 = vrot.slane %v903, %v983
          %v985 = vlaneseq
          %v986 = vshrl.u32 %v985, 7
          %v987 = vsub.s32 0, %v986
          %v988 = vrot.slane %v911, %v987
          %v989 = vlaneseq
          %v990 = vshrl.u32 %v989, 7
          %v991 = vsub.s32 0, %v990
          %v992 = vrot.slane %v919, %v991
          %v993 = vlaneseq
          %v994 = vshrl.u32 %v993, 7
          %v995 = vsub.s32 0, %v994
          %v996 = vrot.slane %v918, %v995
          %v997 = vlaneseq
          %v998 = vshrl.u32 %v997, 7
          %v999 = vsub.s32 0, %v998
          %v1000 = vrot.slane %v920, %v999
          %v1001 = vsel %vm953, %v976, %v972
          %v1002 = vsel %vm955, %v980, %v1001
          %v1003 = vsel %vm957, %v984, %v1002
          %v1004 = vsel %vm959, %v988, %v1003
          %v1005 = vsel %vm961, %v992, %v1004
          %v1006 = vsel %vm963, %v996, %v1005
          %v1007 = vsel %vm965, %v1000, %v1006
          %1009 = vst.msk [vmem:[#allocation3] sm:$0xff] %vm637, %v1007
          %v1010 = vlaneseq
          %v1011 = vshrl.u32 %v1010, 7
          %v1012 = vsub.s32 1, %v1011
          %v1013 = vrot.slane %v858, %v1012
          %v1014 = vlaneseq
          %v1015 = vshrl.u32 %v1014, 7
          %v1016 = vsub.s32 1, %v1015
          %v1017 = vrot.slane %v866, %v1016
          %v1018 = vlaneseq
          %v1019 = vshrl.u32 %v1018, 7
          %v1020 = vsub.s32 1, %v1019
          %v1021 = vrot.slane %v865, %v1020
          %v1022 = vlaneseq
          %v1023 = vshrl.u32 %v1022, 7
          %v1024 = vsub.s32 1, %v1023
          %v1025 = vrot.slane %v867, %v1024
          %v1026 = vlaneseq
          %v1027 = vshrl.u32 %v1026, 7
          %v1028 = vsub.s32 1, %v1027
          %v1029 = vrot.slane %v875, %v1028
          %v1030 = vlaneseq
          %v1031 = vshrl.u32 %v1030, 7
          %v1032 = vsub.s32 1, %v1031
          %v1033 = vrot.slane %v883, %v1032
          %v1034 = vlaneseq
          %v1035 = vshrl.u32 %v1034, 7
          %v1036 = vsub.s32 1, %v1035
          %v1037 = vrot.slane %v882, %v1036
          %v1038 = vlaneseq
          %v1039 = vshrl.u32 %v1038, 7
          %v1040 = vsub.s32 1, %v1039
          %v1041 = vrot.slane %v884, %v1040
          %v1042 = vsel %vm955, %v1017, %v1013
          %v1043 = vsel %vm957, %v1021, %v1042
          %v1044 = vsel %vm959, %v1025, %v1043
          %v1045 = vsel %vm961, %v1029, %v1044
          %v1046 = vsel %vm963, %v1033, %v1045
          %v1047 = vsel %vm965, %v1037, %v1046
          %s1050 = scalar_lea.vmem [#allocation2], 8
          %vm1051 = vcmask 261121
          %1052 = vst.msk [vmem:[%s1050 - $0x1] sm:$0xfe] %vm1051, %v1047
          %vm1053 = vcmask 253952
          %1054 = vst.msk [vmem:[%s1050 + $0x7] sm:$0x1] %vm1053, %v1041
          %v1055 = vlaneseq
          %v1056 = vshrl.u32 %v1055, 7
          %v1057 = vsub.s32 1, %v1056
          %v1058 = vrot.slane %v894, %v1057
          %v1059 = vlaneseq
          %v1060 = vshrl.u32 %v1059, 7
          %v1061 = vsub.s32 1, %v1060
          %v1062 = vrot.slane %v902, %v1061
          %v1063 = vlaneseq
          %v1064 = vshrl.u32 %v1063, 7
          %v1065 = vsub.s32 1, %v1064
          %v1066 = vrot.slane %v901, %v1065
          %v1067 = vlaneseq
          %v1068 = vshrl.u32 %v1067, 7
          %v1069 = vsub.s32 1, %v1068
          %v1070 = vrot.slane %v903, %v1069
          %v1071 = vlaneseq
          %v1072 = vshrl.u32 %v1071, 7
          %v1073 = vsub.s32 1, %v1072
          %v1074 = vrot.slane %v911, %v1073
          %v1075 = vlaneseq
          %v1076 = vshrl.u32 %v1075, 7
          %v1077 = vsub.s32 1, %v1076
          %v1078 = vrot.slane %v919, %v1077
          %v1079 = vlaneseq
          %v1080 = vshrl.u32 %v1079, 7
          %v1081 = vsub.s32 1, %v1080
          %v1082 = vrot.slane %v918, %v1081
          %v1083 = vlaneseq
          %v1084 = vshrl.u32 %v1083, 7
          %v1085 = vsub.s32 1, %v1084
          %v1086 = vrot.slane %v920, %v1085
          %v1087 = vsel %vm955, %v1062, %v1058
          %v1088 = vsel %vm957, %v1066, %v1087
          %v1089 = vsel %vm959, %v1070, %v1088
          %v1090 = vsel %vm961, %v1074, %v1089
          %v1091 = vsel %vm963, %v1078, %v1090
          %v1092 = vsel %vm965, %v1082, %v1091
          %s1095 = scalar_lea.vmem [#allocation3], 8
          %1096 = vst.msk [vmem:[%s1095 - $0x1] sm:$0xfe] %vm1051, %v1092
          %1097 = vst.msk [vmem:[%s1095 + $0x7] sm:$0x1] %vm1053, %v1086
        $region120: #{tpu_custom_call.1} parent=67 // pred_fallthru
          _
        %s1098 = smul.u32 %s33, 4
        %s1099 = smul.u32 %s1098, 2
        %s1100 = scalar_lea.vmem [#allocation4], %s1099
        %v1101 = vld [vmem:[%s1100] sm:$0x3]
        %v1102 = vld [vmem:[%s1100 + $0x2] sm:$0x3]
        %v1103 = vld [vmem:[%s1100 + $0x4] sm:$0x3]
        %v1104 = vld [vmem:[%s1100 + $0x6] sm:$0x3]
        %s1105 = scalar_lea.vmem [#allocation7], %s1099
        %v1106 = vld [vmem:[%s1105] sm:$0x3]
        %v1107 = vld [vmem:[%s1105 + $0x2] sm:$0x3]
        %v1108 = vld [vmem:[%s1105 + $0x4] sm:$0x3]
        %v1109 = vld [vmem:[%s1105 + $0x6] sm:$0x3]
        %v1110 = vadd.f32 %v1101, %v1106
        %v1111 = vadd.f32 %v1102, %v1107
        %v1112 = vadd.f32 %v1103, %v1108
        %v1113 = vadd.f32 %v1104, %v1109
        %v1114 = vld [vmem:[#allocation9] sm:$0xff]
        %v1115 = vld [vmem:[#allocation9 + $0x8] sm:$0xff]
        %v1116 = vld [vmem:[#allocation9 + $0x10] sm:$0xff]
        %v1117 = vld [vmem:[#allocation9 + $0x18] sm:$0xff]
        %v1118 = vld [vmem:[#allocation10] sm:$0x1]
        %v1120 = vlaneseq
        %v1121 = vshrl.u32 %v1120, 7
        %v1122 = vsub.s32 0, %v1121
        %v1123 = vrot.slane %v1118, %v1122
        %v1129 = vcombine.low %v1110, %v1111
        %v1130 = vcombine.low %v1112, %v1113
        %v1132 = vunpack.c.l.s4 1983009808
        %v1133 = vunpack.c.0.s8 %v1132
        %v1134 = vlaneseq
        %v1135 = vshrl.u32 %v1134, 7
        %v1136 = vsub.s32 %v1133, %v1135
        %v1137 = vrot.slane %v1129, %v1136
        %v1139 = vunpack.c.l.s4 1983009808
        %v1140 = vunpack.c.0.s8 %v1139
        %v1141 = vlaneseq
        %v1142 = vshrl.u32 %v1141, 7
        %v1143 = vsub.s32 %v1140, %v1142
        %v1144 = vrot.slane %v1130, %v1143
        %v1145 = vcombine.low %v1137, %v1144
        %vm1146 = vcmask 261120
        %v1147 = vsel %vm1146, %v1145, 0
        %1149 = vmatprep.subr.mxu0 0.0
        %1150 = vmatpush1.msra.mxu0 %v1114
        %1151 = vmatprep.subr.mxu0 0.0
        %1152 = vmatpush1.msra.mxu0 %v1115
        %1153 = vmatprep.subr.mxu0 0.0
        %1154 = vmatpush1.msra.mxu0 %v1116
        %1155 = vmatprep.subr.mxu0 0.0
        %1156 = vmatpush1.msra.mxu0 %v1117
        %1157 = vmatprep.subr.mxu0 0.0
        %1158 = vmatpush1.msra.mxu0 0.0
        %1159 = vmatprep.subr.mxu0 0.0
        %1160 = vmatpush1.msra.mxu0 0.0
        %1161 = vmatprep.subr.mxu0 0.0
        %1162 = vmatpush1.msra.mxu0 0.0
        %1163 = vmatprep.subr.mxu0 0.0
        %1164 = vmatpush1.msra.mxu0 0.0
        %1165 = vmatprep.subr.mxu0 0.0
        %1166 = vmatpush1.msra.mxu0 0.0
        %1167 = vmatprep.subr.mxu0 0.0
        %1168 = vmatpush1.msra.mxu0 0.0
        %1169 = vmatprep.subr.mxu0 0.0
        %1170 = vmatpush1.msra.mxu0 0.0
        %1171 = vmatprep.subr.mxu0 0.0
        %1172 = vmatpush1.msra.mxu0 0.0
        %1173 = vmatprep.subr.mxu0 0.0
        %1174 = vmatpush1.msra.mxu0 0.0
        %1175 = vmatprep.subr.mxu0 0.0
        %1176 = vmatpush1.msra.mxu0 0.0
        %1177 = vmatprep.subr.mxu0 0.0
        %1178 = vmatpush1.msra.mxu0 0.0
        %1179 = vmatprep.subr.mxu0 0.0
        %1180 = vmatpush1.msra.mxu0 0.0
        %1181 = vmatprep.subr.mxu0 0.0
        %1182 = vmatpush1.msra.mxu0 0.0
        %1183 = vmatprep.subr.mxu0 0.0
        %1184 = vmatpush1.msra.mxu0 0.0
        %1185 = vmatprep.subr.mxu0 0.0
        %1186 = vmatpush1.msra.mxu0 0.0
        %1187 = vmatprep.subr.mxu0 0.0
        %1188 = vmatpush1.msra.mxu0 0.0
        %1189 = vmatprep.subr.mxu0 0.0
        %1190 = vmatpush1.msra.mxu0 0.0
        %1191 = vmatprep.subr.mxu0 0.0
        %1192 = vmatpush1.msra.mxu0 0.0
        %1193 = vmatprep.subr.mxu0 0.0
        %1194 = vmatpush1.msra.mxu0 0.0
        %1195 = vmatprep.subr.mxu0 0.0
        %1196 = vmatpush1.msra.mxu0 0.0
        %1197 = vmatprep.subr.mxu0 0.0
        %1198 = vmatpush1.msra.mxu0 0.0
        %1199 = vmatprep.subr.mxu0 0.0
        %1200 = vmatpush1.msra.mxu0 0.0
        %1201 = vmatprep.subr.mxu0 0.0
        %1202 = vmatpush1.msra.mxu0 0.0
        %1203 = vmatprep.subr.mxu0 0.0
        %1204 = vmatpush1.msra.mxu0 0.0
        %1205 = vmatprep.subr.mxu0 0.0
        %1206 = vmatpush1.msra.mxu0 0.0
        %1207 = vmatprep.subr.mxu0 0.0
        %1208 = vmatpush1.msra.mxu0 0.0
        %1209 = vmatprep.subr.mxu0 0.0
        %1210 = vmatpush1.msra.mxu0 0.0
        %1211 = vmatprep.subr.mxu0 0.0
        %1212 = vmatpush1.msra.mxu0 0.0
        %1213 = vmatprep.mubr.f32.mxu0 0.0
        %1214 = vmatmul.mubr.f32.gmra.mrb[0].mxu0 %v1147
        %v1215 = vpop.f32.mrb[0].mxu0
        %v1216 = vadd.f32 %v1123, %v1215
        %v1217 = vpop.f32.mrb[0].mxu0
        %1218 = vdwg.mxu0
        %v1220 = vcombine.high %v1216, %v1216
        %v1222 = vunpack.c.l.s4 1983009808
        %v1223 = vunpack.c.0.s8 %v1222
        %v1224 = vlaneseq
        %v1225 = vshrl.u32 %v1224, 7
        %v1226 = vsub.s32 %v1223, %v1225
        %v1227 = vrot.slane %v1216, %v1226
        %v1229 = vunpack.c.l.s4 1983009808
        %v1230 = vunpack.c.0.s8 %v1229
        %v1231 = vlaneseq
        %v1232 = vshrl.u32 %v1231, 7
        %v1233 = vsub.s32 %v1230, %v1232
        %v1234 = vrot.slane %v1220, %v1233
        %v1235 = vcombine.high %v1227, %v1227
        %v1236 = vcombine.high %v1234, %v1234
        %v1237 = vld [vmem:[#allocation18] sm:$0xff]
        %v1238 = vld [vmem:[#allocation18 + $0x8] sm:$0xff]
        %v1239 = vld [vmem:[#allocation18 + $0x10] sm:$0xff]
        %v1240 = vld [vmem:[#allocation18 + $0x18] sm:$0xff]
        %v1241 = vld [vmem:[#allocation19] sm:$0x1]
        %v1242 = vld [vmem:[#allocation21] sm:$0x1]
        %v1243 = vld [vmem:[#allocation22] sm:$0x1]
        %v1244 = vld [vmem:[#allocation2] sm:$0xff]
        %v1245 = vld [vmem:[#allocation3] sm:$0xff]
        %v1246 = vlaneseq
        %v1247 = vshrl.u32 %v1246, 7
        %v1248 = vsub.s32 0, %v1247
        %v1249 = vrot.slane %v1227, %v1248
        %v1250 = vlaneseq
        %v1251 = vshrl.u32 %v1250, 7
        %v1252 = vsub.s32 0, %v1251
        %v1253 = vrot.slane %v1235, %v1252
        %v1254 = vlaneseq
        %v1255 = vshrl.u32 %v1254, 7
        %v1256 = vsub.s32 0, %v1255
        %v1257 = vrot.slane %v1234, %v1256
        %v1258 = vlaneseq
        %v1259 = vshrl.u32 %v1258, 7
        %v1260 = vsub.s32 0, %v1259
        %v1261 = vrot.slane %v1236, %v1260
        %vm1262 = vcmask 1041409
        %v1263 = vsel %vm1262, %v1253, %v1249
        %vm1264 = vcmask 1042434
        %v1265 = vsel %vm1264, %v1257, %v1263
        %vm1266 = vcmask 1043459
        %v1267 = vsel %vm1266, %v1261, %v1265
        %vm1268 = vcmask 64512
        %v1269 = vsel %vm1268, %v1267, 0
        %v1272 = vsel %vm1268, %v1244, 0
        %1274 = vmatprep.subr.mxu0 0.0
        %1275 = vmatpush1.xpose.msra.mxu0 %v1272
        %1276 = vmatprep.subr.mxu0 0.0
        %1277 = vmatpush1.xpose.msra.mxu0 0.0
        %1278 = vmatprep.subr.mxu0 0.0
        %1279 = vmatpush1.xpose.msra.mxu0 0.0
        %1280 = vmatprep.subr.mxu0 0.0
        %1281 = vmatpush1.xpose.msra.mxu0 0.0
        %1282 = vmatprep.subr.mxu0 0.0
        %1283 = vmatpush1.xpose.msra.mxu0 0.0
        %1284 = vmatprep.subr.mxu0 0.0
        %1285 = vmatpush1.xpose.msra.mxu0 0.0
        %1286 = vmatprep.subr.mxu0 0.0
        %1287 = vmatpush1.xpose.msra.mxu0 0.0
        %1288 = vmatprep.subr.mxu0 0.0
        %1289 = vmatpush1.xpose.msra.mxu0 0.0
        %1290 = vmatprep.subr.mxu0 0.0
        %1291 = vmatpush1.xpose.msra.mxu0 0.0
        %1292 = vmatprep.subr.mxu0 0.0
        %1293 = vmatpush1.xpose.msra.mxu0 0.0
        %1294 = vmatprep.subr.mxu0 0.0
        %1295 = vmatpush1.xpose.msra.mxu0 0.0
        %1296 = vmatprep.subr.mxu0 0.0
        %1297 = vmatpush1.xpose.msra.mxu0 0.0
        %1298 = vmatprep.subr.mxu0 0.0
        %1299 = vmatpush1.xpose.msra.mxu0 0.0
        %1300 = vmatprep.subr.mxu0 0.0
        %1301 = vmatpush1.xpose.msra.mxu0 0.0
        %1302 = vmatprep.subr.mxu0 0.0
        %1303 = vmatpush1.xpose.msra.mxu0 0.0
        %1304 = vmatprep.subr.mxu0 0.0
        %1305 = vmatpush1.xpose.msra.mxu0 0.0
        %1306 = vmatprep.subr.mxu0 0.0
        %1307 = vmatpush1.xpose.msra.mxu0 0.0
        %1308 = vmatprep.subr.mxu0 0.0
        %1309 = vmatpush1.xpose.msra.mxu0 0.0
        %1310 = vmatprep.subr.mxu0 0.0
        %1311 = vmatpush1.xpose.msra.mxu0 0.0
        %1312 = vmatprep.subr.mxu0 0.0
        %1313 = vmatpush1.xpose.msra.mxu0 0.0
        %1314 = vmatprep.subr.mxu0 0.0
        %1315 = vmatpush1.xpose.msra.mxu0 0.0
        %1316 = vmatprep.subr.mxu0 0.0
        %1317 = vmatpush1.xpose.msra.mxu0 0.0
        %1318 = vmatprep.subr.mxu0 0.0
        %1319 = vmatpush1.xpose.msra.mxu0 0.0
        %1320 = vmatprep.subr.mxu0 0.0
        %1321 = vmatpush1.xpose.msra.mxu0 0.0
        %1322 = vmatprep.subr.mxu0 0.0
        %1323 = vmatpush1.xpose.msra.mxu0 0.0
        %1324 = vmatprep.subr.mxu0 0.0
        %1325 = vmatpush1.xpose.msra.mxu0 0.0
        %1326 = vmatprep.subr.mxu0 0.0
        %1327 = vmatpush1.xpose.msra.mxu0 0.0
        %1328 = vmatprep.subr.mxu0 0.0
        %1329 = vmatpush1.xpose.msra.mxu0 0.0
        %1330 = vmatprep.subr.mxu0 0.0
        %1331 = vmatpush1.xpose.msra.mxu0 0.0
        %1332 = vmatprep.subr.mxu0 0.0
        %1333 = vmatpush1.xpose.msra.mxu0 0.0
        %1334 = vmatprep.subr.mxu0 0.0
        %1335 = vmatpush1.xpose.msra.mxu0 0.0
        %1336 = vmatprep.subr.mxu0 0.0
        %1337 = vmatpush1.xpose.msra.mxu0 0.0
        %1338 = vmatprep.mubr.f32.mxu0 0.0
        %1339 = vmatmul.mubr.f32.gmra.mrb[0].mxu0 %v1269
        %v1340 = vpop.f32.mrb[0].mxu0
        %v1341 = vadd.f32 0.0, %v1340
        %v1342 = vpop.f32.mrb[0].mxu0
        %1343 = vdwg.mxu0
        %vm1344 = vcmask 60416
        %v1345 = vsel %vm1344, %v1341, -inf
        %1346 = vmax.xlane.f32.xlu0 %v1345
        %v1347 = vpop.xlane.xlu0 %1346
        %v1348 = vsub.f32 %v1341, %v1347
        %v1349 = vmul.f32 %v1348, 1.442695
        %v1350 = vpow.pop %v1349
        %v1351 = vsel %vm1344, %v1350, 0.0
        %1352 = vadd.xlane.f32.xlu0 %v1351
        %v1353 = vpop.xlane.xlu0 %1352
        %v1355 = vsel %vm1268, %v1350, 0
        %1357 = vmatprep.subr.mxu0 0.0
        %1358 = vmatpush1.msra.mxu0 %v1245
        %1359 = vmatprep.subr.mxu0 0.0
        %1360 = vmatpush1.msra.mxu0 0.0
        %1361 = vmatprep.subr.mxu0 0.0
        %1362 = vmatpush1.msra.mxu0 0.0
        %1363 = vmatprep.subr.mxu0 0.0
        %1364 = vmatpush1.msra.mxu0 0.0
        %1365 = vmatprep.subr.mxu0 0.0
        %1366 = vmatpush1.msra.mxu0 0.0
        %1367 = vmatprep.subr.mxu0 0.0
        %1368 = vmatpush1.msra.mxu0 0.0
        %1369 = vmatprep.subr.mxu0 0.0
        %1370 = vmatpush1.msra.mxu0 0.0
        %1371 = vmatprep.subr.mxu0 0.0
        %1372 = vmatpush1.msra.mxu0 0.0
        %1373 = vmatprep.subr.mxu0 0.0
        %1374 = vmatpush1.msra.mxu0 0.0
        %1375 = vmatprep.subr.mxu0 0.0
        %1376 = vmatpush1.msra.mxu0 0.0
        %1377 = vmatprep.subr.mxu0 0.0
        %1378 = vmatpush1.msra.mxu0 0.0
        %1379 = vmatprep.subr.mxu0 0.0
        %1380 = vmatpush1.msra.mxu0 0.0
        %1381 = vmatprep.subr.mxu0 0.0
        %1382 = vmatpush1.msra.mxu0 0.0
        %1383 = vmatprep.subr.mxu0 0.0
        %1384 = vmatpush1.msra.mxu0 0.0
        %1385 = vmatprep.subr.mxu0 0.0
        %1386 = vmatpush1.msra.mxu0 0.0
        %1387 = vmatprep.subr.mxu0 0.0
        %1388 = vmatpush1.msra.mxu0 0.0
        %1389 = vmatprep.subr.mxu0 0.0
        %1390 = vmatpush1.msra.mxu0 0.0
        %1391 = vmatprep.subr.mxu0 0.0
        %1392 = vmatpush1.msra.mxu0 0.0
        %1393 = vmatprep.subr.mxu0 0.0
        %1394 = vmatpush1.msra.mxu0 0.0
        %1395 = vmatprep.subr.mxu0 0.0
        %1396 = vmatpush1.msra.mxu0 0.0
        %1397 = vmatprep.subr.mxu0 0.0
        %1398 = vmatpush1.msra.mxu0 0.0
        %1399 = vmatprep.subr.mxu0 0.0
        %1400 = vmatpush1.msra.mxu0 0.0
        %1401 = vmatprep.subr.mxu0 0.0
        %1402 = vmatpush1.msra.mxu0 0.0
        %1403 = vmatprep.subr.mxu0 0.0
        %1404 = vmatpush1.msra.mxu0 0.0
        %1405 = vmatprep.subr.mxu0 0.0
        %1406 = vmatpush1.msra.mxu0 0.0
        %1407 = vmatprep.subr.mxu0 0.0
        %1408 = vmatpush1.msra.mxu0 0.0
        %1409 = vmatprep.subr.mxu0 0.0
        %1410 = vmatpush1.msra.mxu0 0.0
        %1411 = vmatprep.subr.mxu0 0.0
        %1412 = vmatpush1.msra.mxu0 0.0
        %1413 = vmatprep.subr.mxu0 0.0
        %1414 = vmatpush1.msra.mxu0 0.0
        %1415 = vmatprep.subr.mxu0 0.0
        %1416 = vmatpush1.msra.mxu0 0.0
        %1417 = vmatprep.subr.mxu0 0.0
        %1418 = vmatpush1.msra.mxu0 0.0
        %1419 = vmatprep.subr.mxu0 0.0
        %1420 = vmatpush1.msra.mxu0 0.0
        %1421 = vmatprep.mubr.f32.mxu0 0.0
        %1422 = vmatmul.mubr.f32.gmra.mrb[0].mxu0 %v1355
        %v1423 = vpop.f32.mrb[0].mxu0
        %v1424 = vadd.f32 0.0, %v1423
        %v1425 = vpop.f32.mrb[0].mxu0
        %1426 = vdwg.mxu0
        %v1427 = vrcp.pop %v1353
        %v1428 = vmul.f32 %v1424, %v1427
        %1429 = vrot.lane.b32.xlu0 %v1267, 120
        %v1430 = vpop.permute.xlu0 %1429
        %1431 = vrot.lane.b32.xlu0 %v1244, 120
        %v1432 = vpop.permute.xlu0 %1431
        %v1433 = vsel %vm1268, %v1430, 0
        %v1435 = vsel %vm1268, %v1432, 0
        %1437 = vmatprep.subr.mxu0 0.0
        %1438 = vmatpush1.xpose.msra.mxu0 %v1435
        %1439 = vmatprep.subr.mxu0 0.0
        %1440 = vmatpush1.xpose.msra.mxu0 0.0
        %1441 = vmatprep.subr.mxu0 0.0
        %1442 = vmatpush1.xpose.msra.mxu0 0.0
        %1443 = vmatprep.subr.mxu0 0.0
        %1444 = vmatpush1.xpose.msra.mxu0 0.0
        %1445 = vmatprep.subr.mxu0 0.0
        %1446 = vmatpush1.xpose.msra.mxu0 0.0
        %1447 = vmatprep.subr.mxu0 0.0
        %1448 = vmatpush1.xpose.msra.mxu0 0.0
        %1449 = vmatprep.subr.mxu0 0.0
        %1450 = vmatpush1.xpose.msra.mxu0 0.0
        %1451 = vmatprep.subr.mxu0 0.0
        %1452 = vmatpush1.xpose.msra.mxu0 0.0
        %1453 = vmatprep.subr.mxu0 0.0
        %1454 = vmatpush1.xpose.msra.mxu0 0.0
        %1455 = vmatprep.subr.mxu0 0.0
        %1456 = vmatpush1.xpose.msra.mxu0 0.0
        %1457 = vmatprep.subr.mxu0 0.0
        %1458 = vmatpush1.xpose.msra.mxu0 0.0
        %1459 = vmatprep.subr.mxu0 0.0
        %1460 = vmatpush1.xpose.msra.mxu0 0.0
        %1461 = vmatprep.subr.mxu0 0.0
        %1462 = vmatpush1.xpose.msra.mxu0 0.0
        %1463 = vmatprep.subr.mxu0 0.0
        %1464 = vmatpush1.xpose.msra.mxu0 0.0
        %1465 = vmatprep.subr.mxu0 0.0
        %1466 = vmatpush1.xpose.msra.mxu0 0.0
        %1467 = vmatprep.subr.mxu0 0.0
        %1468 = vmatpush1.xpose.msra.mxu0 0.0
        %1469 = vmatprep.subr.mxu0 0.0
        %1470 = vmatpush1.xpose.msra.mxu0 0.0
        %1471 = vmatprep.subr.mxu0 0.0
        %1472 = vmatpush1.xpose.msra.mxu0 0.0
        %1473 = vmatprep.subr.mxu0 0.0
        %1474 = vmatpush1.xpose.msra.mxu0 0.0
        %1475 = vmatprep.subr.mxu0 0.0
        %1476 = vmatpush1.xpose.msra.mxu0 0.0
        %1477 = vmatprep.subr.mxu0 0.0
        %1478 = vmatpush1.xpose.msra.mxu0 0.0
        %1479 = vmatprep.subr.mxu0 0.0
        %1480 = vmatpush1.xpose.msra.mxu0 0.0
        %1481 = vmatprep.subr.mxu0 0.0
        %1482 = vmatpush1.xpose.msra.mxu0 0.0
        %1483 = vmatprep.subr.mxu0 0.0
        %1484 = vmatpush1.xpose.msra.mxu0 0.0
        %1485 = vmatprep.subr.mxu0 0.0
        %1486 = vmatpush1.xpose.msra.mxu0 0.0
        %1487 = vmatprep.subr.mxu0 0.0
        %1488 = vmatpush1.xpose.msra.mxu0 0.0
        %1489 = vmatprep.subr.mxu0 0.0
        %1490 = vmatpush1.xpose.msra.mxu0 0.0
        %1491 = vmatprep.subr.mxu0 0.0
        %1492 = vmatpush1.xpose.msra.mxu0 0.0
        %1493 = vmatprep.subr.mxu0 0.0
        %1494 = vmatpush1.xpose.msra.mxu0 0.0
        %1495 = vmatprep.subr.mxu0 0.0
        %1496 = vmatpush1.xpose.msra.mxu0 0.0
        %1497 = vmatprep.subr.mxu0 0.0
        %1498 = vmatpush1.xpose.msra.mxu0 0.0
        %1499 = vmatprep.subr.mxu0 0.0
        %1500 = vmatpush1.xpose.msra.mxu0 0.0
        %1501 = vmatprep.mubr.f32.mxu0 0.0
        %1502 = vmatmul.mubr.f32.gmra.mrb[0].mxu0 %v1433
        %v1503 = vpop.f32.mrb[0].mxu0
        %v1504 = vadd.f32 0.0, %v1503
        %v1505 = vpop.f32.mrb[0].mxu0
        %1506 = vdwg.mxu0
        %v1507 = vsel %vm1344, %v1504, -inf
        %1508 = vmax.xlane.f32.xlu0 %v1507
        %v1509 = vpop.xlane.xlu0 %1508
        %v1510 = vsub.f32 %v1504, %v1509
        %v1511 = vmul.f32 %v1510, 1.442695
        %v1512 = vpow.pop %v1511
        %v1513 = vsel %vm1344, %v1512, 0.0
        %1514 = vadd.xlane.f32.xlu0 %v1513
        %v1515 = vpop.xlane.xlu0 %1514
        %1517 = vrot.lane.b32.xlu0 %v1245, 120
        %v1518 = vpop.permute.xlu0 %1517
        %v1521 = vsel %vm1268, %v1512, 0
        %1523 = vmatprep.subr.mxu0 0.0
        %1524 = vmatpush1.msra.mxu0 %v1518
        %1525 = vmatprep.subr.mxu0 0.0
        %1526 = vmatpush1.msra.mxu0 0.0
        %1527 = vmatprep.subr.mxu0 0.0
        %1528 = vmatpush1.msra.mxu0 0.0
        %1529 = vmatprep.subr.mxu0 0.0
        %1530 = vmatpush1.msra.mxu0 0.0
        %1531 = vmatprep.subr.mxu0 0.0
        %1532 = vmatpush1.msra.mxu0 0.0
        %1533 = vmatprep.subr.mxu0 0.0
        %1534 = vmatpush1.msra.mxu0 0.0
        %1535 = vmatprep.subr.mxu0 0.0
        %1536 = vmatpush1.msra.mxu0 0.0
        %1537 = vmatprep.subr.mxu0 0.0
        %1538 = vmatpush1.msra.mxu0 0.0
        %1539 = vmatprep.subr.mxu0 0.0
        %1540 = vmatpush1.msra.mxu0 0.0
        %1541 = vmatprep.subr.mxu0 0.0
        %1542 = vmatpush1.msra.mxu0 0.0
        %1543 = vmatprep.subr.mxu0 0.0
        %1544 = vmatpush1.msra.mxu0 0.0
        %1545 = vmatprep.subr.mxu0 0.0
        %1546 = vmatpush1.msra.mxu0 0.0
        %1547 = vmatprep.subr.mxu0 0.0
        %1548 = vmatpush1.msra.mxu0 0.0
        %1549 = vmatprep.subr.mxu0 0.0
        %1550 = vmatpush1.msra.mxu0 0.0
        %1551 = vmatprep.subr.mxu0 0.0
        %1552 = vmatpush1.msra.mxu0 0.0
        %1553 = vmatprep.subr.mxu0 0.0
        %1554 = vmatpush1.msra.mxu0 0.0
        %1555 = vmatprep.subr.mxu0 0.0
        %1556 = vmatpush1.msra.mxu0 0.0
        %1557 = vmatprep.subr.mxu0 0.0
        %1558 = vmatpush1.msra.mxu0 0.0
        %1559 = vmatprep.subr.mxu0 0.0
        %1560 = vmatpush1.msra.mxu0 0.0
        %1561 = vmatprep.subr.mxu0 0.0
        %1562 = vmatpush1.msra.mxu0 0.0
        %1563 = vmatprep.subr.mxu0 0.0
        %1564 = vmatpush1.msra.mxu0 0.0
        %1565 = vmatprep.subr.mxu0 0.0
        %1566 = vmatpush1.msra.mxu0 0.0
        %1567 = vmatprep.subr.mxu0 0.0
        %1568 = vmatpush1.msra.mxu0 0.0
        %1569 = vmatprep.subr.mxu0 0.0
        %1570 = vmatpush1.msra.mxu0 0.0
        %1571 = vmatprep.subr.mxu0 0.0
        %1572 = vmatpush1.msra.mxu0 0.0
        %1573 = vmatprep.subr.mxu0 0.0
        %1574 = vmatpush1.msra.mxu0 0.0
        %1575 = vmatprep.subr.mxu0 0.0
        %1576 = vmatpush1.msra.mxu0 0.0
        %1577 = vmatprep.subr.mxu0 0.0
        %1578 = vmatpush1.msra.mxu0 0.0
        %1579 = vmatprep.subr.mxu0 0.0
        %1580 = vmatpush1.msra.mxu0 0.0
        %1581 = vmatprep.subr.mxu0 0.0
        %1582 = vmatpush1.msra.mxu0 0.0
        %1583 = vmatprep.subr.mxu0 0.0
        %1584 = vmatpush1.msra.mxu0 0.0
        %1585 = vmatprep.subr.mxu0 0.0
        %1586 = vmatpush1.msra.mxu0 0.0
        %1587 = vmatprep.mubr.f32.mxu0 0.0
        %1588 = vmatmul.mubr.f32.gmra.mrb[0].mxu0 %v1521
        %v1589 = vpop.f32.mrb[0].mxu0
        %v1590 = vadd.f32 0.0, %v1589
        %v1591 = vpop.f32.mrb[0].mxu0
        %1592 = vdwg.mxu0
        %v1593 = vrcp.pop %v1515
        %v1594 = vmul.f32 %v1590, %v1593
        %v1596 = vsel %vm1268, %v1594, 0
        %1598 = vmatprep.subr.mxu0 0.0
        %1599 = vmatpush1.msra.mxu0 %v1238
        %1600 = vmatprep.subr.mxu0 0.0
        %1601 = vmatpush1.msra.mxu0 0.0
        %1602 = vmatprep.subr.mxu0 0.0
        %1603 = vmatpush1.msra.mxu0 0.0
        %1604 = vmatprep.subr.mxu0 0.0
        %1605 = vmatpush1.msra.mxu0 0.0
        %1606 = vmatprep.subr.mxu0 0.0
        %1607 = vmatpush1.msra.mxu0 0.0
        %1608 = vmatprep.subr.mxu0 0.0
        %1609 = vmatpush1.msra.mxu0 0.0
        %1610 = vmatprep.subr.mxu0 0.0
        %1611 = vmatpush1.msra.mxu0 0.0
        %1612 = vmatprep.subr.mxu0 0.0
        %1613 = vmatpush1.msra.mxu0 0.0
        %1614 = vmatprep.subr.mxu0 0.0
        %1615 = vmatpush1.msra.mxu0 0.0
        %1616 = vmatprep.subr.mxu0 0.0
        %1617 = vmatpush1.msra.mxu0 0.0
        %1618 = vmatprep.subr.mxu0 0.0
        %1619 = vmatpush1.msra.mxu0 0.0
        %1620 = vmatprep.subr.mxu0 0.0
        %1621 = vmatpush1.msra.mxu0 0.0
        %1622 = vmatprep.subr.mxu0 0.0
        %1623 = vmatpush1.msra.mxu0 0.0
        %1624 = vmatprep.subr.mxu0 0.0
        %1625 = vmatpush1.msra.mxu0 0.0
        %1626 = vmatprep.subr.mxu0 0.0
        %1627 = vmatpush1.msra.mxu0 0.0
        %1628 = vmatprep.subr.mxu0 0.0
        %1629 = vmatpush1.msra.mxu0 0.0
        %1630 = vmatprep.subr.mxu0 0.0
        %1631 = vmatpush1.msra.mxu0 0.0
        %1632 = vmatprep.subr.mxu0 0.0
        %1633 = vmatpush1.msra.mxu0 0.0
        %1634 = vmatprep.subr.mxu0 0.0
        %1635 = vmatpush1.msra.mxu0 0.0
        %1636 = vmatprep.subr.mxu0 0.0
        %1637 = vmatpush1.msra.mxu0 0.0
        %1638 = vmatprep.subr.mxu0 0.0
        %1639 = vmatpush1.msra.mxu0 0.0
        %1640 = vmatprep.subr.mxu0 0.0
        %1641 = vmatpush1.msra.mxu0 0.0
        %1642 = vmatprep.subr.mxu0 0.0
        %1643 = vmatpush1.msra.mxu0 0.0
        %1644 = vmatprep.subr.mxu0 0.0
        %1645 = vmatpush1.msra.mxu0 0.0
        %1646 = vmatprep.subr.mxu0 0.0
        %1647 = vmatpush1.msra.mxu0 0.0
        %1648 = vmatprep.subr.mxu0 0.0
        %1649 = vmatpush1.msra.mxu0 0.0
        %1650 = vmatprep.subr.mxu0 0.0
        %1651 = vmatpush1.msra.mxu0 0.0
        %1652 = vmatprep.subr.mxu0 0.0
        %1653 = vmatpush1.msra.mxu0 0.0
        %1654 = vmatprep.subr.mxu0 0.0
        %1655 = vmatpush1.msra.mxu0 0.0
        %1656 = vmatprep.subr.mxu0 0.0
        %1657 = vmatpush1.msra.mxu0 0.0
        %1658 = vmatprep.subr.mxu0 0.0
        %1659 = vmatpush1.msra.mxu0 0.0
        %1660 = vmatprep.subr.mxu0 0.0
        %1661 = vmatpush1.msra.mxu0 0.0
        %1662 = vmatprep.mubr.f32.mxu0 0.0
        %1663 = vmatmul.mubr.f32.gmra.mrb[0].mxu0 %v1596
        %v1664 = vpop.f32.mrb[0].mxu0
        %v1665 = vadd.f32 0.0, %v1664
        %v1666 = vpop.f32.mrb[0].mxu0
        %1667 = vdwg.mxu0
        %v1669 = vsel %vm1268, %v1428, 0
        %1671 = vmatprep.subr.mxu0 0.0
        %1672 = vmatpush1.msra.mxu0 %v1237
        %1673 = vmatprep.subr.mxu0 0.0
        %1674 = vmatpush1.msra.mxu0 0.0
        %1675 = vmatprep.subr.mxu0 0.0
        %1676 = vmatpush1.msra.mxu0 0.0
        %1677 = vmatprep.subr.mxu0 0.0
        %1678 = vmatpush1.msra.mxu0 0.0
        %1679 = vmatprep.subr.mxu0 0.0
        %1680 = vmatpush1.msra.mxu0 0.0
        %1681 = vmatprep.subr.mxu0 0.0
        %1682 = vmatpush1.msra.mxu0 0.0
        %1683 = vmatprep.subr.mxu0 0.0
        %1684 = vmatpush1.msra.mxu0 0.0
        %1685 = vmatprep.subr.mxu0 0.0
        %1686 = vmatpush1.msra.mxu0 0.0
        %1687 = vmatprep.subr.mxu0 0.0
        %1688 = vmatpush1.msra.mxu0 0.0
        %1689 = vmatprep.subr.mxu0 0.0
        %1690 = vmatpush1.msra.mxu0 0.0
        %1691 = vmatprep.subr.mxu0 0.0
        %1692 = vmatpush1.msra.mxu0 0.0
        %1693 = vmatprep.subr.mxu0 0.0
        %1694 = vmatpush1.msra.mxu0 0.0
        %1695 = vmatprep.subr.mxu0 0.0
        %1696 = vmatpush1.msra.mxu0 0.0
        %1697 = vmatprep.subr.mxu0 0.0
        %1698 = vmatpush1.msra.mxu0 0.0
        %1699 = vmatprep.subr.mxu0 0.0
        %1700 = vmatpush1.msra.mxu0 0.0
        %1701 = vmatprep.subr.mxu0 0.0
        %1702 = vmatpush1.msra.mxu0 0.0
        %1703 = vmatprep.subr.mxu0 0.0
        %1704 = vmatpush1.msra.mxu0 0.0
        %1705 = vmatprep.subr.mxu0 0.0
        %1706 = vmatpush1.msra.mxu0 0.0
        %1707 = vmatprep.subr.mxu0 0.0
        %1708 = vmatpush1.msra.mxu0 0.0
        %1709 = vmatprep.subr.mxu0 0.0
        %1710 = vmatpush1.msra.mxu0 0.0
        %1711 = vmatprep.subr.mxu0 0.0
        %1712 = vmatpush1.msra.mxu0 0.0
        %1713 = vmatprep.subr.mxu0 0.0
        %1714 = vmatpush1.msra.mxu0 0.0
        %1715 = vmatprep.subr.mxu0 0.0
        %1716 = vmatpush1.msra.mxu0 0.0
        %1717 = vmatprep.subr.mxu0 0.0
        %1718 = vmatpush1.msra.mxu0 0.0
        %1719 = vmatprep.subr.mxu0 0.0
        %1720 = vmatpush1.msra.mxu0 0.0
        %1721 = vmatprep.subr.mxu0 0.0
        %1722 = vmatpush1.msra.mxu0 0.0
        %1723 = vmatprep.subr.mxu0 0.0
        %1724 = vmatpush1.msra.mxu0 0.0
        %1725 = vmatprep.subr.mxu0 0.0
        %1726 = vmatpush1.msra.mxu0 0.0
        %1727 = vmatprep.subr.mxu0 0.0
        %1728 = vmatpush1.msra.mxu0 0.0
        %1729 = vmatprep.subr.mxu0 0.0
        %1730 = vmatpush1.msra.mxu0 0.0
        %1731 = vmatprep.subr.mxu0 0.0
        %1732 = vmatpush1.msra.mxu0 0.0
        %1733 = vmatprep.subr.mxu0 0.0
        %1734 = vmatpush1.msra.mxu0 0.0
        %1735 = vmatprep.mubr.f32.mxu0 0.0
        %1736 = vmatmul.mubr.f32.gmra.mrb[0].mxu0 %v1669
        %v1737 = vpop.f32.mrb[0].mxu0
        %v1738 = vadd.f32 %v1665, %v1737
        %v1739 = vpop.f32.mrb[0].mxu0
        %1740 = vdwg.mxu0
        %1741 = vrot.lane.b32.xlu0 %v1267, 112
        %v1742 = vpop.permute.xlu0 %1741
        %1743 = vrot.lane.b32.xlu0 %v1244, 112
        %v1744 = vpop.permute.xlu0 %1743
        %v1745 = vsel %vm1268, %v1742, 0
        %v1747 = vsel %vm1268, %v1744, 0
        %1749 = vmatprep.subr.mxu0 0.0
        %1750 = vmatpush1.xpose.msra.mxu0 %v1747
        %1751 = vmatprep.subr.mxu0 0.0
        %1752 = vmatpush1.xpose.msra.mxu0 0.0
        %1753 = vmatprep.subr.mxu0 0.0
        %1754 = vmatpush1.xpose.msra.mxu0 0.0
        %1755 = vmatprep.subr.mxu0 0.0
        %1756 = vmatpush1.xpose.msra.mxu0 0.0
        %1757 = vmatprep.subr.mxu0 0.0
        %1758 = vmatpush1.xpose.msra.mxu0 0.0
        %1759 = vmatprep.subr.mxu0 0.0
        %1760 = vmatpush1.xpose.msra.mxu0 0.0
        %1761 = vmatprep.subr.mxu0 0.0
        %1762 = vmatpush1.xpose.msra.mxu0 0.0
        %1763 = vmatprep.subr.mxu0 0.0
        %1764 = vmatpush1.xpose.msra.mxu0 0.0
        %1765 = vmatprep.subr.mxu0 0.0
        %1766 = vmatpush1.xpose.msra.mxu0 0.0
        %1767 = vmatprep.subr.mxu0 0.0
        %1768 = vmatpush1.xpose.msra.mxu0 0.0
        %1769 = vmatprep.subr.mxu0 0.0
        %1770 = vmatpush1.xpose.msra.mxu0 0.0
        %1771 = vmatprep.subr.mxu0 0.0
        %1772 = vmatpush1.xpose.msra.mxu0 0.0
        %1773 = vmatprep.subr.mxu0 0.0
        %1774 = vmatpush1.xpose.msra.mxu0 0.0
        %1775 = vmatprep.subr.mxu0 0.0
        %1776 = vmatpush1.xpose.msra.mxu0 0.0
        %1777 = vmatprep.subr.mxu0 0.0
        %1778 = vmatpush1.xpose.msra.mxu0 0.0
        %1779 = vmatprep.subr.mxu0 0.0
        %1780 = vmatpush1.xpose.msra.mxu0 0.0
        %1781 = vmatprep.subr.mxu0 0.0
        %1782 = vmatpush1.xpose.msra.mxu0 0.0
        %1783 = vmatprep.subr.mxu0 0.0
        %1784 = vmatpush1.xpose.msra.mxu0 0.0
        %1785 = vmatprep.subr.mxu0 0.0
        %1786 = vmatpush1.xpose.msra.mxu0 0.0
        %1787 = vmatprep.subr.mxu0 0.0
        %1788 = vmatpush1.xpose.msra.mxu0 0.0
        %1789 = vmatprep.subr.mxu0 0.0
        %1790 = vmatpush1.xpose.msra.mxu0 0.0
        %1791 = vmatprep.subr.mxu0 0.0
        %1792 = vmatpush1.xpose.msra.mxu0 0.0
        %1793 = vmatprep.subr.mxu0 0.0
        %1794 = vmatpush1.xpose.msra.mxu0 0.0
        %1795 = vmatprep.subr.mxu0 0.0
        %1796 = vmatpush1.xpose.msra.mxu0 0.0
        %1797 = vmatprep.subr.mxu0 0.0
        %1798 = vmatpush1.xpose.msra.mxu0 0.0
        %1799 = vmatprep.subr.mxu0 0.0
        %1800 = vmatpush1.xpose.msra.mxu0 0.0
        %1801 = vmatprep.subr.mxu0 0.0
        %1802 = vmatpush1.xpose.msra.mxu0 0.0
        %1803 = vmatprep.subr.mxu0 0.0
        %1804 = vmatpush1.xpose.msra.mxu0 0.0
        %1805 = vmatprep.subr.mxu0 0.0
        %1806 = vmatpush1.xpose.msra.mxu0 0.0
        %1807 = vmatprep.subr.mxu0 0.0
        %1808 = vmatpush1.xpose.msra.mxu0 0.0
        %1809 = vmatprep.subr.mxu0 0.0
        %1810 = vmatpush1.xpose.msra.mxu0 0.0
        %1811 = vmatprep.subr.mxu0 0.0
        %1812 = vmatpush1.xpose.msra.mxu0 0.0
        %1813 = vmatprep.mubr.f32.mxu0 0.0
        %1814 = vmatmul.mubr.f32.gmra.mrb[0].mxu0 %v1745
        %v1815 = vpop.f32.mrb[0].mxu0
        %v1816 = vadd.f32 0.0, %v1815
        %v1817 = vpop.f32.mrb[0].mxu0
        %1818 = vdwg.mxu0
        %v1819 = vsel %vm1344, %v1816, -inf
        %1820 = vmax.xlane.f32.xlu0 %v1819
        %v1821 = vpop.xlane.xlu0 %1820
        %v1822 = vsub.f32 %v1816, %v1821
        %v1823 = vmul.f32 %v1822, 1.442695
        %v1824 = vpow.pop %v1823
        %v1825 = vsel %vm1344, %v1824, 0.0
        %1826 = vadd.xlane.f32.xlu0 %v1825
        %v1827 = vpop.xlane.xlu0 %1826
        %1828 = vrot.lane.b32.xlu0 %v1245, 112
        %v1829 = vpop.permute.xlu0 %1828
        %v1832 = vsel %vm1268, %v1824, 0
        %1834 = vmatprep.subr.mxu0 0.0
        %1835 = vmatpush1.msra.mxu0 %v1829
        %1836 = vmatprep.subr.mxu0 0.0
        %1837 = vmatpush1.msra.mxu0 0.0
        %1838 = vmatprep.subr.mxu0 0.0
        %1839 = vmatpush1.msra.mxu0 0.0
        %1840 = vmatprep.subr.mxu0 0.0
        %1841 = vmatpush1.msra.mxu0 0.0
        %1842 = vmatprep.subr.mxu0 0.0
        %1843 = vmatpush1.msra.mxu0 0.0
        %1844 = vmatprep.subr.mxu0 0.0
        %1845 = vmatpush1.msra.mxu0 0.0
        %1846 = vmatprep.subr.mxu0 0.0
        %1847 = vmatpush1.msra.mxu0 0.0
        %1848 = vmatprep.subr.mxu0 0.0
        %1849 = vmatpush1.msra.mxu0 0.0
        %1850 = vmatprep.subr.mxu0 0.0
        %1851 = vmatpush1.msra.mxu0 0.0
        %1852 = vmatprep.subr.mxu0 0.0
        %1853 = vmatpush1.msra.mxu0 0.0
        %1854 = vmatprep.subr.mxu0 0.0
        %1855 = vmatpush1.msra.mxu0 0.0
        %1856 = vmatprep.subr.mxu0 0.0
        %1857 = vmatpush1.msra.mxu0 0.0
        %1858 = vmatprep.subr.mxu0 0.0
        %1859 = vmatpush1.msra.mxu0 0.0
        %1860 = vmatprep.subr.mxu0 0.0
        %1861 = vmatpush1.msra.mxu0 0.0
        %1862 = vmatprep.subr.mxu0 0.0
        %1863 = vmatpush1.msra.mxu0 0.0
        %1864 = vmatprep.subr.mxu0 0.0
        %1865 = vmatpush1.msra.mxu0 0.0
        %1866 = vmatprep.subr.mxu0 0.0
        %1867 = vmatpush1.msra.mxu0 0.0
        %1868 = vmatprep.subr.mxu0 0.0
        %1869 = vmatpush1.msra.mxu0 0.0
        %1870 = vmatprep.subr.mxu0 0.0
        %1871 = vmatpush1.msra.mxu0 0.0
        %1872 = vmatprep.subr.mxu0 0.0
        %1873 = vmatpush1.msra.mxu0 0.0
        %1874 = vmatprep.subr.mxu0 0.0
        %1875 = vmatpush1.msra.mxu0 0.0
        %1876 = vmatprep.subr.mxu0 0.0
        %1877 = vmatpush1.msra.mxu0 0.0
        %1878 = vmatprep.subr.mxu0 0.0
        %1879 = vmatpush1.msra.mxu0 0.0
        %1880 = vmatprep.subr.mxu0 0.0
        %1881 = vmatpush1.msra.mxu0 0.0
        %1882 = vmatprep.subr.mxu0 0.0
        %1883 = vmatpush1.msra.mxu0 0.0
        %1884 = vmatprep.subr.mxu0 0.0
        %1885 = vmatpush1.msra.mxu0 0.0
        %1886 = vmatprep.subr.mxu0 0.0
        %1887 = vmatpush1.msra.mxu0 0.0
        %1888 = vmatprep.subr.mxu0 0.0
        %1889 = vmatpush1.msra.mxu0 0.0
        %1890 = vmatprep.subr.mxu0 0.0
        %1891 = vmatpush1.msra.mxu0 0.0
        %1892 = vmatprep.subr.mxu0 0.0
        %1893 = vmatpush1.msra.mxu0 0.0
        %1894 = vmatprep.subr.mxu0 0.0
        %1895 = vmatpush1.msra.mxu0 0.0
        %1896 = vmatprep.subr.mxu0 0.0
        %1897 = vmatpush1.msra.mxu0 0.0
        %1898 = vmatprep.mubr.f32.mxu0 0.0
        %1899 = vmatmul.mubr.f32.gmra.mrb[0].mxu0 %v1832
        %v1900 = vpop.f32.mrb[0].mxu0
        %v1901 = vadd.f32 0.0, %v1900
        %v1902 = vpop.f32.mrb[0].mxu0
        %1903 = vdwg.mxu0
        %v1904 = vrcp.pop %v1827
        %v1905 = vmul.f32 %v1901, %v1904
        %v1907 = vsel %vm1268, %v1905, 0
        %1909 = vmatprep.subr.mxu0 0.0
        %1910 = vmatpush1.msra.mxu0 %v1239
        %1911 = vmatprep.subr.mxu0 0.0
        %1912 = vmatpush1.msra.mxu0 0.0
        %1913 = vmatprep.subr.mxu0 0.0
        %1914 = vmatpush1.msra.mxu0 0.0
        %1915 = vmatprep.subr.mxu0 0.0
        %1916 = vmatpush1.msra.mxu0 0.0
        %1917 = vmatprep.subr.mxu0 0.0
        %1918 = vmatpush1.msra.mxu0 0.0
        %1919 = vmatprep.subr.mxu0 0.0
        %1920 = vmatpush1.msra.mxu0 0.0
        %1921 = vmatprep.subr.mxu0 0.0
        %1922 = vmatpush1.msra.mxu0 0.0
        %1923 = vmatprep.subr.mxu0 0.0
        %1924 = vmatpush1.msra.mxu0 0.0
        %1925 = vmatprep.subr.mxu0 0.0
        %1926 = vmatpush1.msra.mxu0 0.0
        %1927 = vmatprep.subr.mxu0 0.0
        %1928 = vmatpush1.msra.mxu0 0.0
        %1929 = vmatprep.subr.mxu0 0.0
        %1930 = vmatpush1.msra.mxu0 0.0
        %1931 = vmatprep.subr.mxu0 0.0
        %1932 = vmatpush1.msra.mxu0 0.0
        %1933 = vmatprep.subr.mxu0 0.0
        %1934 = vmatpush1.msra.mxu0 0.0
        %1935 = vmatprep.subr.mxu0 0.0
        %1936 = vmatpush1.msra.mxu0 0.0
        %1937 = vmatprep.subr.mxu0 0.0
        %1938 = vmatpush1.msra.mxu0 0.0
        %1939 = vmatprep.subr.mxu0 0.0
        %1940 = vmatpush1.msra.mxu0 0.0
        %1941 = vmatprep.subr.mxu0 0.0
        %1942 = vmatpush1.msra.mxu0 0.0
        %1943 = vmatprep.subr.mxu0 0.0
        %1944 = vmatpush1.msra.mxu0 0.0
        %1945 = vmatprep.subr.mxu0 0.0
        %1946 = vmatpush1.msra.mxu0 0.0
        %1947 = vmatprep.subr.mxu0 0.0
        %1948 = vmatpush1.msra.mxu0 0.0
        %1949 = vmatprep.subr.mxu0 0.0
        %1950 = vmatpush1.msra.mxu0 0.0
        %1951 = vmatprep.subr.mxu0 0.0
        %1952 = vmatpush1.msra.mxu0 0.0
        %1953 = vmatprep.subr.mxu0 0.0
        %1954 = vmatpush1.msra.mxu0 0.0
        %1955 = vmatprep.subr.mxu0 0.0
        %1956 = vmatpush1.msra.mxu0 0.0
        %1957 = vmatprep.subr.mxu0 0.0
        %1958 = vmatpush1.msra.mxu0 0.0
        %1959 = vmatprep.subr.mxu0 0.0
        %1960 = vmatpush1.msra.mxu0 0.0
        %1961 = vmatprep.subr.mxu0 0.0
        %1962 = vmatpush1.msra.mxu0 0.0
        %1963 = vmatprep.subr.mxu0 0.0
        %1964 = vmatpush1.msra.mxu0 0.0
        %1965 = vmatprep.subr.mxu0 0.0
        %1966 = vmatpush1.msra.mxu0 0.0
        %1967 = vmatprep.subr.mxu0 0.0
        %1968 = vmatpush1.msra.mxu0 0.0
        %1969 = vmatprep.subr.mxu0 0.0
        %1970 = vmatpush1.msra.mxu0 0.0
        %1971 = vmatprep.subr.mxu0 0.0
        %1972 = vmatpush1.msra.mxu0 0.0
        %1973 = vmatprep.mubr.f32.mxu0 0.0
        %1974 = vmatmul.mubr.f32.gmra.mrb[0].mxu0 %v1907
        %v1975 = vpop.f32.mrb[0].mxu0
        %v1976 = vadd.f32 0.0, %v1975
        %v1977 = vpop.f32.mrb[0].mxu0
        %1978 = vdwg.mxu0
        %v1979 = vadd.f32 %v1738, %v1976
        %1980 = vrot.lane.b32.xlu0 %v1267, 104
        %v1981 = vpop.permute.xlu0 %1980
        %1982 = vrot.lane.b32.xlu0 %v1244, 104
        %v1983 = vpop.permute.xlu0 %1982
        %v1984 = vsel %vm1268, %v1981, 0
        %v1986 = vsel %vm1268, %v1983, 0
        %1988 = vmatprep.subr.mxu0 0.0
        %1989 = vmatpush1.xpose.msra.mxu0 %v1986
        %1990 = vmatprep.subr.mxu0 0.0
        %1991 = vmatpush1.xpose.msra.mxu0 0.0
        %1992 = vmatprep.subr.mxu0 0.0
        %1993 = vmatpush1.xpose.msra.mxu0 0.0
        %1994 = vmatprep.subr.mxu0 0.0
        %1995 = vmatpush1.xpose.msra.mxu0 0.0
        %1996 = vmatprep.subr.mxu0 0.0
        %1997 = vmatpush1.xpose.msra.mxu0 0.0
        %1998 = vmatprep.subr.mxu0 0.0
        %1999 = vmatpush1.xpose.msra.mxu0 0.0
        %2000 = vmatprep.subr.mxu0 0.0
        %2001 = vmatpush1.xpose.msra.mxu0 0.0
        %2002 = vmatprep.subr.mxu0 0.0
        %2003 = vmatpush1.xpose.msra.mxu0 0.0
        %2004 = vmatprep.subr.mxu0 0.0
        %2005 = vmatpush1.xpose.msra.mxu0 0.0
        %2006 = vmatprep.subr.mxu0 0.0
        %2007 = vmatpush1.xpose.msra.mxu0 0.0
        %2008 = vmatprep.subr.mxu0 0.0
        %2009 = vmatpush1.xpose.msra.mxu0 0.0
        %2010 = vmatprep.subr.mxu0 0.0
        %2011 = vmatpush1.xpose.msra.mxu0 0.0
        %2012 = vmatprep.subr.mxu0 0.0
        %2013 = vmatpush1.xpose.msra.mxu0 0.0
        %2014 = vmatprep.subr.mxu0 0.0
        %2015 = vmatpush1.xpose.msra.mxu0 0.0
        %2016 = vmatprep.subr.mxu0 0.0
        %2017 = vmatpush1.xpose.msra.mxu0 0.0
        %2018 = vmatprep.subr.mxu0 0.0
        %2019 = vmatpush1.xpose.msra.mxu0 0.0
        %2020 = vmatprep.subr.mxu0 0.0
        %2021 = vmatpush1.xpose.msra.mxu0 0.0
        %2022 = vmatprep.subr.mxu0 0.0
        %2023 = vmatpush1.xpose.msra.mxu0 0.0
        %2024 = vmatprep.subr.mxu0 0.0
        %2025 = vmatpush1.xpose.msra.mxu0 0.0
        %2026 = vmatprep.subr.mxu0 0.0
        %2027 = vmatpush1.xpose.msra.mxu0 0.0
        %2028 = vmatprep.subr.mxu0 0.0
        %2029 = vmatpush1.xpose.msra.mxu0 0.0
        %2030 = vmatprep.subr.mxu0 0.0
        %2031 = vmatpush1.xpose.msra.mxu0 0.0
        %2032 = vmatprep.subr.mxu0 0.0
        %2033 = vmatpush1.xpose.msra.mxu0 0.0
        %2034 = vmatprep.subr.mxu0 0.0
        %2035 = vmatpush1.xpose.msra.mxu0 0.0
        %2036 = vmatprep.subr.mxu0 0.0
        %2037 = vmatpush1.xpose.msra.mxu0 0.0
        %2038 = vmatprep.subr.mxu0 0.0
        %2039 = vmatpush1.xpose.msra.mxu0 0.0
        %2040 = vmatprep.subr.mxu0 0.0
        %2041 = vmatpush1.xpose.msra.mxu0 0.0
        %2042 = vmatprep.subr.mxu0 0.0
        %2043 = vmatpush1.xpose.msra.mxu0 0.0
        %2044 = vmatprep.subr.mxu0 0.0
        %2045 = vmatpush1.xpose.msra.mxu0 0.0
        %2046 = vmatprep.subr.mxu0 0.0
        %2047 = vmatpush1.xpose.msra.mxu0 0.0
        %2048 = vmatprep.subr.mxu0 0.0
        %2049 = vmatpush1.xpose.msra.mxu0 0.0
        %2050 = vmatprep.subr.mxu0 0.0
        %2051 = vmatpush1.xpose.msra.mxu0 0.0
        %2052 = vmatprep.mubr.f32.mxu0 0.0
        %2053 = vmatmul.mubr.f32.gmra.mrb[0].mxu0 %v1984
        %v2054 = vpop.f32.mrb[0].mxu0
        %v2055 = vadd.f32 0.0, %v2054
        %v2056 = vpop.f32.mrb[0].mxu0
        %2057 = vdwg.mxu0
        %v2058 = vsel %vm1344, %v2055, -inf
        %2059 = vmax.xlane.f32.xlu0 %v2058
        %v2060 = vpop.xlane.xlu0 %2059
        %v2061 = vsub.f32 %v2055, %v2060
        %v2062 = vmul.f32 %v2061, 1.442695
        %v2063 = vpow.pop %v2062
        %v2064 = vsel %vm1344, %v2063, 0.0
        %2065 = vadd.xlane.f32.xlu0 %v2064
        %v2066 = vpop.xlane.xlu0 %2065
        %2067 = vrot.lane.b32.xlu0 %v1245, 104
        %v2068 = vpop.permute.xlu0 %2067
        %v2071 = vsel %vm1268, %v2063, 0
        %2073 = vmatprep.subr.mxu0 0.0
        %2074 = vmatpush1.msra.mxu0 %v2068
        %2075 = vmatprep.subr.mxu0 0.0
        %2076 = vmatpush1.msra.mxu0 0.0
        %2077 = vmatprep.subr.mxu0 0.0
        %2078 = vmatpush1.msra.mxu0 0.0
        %2079 = vmatprep.subr.mxu0 0.0
        %2080 = vmatpush1.msra.mxu0 0.0
        %2081 = vmatprep.subr.mxu0 0.0
        %2082 = vmatpush1.msra.mxu0 0.0
        %2083 = vmatprep.subr.mxu0 0.0
        %2084 = vmatpush1.msra.mxu0 0.0
        %2085 = vmatprep.subr.mxu0 0.0
        %2086 = vmatpush1.msra.mxu0 0.0
        %2087 = vmatprep.subr.mxu0 0.0
        %2088 = vmatpush1.msra.mxu0 0.0
        %2089 = vmatprep.subr.mxu0 0.0
        %2090 = vmatpush1.msra.mxu0 0.0
        %2091 = vmatprep.subr.mxu0 0.0
        %2092 = vmatpush1.msra.mxu0 0.0
        %2093 = vmatprep.subr.mxu0 0.0
        %2094 = vmatpush1.msra.mxu0 0.0
        %2095 = vmatprep.subr.mxu0 0.0
        %2096 = vmatpush1.msra.mxu0 0.0
        %2097 = vmatprep.subr.mxu0 0.0
        %2098 = vmatpush1.msra.mxu0 0.0
        %2099 = vmatprep.subr.mxu0 0.0
        %2100 = vmatpush1.msra.mxu0 0.0
        %2101 = vmatprep.subr.mxu0 0.0
        %2102 = vmatpush1.msra.mxu0 0.0
        %2103 = vmatprep.subr.mxu0 0.0
        %2104 = vmatpush1.msra.mxu0 0.0
        %2105 = vmatprep.subr.mxu0 0.0
        %2106 = vmatpush1.msra.mxu0 0.0
        %2107 = vmatprep.subr.mxu0 0.0
        %2108 = vmatpush1.msra.mxu0 0.0
        %2109 = vmatprep.subr.mxu0 0.0
        %2110 = vmatpush1.msra.mxu0 0.0
        %2111 = vmatprep.subr.mxu0 0.0
        %2112 = vmatpush1.msra.mxu0 0.0
        %2113 = vmatprep.subr.mxu0 0.0
        %2114 = vmatpush1.msra.mxu0 0.0
        %2115 = vmatprep.subr.mxu0 0.0
        %2116 = vmatpush1.msra.mxu0 0.0
        %2117 = vmatprep.subr.mxu0 0.0
        %2118 = vmatpush1.msra.mxu0 0.0
        %2119 = vmatprep.subr.mxu0 0.0
        %2120 = vmatpush1.msra.mxu0 0.0
        %2121 = vmatprep.subr.mxu0 0.0
        %2122 = vmatpush1.msra.mxu0 0.0
        %2123 = vmatprep.subr.mxu0 0.0
        %2124 = vmatpush1.msra.mxu0 0.0
        %2125 = vmatprep.subr.mxu0 0.0
        %2126 = vmatpush1.msra.mxu0 0.0
        %2127 = vmatprep.subr.mxu0 0.0
        %2128 = vmatpush1.msra.mxu0 0.0
        %2129 = vmatprep.subr.mxu0 0.0
        %2130 = vmatpush1.msra.mxu0 0.0
        %2131 = vmatprep.subr.mxu0 0.0
        %2132 = vmatpush1.msra.mxu0 0.0
        %2133 = vmatprep.subr.mxu0 0.0
        %2134 = vmatpush1.msra.mxu0 0.0
        %2135 = vmatprep.subr.mxu0 0.0
        %2136 = vmatpush1.msra.mxu0 0.0
        %2137 = vmatprep.mubr.f32.mxu0 0.0
        %2138 = vmatmul.mubr.f32.gmra.mrb[0].mxu0 %v2071
        %v2139 = vpop.f32.mrb[0].mxu0
        %v2140 = vadd.f32 0.0, %v2139
        %v2141 = vpop.f32.mrb[0].mxu0
        %2142 = vdwg.mxu0
        %v2143 = vrcp.pop %v2066
        %v2144 = vmul.f32 %v2140, %v2143
        %v2146 = vsel %vm1268, %v2144, 0
        %2148 = vmatprep.subr.mxu0 0.0
        %2149 = vmatpush1.msra.mxu0 %v1240
        %2150 = vmatprep.subr.mxu0 0.0
        %2151 = vmatpush1.msra.mxu0 0.0
        %2152 = vmatprep.subr.mxu0 0.0
        %2153 = vmatpush1.msra.mxu0 0.0
        %2154 = vmatprep.subr.mxu0 0.0
        %2155 = vmatpush1.msra.mxu0 0.0
        %2156 = vmatprep.subr.mxu0 0.0
        %2157 = vmatpush1.msra.mxu0 0.0
        %2158 = vmatprep.subr.mxu0 0.0
        %2159 = vmatpush1.msra.mxu0 0.0
        %2160 = vmatprep.subr.mxu0 0.0
        %2161 = vmatpush1.msra.mxu0 0.0
        %2162 = vmatprep.subr.mxu0 0.0
        %2163 = vmatpush1.msra.mxu0 0.0
        %2164 = vmatprep.subr.mxu0 0.0
        %2165 = vmatpush1.msra.mxu0 0.0
        %2166 = vmatprep.subr.mxu0 0.0
        %2167 = vmatpush1.msra.mxu0 0.0
        %2168 = vmatprep.subr.mxu0 0.0
        %2169 = vmatpush1.msra.mxu0 0.0
        %2170 = vmatprep.subr.mxu0 0.0
        %2171 = vmatpush1.msra.mxu0 0.0
        %2172 = vmatprep.subr.mxu0 0.0
        %2173 = vmatpush1.msra.mxu0 0.0
        %2174 = vmatprep.subr.mxu0 0.0
        %2175 = vmatpush1.msra.mxu0 0.0
        %2176 = vmatprep.subr.mxu0 0.0
        %2177 = vmatpush1.msra.mxu0 0.0
        %2178 = vmatprep.subr.mxu0 0.0
        %2179 = vmatpush1.msra.mxu0 0.0
        %2180 = vmatprep.subr.mxu0 0.0
        %2181 = vmatpush1.msra.mxu0 0.0
        %2182 = vmatprep.subr.mxu0 0.0
        %2183 = vmatpush1.msra.mxu0 0.0
        %2184 = vmatprep.subr.mxu0 0.0
        %2185 = vmatpush1.msra.mxu0 0.0
        %2186 = vmatprep.subr.mxu0 0.0
        %2187 = vmatpush1.msra.mxu0 0.0
        %2188 = vmatprep.subr.mxu0 0.0
        %2189 = vmatpush1.msra.mxu0 0.0
        %2190 = vmatprep.subr.mxu0 0.0
        %2191 = vmatpush1.msra.mxu0 0.0
        %2192 = vmatprep.subr.mxu0 0.0
        %2193 = vmatpush1.msra.mxu0 0.0
        %2194 = vmatprep.subr.mxu0 0.0
        %2195 = vmatpush1.msra.mxu0 0.0
        %2196 = vmatprep.subr.mxu0 0.0
        %2197 = vmatpush1.msra.mxu0 0.0
        %2198 = vmatprep.subr.mxu0 0.0
        %2199 = vmatpush1.msra.mxu0 0.0
        %2200 = vmatprep.subr.mxu0 0.0
        %2201 = vmatpush1.msra.mxu0 0.0
        %2202 = vmatprep.subr.mxu0 0.0
        %2203 = vmatpush1.msra.mxu0 0.0
        %2204 = vmatprep.subr.mxu0 0.0
        %2205 = vmatpush1.msra.mxu0 0.0
        %2206 = vmatprep.subr.mxu0 0.0
        %2207 = vmatpush1.msra.mxu0 0.0
        %2208 = vmatprep.subr.mxu0 0.0
        %2209 = vmatpush1.msra.mxu0 0.0
        %2210 = vmatprep.subr.mxu0 0.0
        %2211 = vmatpush1.msra.mxu0 0.0
        %2212 = vmatprep.mubr.f32.mxu0 0.0
        %2213 = vmatmul.mubr.f32.gmra.mrb[0].mxu0 %v2146
        %v2214 = vpop.f32.mrb[0].mxu0
        %v2215 = vadd.f32 0.0, %v2214
        %v2216 = vpop.f32.mrb[0].mxu0
        %2217 = vdwg.mxu0
        %v2218 = vadd.f32 %v1979, %v2215
        %v2220 = vrot.slane %v2218, 1
        %v2221 = vrot.slane %v2218, 2
        %v2222 = vrot.slane %v2218, 3
        %v2227 = vadd.f32 %v1101, %v2218
        %v2228 = vadd.f32 %v1102, %v2220
        %v2229 = vadd.f32 %v1103, %v2221
        %v2230 = vadd.f32 %v1104, %v2222
        %v2232 = vlaneseq
        %v2233 = vshrl.u32 %v2232, 7
        %v2234 = vsub.s32 0, %v2233
        %v2235 = vrot.slane %v1241, %v2234
        %v2237 = vadd.f32 %v2227, %v2235
        %v2238 = vadd.f32 %v2228, %v2235
        %v2239 = vadd.f32 %v2229, %v2235
        %v2240 = vadd.f32 %v2230, %v2235
        %v2245 = vrot.slane %v2238, 7
        %v2246 = vsel %vm1262, %v2245, %v2237
        %v2247 = vrot.slane %v2239, 6
        %v2248 = vsel %vm1264, %v2247, %v2246
        %v2249 = vrot.slane %v2240, 5
        %v2250 = vsel %vm1266, %v2249, %v2248
        %vm2252 = vcmask 257024
        %v2253 = vsel %vm2252, %v2250, 0.0
        %2254 = vadd.xlane.f32.xlu0 %v2253
        %v2255 = vpop.xlane.xlu0 %2254
        %v2256 = vrcp.pop 32.0
        %v2257 = vmul.f32 %v2255, %v2256
        %v2259 = vrot.slane %v2257, 1
        %v2260 = vrot.slane %v2257, 2
        %v2261 = vrot.slane %v2257, 3
        %v2266 = vsub.f32 %v2237, %v2257
        %v2267 = vsub.f32 %v2238, %v2259
        %v2268 = vsub.f32 %v2239, %v2260
        %v2269 = vsub.f32 %v2240, %v2261
        %v2270 = vmul.f32 %v2266, %v2266
        %v2271 = vmul.f32 %v2267, %v2267
        %v2272 = vmul.f32 %v2268, %v2268
        %v2273 = vmul.f32 %v2269, %v2269
        %v2278 = vrot.slane %v2271, 7
        %v2279 = vsel %vm1262, %v2278, %v2270
        %v2280 = vrot.slane %v2272, 6
        %v2281 = vsel %vm1264, %v2280, %v2279
        %v2282 = vrot.slane %v2273, 5
        %v2283 = vsel %vm1266, %v2282, %v2281
        %v2285 = vsel %vm2252, %v2283, 0.0
        %2286 = vadd.xlane.f32.xlu0 %v2285
        %v2287 = vpop.xlane.xlu0 %2286
        %v2288 = vmul.f32 %v2287, %v2256
        %v2289 = vadd.f32 %v2288, 1e-05
        %v2290 = vrsqrt.pop %v2289
        %v2292 = vrot.slane %v2290, 1
        %v2293 = vrot.slane %v2290, 2
        %v2294 = vrot.slane %v2290, 3
        %v2299 = vmul.f32 %v2266, %v2290
        %v2300 = vmul.f32 %v2267, %v2292
        %v2301 = vmul.f32 %v2268, %v2293
        %v2302 = vmul.f32 %v2269, %v2294
        %v2304 = vlaneseq
        %v2305 = vshrl.u32 %v2304, 7
        %v2306 = vsub.s32 0, %v2305
        %v2307 = vrot.slane %v1242, %v2306
        %v2309 = vmul.f32 %v2299, %v2307
        %v2310 = vmul.f32 %v2300, %v2307
        %v2311 = vmul.f32 %v2301, %v2307
        %v2312 = vmul.f32 %v2302, %v2307
        %v2314 = vlaneseq
        %v2315 = vshrl.u32 %v2314, 7
        %v2316 = vsub.s32 0, %v2315
        %v2317 = vrot.slane %v1243, %v2316
        %v2319 = vadd.f32 %v2309, %v2317
        %v2320 = vadd.f32 %v2310, %v2317
        %v2321 = vadd.f32 %v2311, %v2317
        %v2322 = vadd.f32 %v2312, %v2317
        %vm2323 = vcmask 253952
        %2324 = vst.msk [vmem:[%s554] sm:$0x1] %vm2323, %v2319
        %2325 = vst.msk [vmem:[%s554 + $0x2] sm:$0x1] %vm2323, %v2320
        %2326 = vst.msk [vmem:[%s554 + $0x4] sm:$0x1] %vm2323, %v2321
        %2327 = vst.msk [vmem:[%s554 + $0x6] sm:$0x1] %vm2323, %v2322
        %s2328 = scalar_lea.vmem [#allocation2], 8
        %v2329 = vld [vmem:[%s2328] sm:$0xff]
        %s2330 = scalar_lea.vmem [#allocation3], 8
        %v2331 = vld [vmem:[%s2330] sm:$0xff]
        %v2332 = vlaneseq
        %v2333 = vshrl.u32 %v2332, 7
        %v2334 = vsub.s32 1, %v2333
        %v2335 = vrot.slane %v1227, %v2334
        %v2336 = vlaneseq
        %v2337 = vshrl.u32 %v2336, 7
        %v2338 = vsub.s32 1, %v2337
        %v2339 = vrot.slane %v1235, %v2338
        %v2340 = vlaneseq
        %v2341 = vshrl.u32 %v2340, 7
        %v2342 = vsub.s32 1, %v2341
        %v2343 = vrot.slane %v1234, %v2342
        %v2344 = vlaneseq
        %v2345 = vshrl.u32 %v2344, 7
        %v2346 = vsub.s32 1, %v2345
        %v2347 = vrot.slane %v1236, %v2346
        %v2348 = vsel %vm1262, %v2339, %v2335
        %v2349 = vsel %vm1264, %v2343, %v2348
        %v2350 = vsel %vm1266, %v2347, %v2349
        %v2351 = vsel %vm1268, %v2350, 0
        %v2354 = vsel %vm1268, %v2329, 0
        %2356 = vmatprep.subr.mxu0 0.0
        %2357 = vmatpush1.xpose.msra.mxu0 %v2354
        %2358 = vmatprep.subr.mxu0 0.0
        %2359 = vmatpush1.xpose.msra.mxu0 0.0
        %2360 = vmatprep.subr.mxu0 0.0
        %2361 = vmatpush1.xpose.msra.mxu0 0.0
        %2362 = vmatprep.subr.mxu0 0.0
        %2363 = vmatpush1.xpose.msra.mxu0 0.0
        %2364 = vmatprep.subr.mxu0 0.0
        %2365 = vmatpush1.xpose.msra.mxu0 0.0
        %2366 = vmatprep.subr.mxu0 0.0
        %2367 = vmatpush1.xpose.msra.mxu0 0.0
        %2368 = vmatprep.subr.mxu0 0.0
        %2369 = vmatpush1.xpose.msra.mxu0 0.0
        %2370 = vmatprep.subr.mxu0 0.0
        %2371 = vmatpush1.xpose.msra.mxu0 0.0
        %2372 = vmatprep.subr.mxu0 0.0
        %2373 = vmatpush1.xpose.msra.mxu0 0.0
        %2374 = vmatprep.subr.mxu0 0.0
        %2375 = vmatpush1.xpose.msra.mxu0 0.0
        %2376 = vmatprep.subr.mxu0 0.0
        %2377 = vmatpush1.xpose.msra.mxu0 0.0
        %2378 = vmatprep.subr.mxu0 0.0
        %2379 = vmatpush1.xpose.msra.mxu0 0.0
        %2380 = vmatprep.subr.mxu0 0.0
        %2381 = vmatpush1.xpose.msra.mxu0 0.0
        %2382 = vmatprep.subr.mxu0 0.0
        %2383 = vmatpush1.xpose.msra.mxu0 0.0
        %2384 = vmatprep.subr.mxu0 0.0
        %2385 = vmatpush1.xpose.msra.mxu0 0.0
        %2386 = vmatprep.subr.mxu0 0.0
        %2387 = vmatpush1.xpose.msra.mxu0 0.0
        %2388 = vmatprep.subr.mxu0 0.0
        %2389 = vmatpush1.xpose.msra.mxu0 0.0
        %2390 = vmatprep.subr.mxu0 0.0
        %2391 = vmatpush1.xpose.msra.mxu0 0.0
        %2392 = vmatprep.subr.mxu0 0.0
        %2393 = vmatpush1.xpose.msra.mxu0 0.0
        %2394 = vmatprep.subr.mxu0 0.0
        %2395 = vmatpush1.xpose.msra.mxu0 0.0
        %2396 = vmatprep.subr.mxu0 0.0
        %2397 = vmatpush1.xpose.msra.mxu0 0.0
        %2398 = vmatprep.subr.mxu0 0.0
        %2399 = vmatpush1.xpose.msra.mxu0 0.0
        %2400 = vmatprep.subr.mxu0 0.0
        %2401 = vmatpush1.xpose.msra.mxu0 0.0
        %2402 = vmatprep.subr.mxu0 0.0
        %2403 = vmatpush1.xpose.msra.mxu0 0.0
        %2404 = vmatprep.subr.mxu0 0.0
        %2405 = vmatpush1.xpose.msra.mxu0 0.0
        %2406 = vmatprep.subr.mxu0 0.0
        %2407 = vmatpush1.xpose.msra.mxu0 0.0
        %2408 = vmatprep.subr.mxu0 0.0
        %2409 = vmatpush1.xpose.msra.mxu0 0.0
        %2410 = vmatprep.subr.mxu0 0.0
        %2411 = vmatpush1.xpose.msra.mxu0 0.0
        %2412 = vmatprep.subr.mxu0 0.0
        %2413 = vmatpush1.xpose.msra.mxu0 0.0
        %2414 = vmatprep.subr.mxu0 0.0
        %2415 = vmatpush1.xpose.msra.mxu0 0.0
        %2416 = vmatprep.subr.mxu0 0.0
        %2417 = vmatpush1.xpose.msra.mxu0 0.0
        %2418 = vmatprep.subr.mxu0 0.0
        %2419 = vmatpush1.xpose.msra.mxu0 0.0
        %2420 = vmatprep.mubr.f32.mxu0 0.0
        %2421 = vmatmul.mubr.f32.gmra.mrb[0].mxu0 %v2351
        %v2422 = vpop.f32.mrb[0].mxu0
        %v2423 = vadd.f32 0.0, %v2422
        %v2424 = vpop.f32.mrb[0].mxu0
        %2425 = vdwg.mxu0
        %v2426 = vsel %vm1344, %v2423, -inf
        %2427 = vmax.xlane.f32.xlu0 %v2426
        %v2428 = vpop.xlane.xlu0 %2427
        %v2429 = vsub.f32 %v2423, %v2428
        %v2430 = vmul.f32 %v2429, 1.442695
        %v2431 = vpow.pop %v2430
        %v2432 = vsel %vm1344, %v2431, 0.0
        %2433 = vadd.xlane.f32.xlu0 %v2432
        %v2434 = vpop.xlane.xlu0 %2433
        %v2436 = vsel %vm1268, %v2431, 0
        %2438 = vmatprep.subr.mxu0 0.0
        %2439 = vmatpush1.msra.mxu0 %v2331
        %2440 = vmatprep.subr.mxu0 0.0
        %2441 = vmatpush1.msra.mxu0 0.0
        %2442 = vmatprep.subr.mxu0 0.0
        %2443 = vmatpush1.msra.mxu0 0.0
        %2444 = vmatprep.subr.mxu0 0.0
        %2445 = vmatpush1.msra.mxu0 0.0
        %2446 = vmatprep.subr.mxu0 0.0
        %2447 = vmatpush1.msra.mxu0 0.0
        %2448 = vmatprep.subr.mxu0 0.0
        %2449 = vmatpush1.msra.mxu0 0.0
        %2450 = vmatprep.subr.mxu0 0.0
        %2451 = vmatpush1.msra.mxu0 0.0
        %2452 = vmatprep.subr.mxu0 0.0
        %2453 = vmatpush1.msra.mxu0 0.0
        %2454 = vmatprep.subr.mxu0 0.0
        %2455 = vmatpush1.msra.mxu0 0.0
        %2456 = vmatprep.subr.mxu0 0.0
        %2457 = vmatpush1.msra.mxu0 0.0
        %2458 = vmatprep.subr.mxu0 0.0
        %2459 = vmatpush1.msra.mxu0 0.0
        %2460 = vmatprep.subr.mxu0 0.0
        %2461 = vmatpush1.msra.mxu0 0.0
        %2462 = vmatprep.subr.mxu0 0.0
        %2463 = vmatpush1.msra.mxu0 0.0
        %2464 = vmatprep.subr.mxu0 0.0
        %2465 = vmatpush1.msra.mxu0 0.0
        %2466 = vmatprep.subr.mxu0 0.0
        %2467 = vmatpush1.msra.mxu0 0.0
        %2468 = vmatprep.subr.mxu0 0.0
        %2469 = vmatpush1.msra.mxu0 0.0
        %2470 = vmatprep.subr.mxu0 0.0
        %2471 = vmatpush1.msra.mxu0 0.0
        %2472 = vmatprep.subr.mxu0 0.0
        %2473 = vmatpush1.msra.mxu0 0.0
        %2474 = vmatprep.subr.mxu0 0.0
        %2475 = vmatpush1.msra.mxu0 0.0
        %2476 = vmatprep.subr.mxu0 0.0
        %2477 = vmatpush1.msra.mxu0 0.0
        %2478 = vmatprep.subr.mxu0 0.0
        %2479 = vmatpush1.msra.mxu0 0.0
        %2480 = vmatprep.subr.mxu0 0.0
        %2481 = vmatpush1.msra.mxu0 0.0
        %2482 = vmatprep.subr.mxu0 0.0
        %2483 = vmatpush1.msra.mxu0 0.0
        %2484 = vmatprep.subr.mxu0 0.0
        %2485 = vmatpush1.msra.mxu0 0.0
        %2486 = vmatprep.subr.mxu0 0.0
        %2487 = vmatpush1.msra.mxu0 0.0
        %2488 = vmatprep.subr.mxu0 0.0
        %2489 = vmatpush1.msra.mxu0 0.0
        %2490 = vmatprep.subr.mxu0 0.0
        %2491 = vmatpush1.msra.mxu0 0.0
        %2492 = vmatprep.subr.mxu0 0.0
        %2493 = vmatpush1.msra.mxu0 0.0
        %2494 = vmatprep.subr.mxu0 0.0
        %2495 = vmatpush1.msra.mxu0 0.0
        %2496 = vmatprep.subr.mxu0 0.0
        %2497 = vmatpush1.msra.mxu0 0.0
        %2498 = vmatprep.subr.mxu0 0.0
        %2499 = vmatpush1.msra.mxu0 0.0
        %2500 = vmatprep.subr.mxu0 0.0
        %2501 = vmatpush1.msra.mxu0 0.0
        %2502 = vmatprep.mubr.f32.mxu0 0.0
        %2503 = vmatmul.mubr.f32.gmra.mrb[0].mxu0 %v2436
        %v2504 = vpop.f32.mrb[0].mxu0
        %v2505 = vadd.f32 0.0, %v2504
        %v2506 = vpop.f32.mrb[0].mxu0
        %2507 = vdwg.mxu0
        %v2508 = vrcp.pop %v2434
        %v2509 = vmul.f32 %v2505, %v2508
        %2510 = vrot.lane.b32.xlu0 %v2350, 120
        %v2511 = vpop.permute.xlu0 %2510
        %2512 = vrot.lane.b32.xlu0 %v2329, 120
        %v2513 = vpop.permute.xlu0 %2512
        %v2514 = vsel %vm1268, %v2511, 0
        %v2516 = vsel %vm1268, %v2513, 0
        %2518 = vmatprep.subr.mxu0 0.0
        %2519 = vmatpush1.xpose.msra.mxu0 %v2516
        %2520 = vmatprep.subr.mxu0 0.0
        %2521 = vmatpush1.xpose.msra.mxu0 0.0
        %2522 = vmatprep.subr.mxu0 0.0
        %2523 = vmatpush1.xpose.msra.mxu0 0.0
        %2524 = vmatprep.subr.mxu0 0.0
        %2525 = vmatpush1.xpose.msra.mxu0 0.0
        %2526 = vmatprep.subr.mxu0 0.0
        %2527 = vmatpush1.xpose.msra.mxu0 0.0
        %2528 = vmatprep.subr.mxu0 0.0
        %2529 = vmatpush1.xpose.msra.mxu0 0.0
        %2530 = vmatprep.subr.mxu0 0.0
        %2531 = vmatpush1.xpose.msra.mxu0 0.0
        %2532 = vmatprep.subr.mxu0 0.0
        %2533 = vmatpush1.xpose.msra.mxu0 0.0
        %2534 = vmatprep.subr.mxu0 0.0
        %2535 = vmatpush1.xpose.msra.mxu0 0.0
        %2536 = vmatprep.subr.mxu0 0.0
        %2537 = vmatpush1.xpose.msra.mxu0 0.0
        %2538 = vmatprep.subr.mxu0 0.0
        %2539 = vmatpush1.xpose.msra.mxu0 0.0
        %2540 = vmatprep.subr.mxu0 0.0
        %2541 = vmatpush1.xpose.msra.mxu0 0.0
        %2542 = vmatprep.subr.mxu0 0.0
        %2543 = vmatpush1.xpose.msra.mxu0 0.0
        %2544 = vmatprep.subr.mxu0 0.0
        %2545 = vmatpush1.xpose.msra.mxu0 0.0
        %2546 = vmatprep.subr.mxu0 0.0
        %2547 = vmatpush1.xpose.msra.mxu0 0.0
        %2548 = vmatprep.subr.mxu0 0.0
        %2549 = vmatpush1.xpose.msra.mxu0 0.0
        %2550 = vmatprep.subr.mxu0 0.0
        %2551 = vmatpush1.xpose.msra.mxu0 0.0
        %2552 = vmatprep.subr.mxu0 0.0
        %2553 = vmatpush1.xpose.msra.mxu0 0.0
        %2554 = vmatprep.subr.mxu0 0.0
        %2555 = vmatpush1.xpose.msra.mxu0 0.0
        %2556 = vmatprep.subr.mxu0 0.0
        %2557 = vmatpush1.xpose.msra.mxu0 0.0
        %2558 = vmatprep.subr.mxu0 0.0
        %2559 = vmatpush1.xpose.msra.mxu0 0.0
        %2560 = vmatprep.subr.mxu0 0.0
        %2561 = vmatpush1.xpose.msra.mxu0 0.0
        %2562 = vmatprep.subr.mxu0 0.0
        %2563 = vmatpush1.xpose.msra.mxu0 0.0
        %2564 = vmatprep.subr.mxu0 0.0
        %2565 = vmatpush1.xpose.msra.mxu0 0.0
        %2566 = vmatprep.subr.mxu0 0.0
        %2567 = vmatpush1.xpose.msra.mxu0 0.0
        %2568 = vmatprep.subr.mxu0 0.0
        %2569 = vmatpush1.xpose.msra.mxu0 0.0
        %2570 = vmatprep.subr.mxu0 0.0
        %2571 = vmatpush1.xpose.msra.mxu0 0.0
        %2572 = vmatprep.subr.mxu0 0.0
        %2573 = vmatpush1.xpose.msra.mxu0 0.0
        %2574 = vmatprep.subr.mxu0 0.0
        %2575 = vmatpush1.xpose.msra.mxu0 0.0
        %2576 = vmatprep.subr.mxu0 0.0
        %2577 = vmatpush1.xpose.msra.mxu0 0.0
        %2578 = vmatprep.subr.mxu0 0.0
        %2579 = vmatpush1.xpose.msra.mxu0 0.0
        %2580 = vmatprep.subr.mxu0 0.0
        %2581 = vmatpush1.xpose.msra.mxu0 0.0
        %2582 = vmatprep.mubr.f32.mxu0 0.0
        %2583 = vmatmul.mubr.f32.gmra.mrb[0].mxu0 %v2514
        %v2584 = vpop.f32.mrb[0].mxu0
        %v2585 = vadd.f32 0.0, %v2584
        %v2586 = vpop.f32.mrb[0].mxu0
        %2587 = vdwg.mxu0
        %v2588 = vsel %vm1344, %v2585, -inf
        %2589 = vmax.xlane.f32.xlu0 %v2588
        %v2590 = vpop.xlane.xlu0 %2589
        %v2591 = vsub.f32 %v2585, %v2590
        %v2592 = vmul.f32 %v2591, 1.442695
        %v2593 = vpow.pop %v2592
        %v2594 = vsel %vm1344, %v2593, 0.0
        %2595 = vadd.xlane.f32.xlu0 %v2594
        %v2596 = vpop.xlane.xlu0 %2595
        %2598 = vrot.lane.b32.xlu0 %v2331, 120
        %v2599 = vpop.permute.xlu0 %2598
        %v2602 = vsel %vm1268, %v2593, 0
        %2604 = vmatprep.subr.mxu0 0.0
        %2605 = vmatpush1.msra.mxu0 %v2599
        %2606 = vmatprep.subr.mxu0 0.0
        %2607 = vmatpush1.msra.mxu0 0.0
        %2608 = vmatprep.subr.mxu0 0.0
        %2609 = vmatpush1.msra.mxu0 0.0
        %2610 = vmatprep.subr.mxu0 0.0
        %2611 = vmatpush1.msra.mxu0 0.0
        %2612 = vmatprep.subr.mxu0 0.0
        %2613 = vmatpush1.msra.mxu0 0.0
        %2614 = vmatprep.subr.mxu0 0.0
        %2615 = vmatpush1.msra.mxu0 0.0
        %2616 = vmatprep.subr.mxu0 0.0
        %2617 = vmatpush1.msra.mxu0 0.0
        %2618 = vmatprep.subr.mxu0 0.0
        %2619 = vmatpush1.msra.mxu0 0.0
        %2620 = vmatprep.subr.mxu0 0.0
        %2621 = vmatpush1.msra.mxu0 0.0
        %2622 = vmatprep.subr.mxu0 0.0
        %2623 = vmatpush1.msra.mxu0 0.0
        %2624 = vmatprep.subr.mxu0 0.0
        %2625 = vmatpush1.msra.mxu0 0.0
        %2626 = vmatprep.subr.mxu0 0.0
        %2627 = vmatpush1.msra.mxu0 0.0
        %2628 = vmatprep.subr.mxu0 0.0
        %2629 = vmatpush1.msra.mxu0 0.0
        %2630 = vmatprep.subr.mxu0 0.0
        %2631 = vmatpush1.msra.mxu0 0.0
        %2632 = vmatprep.subr.mxu0 0.0
        %2633 = vmatpush1.msra.mxu0 0.0
        %2634 = vmatprep.subr.mxu0 0.0
        %2635 = vmatpush1.msra.mxu0 0.0
        %2636 = vmatprep.subr.mxu0 0.0
        %2637 = vmatpush1.msra.mxu0 0.0
        %2638 = vmatprep.subr.mxu0 0.0
        %2639 = vmatpush1.msra.mxu0 0.0
        %2640 = vmatprep.subr.mxu0 0.0
        %2641 = vmatpush1.msra.mxu0 0.0
        %2642 = vmatprep.subr.mxu0 0.0
        %2643 = vmatpush1.msra.mxu0 0.0
        %2644 = vmatprep.subr.mxu0 0.0
        %2645 = vmatpush1.msra.mxu0 0.0
        %2646 = vmatprep.subr.mxu0 0.0
        %2647 = vmatpush1.msra.mxu0 0.0
        %2648 = vmatprep.subr.mxu0 0.0
        %2649 = vmatpush1.msra.mxu0 0.0
        %2650 = vmatprep.subr.mxu0 0.0
        %2651 = vmatpush1.msra.mxu0 0.0
        %2652 = vmatprep.subr.mxu0 0.0
        %2653 = vmatpush1.msra.mxu0 0.0
        %2654 = vmatprep.subr.mxu0 0.0
        %2655 = vmatpush1.msra.mxu0 0.0
        %2656 = vmatprep.subr.mxu0 0.0
        %2657 = vmatpush1.msra.mxu0 0.0
        %2658 = vmatprep.subr.mxu0 0.0
        %2659 = vmatpush1.msra.mxu0 0.0
        %2660 = vmatprep.subr.mxu0 0.0
        %2661 = vmatpush1.msra.mxu0 0.0
        %2662 = vmatprep.subr.mxu0 0.0
        %2663 = vmatpush1.msra.mxu0 0.0
        %2664 = vmatprep.subr.mxu0 0.0
        %2665 = vmatpush1.msra.mxu0 0.0
        %2666 = vmatprep.subr.mxu0 0.0
        %2667 = vmatpush1.msra.mxu0 0.0
        %2668 = vmatprep.mubr.f32.mxu0 0.0
        %2669 = vmatmul.mubr.f32.gmra.mrb[0].mxu0 %v2602
        %v2670 = vpop.f32.mrb[0].mxu0
        %v2671 = vadd.f32 0.0, %v2670
        %v2672 = vpop.f32.mrb[0].mxu0
        %2673 = vdwg.mxu0
        %v2674 = vrcp.pop %v2596
        %v2675 = vmul.f32 %v2671, %v2674
        %v2677 = vsel %vm1268, %v2675, 0
        %2679 = vmatprep.subr.mxu0 0.0
        %2680 = vmatpush1.msra.mxu0 %v1238
        %2681 = vmatprep.subr.mxu0 0.0
        %2682 = vmatpush1.msra.mxu0 0.0
        %2683 = vmatprep.subr.mxu0 0.0
        %2684 = vmatpush1.msra.mxu0 0.0
        %2685 = vmatprep.subr.mxu0 0.0
        %2686 = vmatpush1.msra.mxu0 0.0
        %2687 = vmatprep.subr.mxu0 0.0
        %2688 = vmatpush1.msra.mxu0 0.0
        %2689 = vmatprep.subr.mxu0 0.0
        %2690 = vmatpush1.msra.mxu0 0.0
        %2691 = vmatprep.subr.mxu0 0.0
        %2692 = vmatpush1.msra.mxu0 0.0
        %2693 = vmatprep.subr.mxu0 0.0
        %2694 = vmatpush1.msra.mxu0 0.0
        %2695 = vmatprep.subr.mxu0 0.0
        %2696 = vmatpush1.msra.mxu0 0.0
        %2697 = vmatprep.subr.mxu0 0.0
        %2698 = vmatpush1.msra.mxu0 0.0
        %2699 = vmatprep.subr.mxu0 0.0
        %2700 = vmatpush1.msra.mxu0 0.0
        %2701 = vmatprep.subr.mxu0 0.0
        %2702 = vmatpush1.msra.mxu0 0.0
        %2703 = vmatprep.subr.mxu0 0.0
        %2704 = vmatpush1.msra.mxu0 0.0
        %2705 = vmatprep.subr.mxu0 0.0
        %2706 = vmatpush1.msra.mxu0 0.0
        %2707 = vmatprep.subr.mxu0 0.0
        %2708 = vmatpush1.msra.mxu0 0.0
        %2709 = vmatprep.subr.mxu0 0.0
        %2710 = vmatpush1.msra.mxu0 0.0
        %2711 = vmatprep.subr.mxu0 0.0
        %2712 = vmatpush1.msra.mxu0 0.0
        %2713 = vmatprep.subr.mxu0 0.0
        %2714 = vmatpush1.msra.mxu0 0.0
        %2715 = vmatprep.subr.mxu0 0.0
        %2716 = vmatpush1.msra.mxu0 0.0
        %2717 = vmatprep.subr.mxu0 0.0
        %2718 = vmatpush1.msra.mxu0 0.0
        %2719 = vmatprep.subr.mxu0 0.0
        %2720 = vmatpush1.msra.mxu0 0.0
        %2721 = vmatprep.subr.mxu0 0.0
        %2722 = vmatpush1.msra.mxu0 0.0
        %2723 = vmatprep.subr.mxu0 0.0
        %2724 = vmatpush1.msra.mxu0 0.0
        %2725 = vmatprep.subr.mxu0 0.0
        %2726 = vmatpush1.msra.mxu0 0.0
        %2727 = vmatprep.subr.mxu0 0.0
        %2728 = vmatpush1.msra.mxu0 0.0
        %2729 = vmatprep.subr.mxu0 0.0
        %2730 = vmatpush1.msra.mxu0 0.0
        %2731 = vmatprep.subr.mxu0 0.0
        %2732 = vmatpush1.msra.mxu0 0.0
        %2733 = vmatprep.subr.mxu0 0.0
        %2734 = vmatpush1.msra.mxu0 0.0
        %2735 = vmatprep.subr.mxu0 0.0
        %2736 = vmatpush1.msra.mxu0 0.0
        %2737 = vmatprep.subr.mxu0 0.0
        %2738 = vmatpush1.msra.mxu0 0.0
        %2739 = vmatprep.subr.mxu0 0.0
        %2740 = vmatpush1.msra.mxu0 0.0
        %2741 = vmatprep.subr.mxu0 0.0
        %2742 = vmatpush1.msra.mxu0 0.0
        %2743 = vmatprep.mubr.f32.mxu0 0.0
        %2744 = vmatmul.mubr.f32.gmra.mrb[0].mxu0 %v2677
        %v2745 = vpop.f32.mrb[0].mxu0
        %v2746 = vadd.f32 0.0, %v2745
        %v2747 = vpop.f32.mrb[0].mxu0
        %2748 = vdwg.mxu0
        %v2750 = vsel %vm1268, %v2509, 0
        %2752 = vmatprep.subr.mxu0 0.0
        %2753 = vmatpush1.msra.mxu0 %v1237
        %2754 = vmatprep.subr.mxu0 0.0
        %2755 = vmatpush1.msra.mxu0 0.0
        %2756 = vmatprep.subr.mxu0 0.0
        %2757 = vmatpush1.msra.mxu0 0.0
        %2758 = vmatprep.subr.mxu0 0.0
        %2759 = vmatpush1.msra.mxu0 0.0
        %2760 = vmatprep.subr.mxu0 0.0
        %2761 = vmatpush1.msra.mxu0 0.0
        %2762 = vmatprep.subr.mxu0 0.0
        %2763 = vmatpush1.msra.mxu0 0.0
        %2764 = vmatprep.subr.mxu0 0.0
        %2765 = vmatpush1.msra.mxu0 0.0
        %2766 = vmatprep.subr.mxu0 0.0
        %2767 = vmatpush1.msra.mxu0 0.0
        %2768 = vmatprep.subr.mxu0 0.0
        %2769 = vmatpush1.msra.mxu0 0.0
        %2770 = vmatprep.subr.mxu0 0.0
        %2771 = vmatpush1.msra.mxu0 0.0
        %2772 = vmatprep.subr.mxu0 0.0
        %2773 = vmatpush1.msra.mxu0 0.0
        %2774 = vmatprep.subr.mxu0 0.0
        %2775 = vmatpush1.msra.mxu0 0.0
        %2776 = vmatprep.subr.mxu0 0.0
        %2777 = vmatpush1.msra.mxu0 0.0
        %2778 = vmatprep.subr.mxu0 0.0
        %2779 = vmatpush1.msra.mxu0 0.0
        %2780 = vmatprep.subr.mxu0 0.0
        %2781 = vmatpush1.msra.mxu0 0.0
        %2782 = vmatprep.subr.mxu0 0.0
        %2783 = vmatpush1.msra.mxu0 0.0
        %2784 = vmatprep.subr.mxu0 0.0
        %2785 = vmatpush1.msra.mxu0 0.0
        %2786 = vmatprep.subr.mxu0 0.0
        %2787 = vmatpush1.msra.mxu0 0.0
        %2788 = vmatprep.subr.mxu0 0.0
        %2789 = vmatpush1.msra.mxu0 0.0
        %2790 = vmatprep.subr.mxu0 0.0
        %2791 = vmatpush1.msra.mxu0 0.0
        %2792 = vmatprep.subr.mxu0 0.0
        %2793 = vmatpush1.msra.mxu0 0.0
        %2794 = vmatprep.subr.mxu0 0.0
        %2795 = vmatpush1.msra.mxu0 0.0
        %2796 = vmatprep.subr.mxu0 0.0
        %2797 = vmatpush1.msra.mxu0 0.0
        %2798 = vmatprep.subr.mxu0 0.0
        %2799 = vmatpush1.msra.mxu0 0.0
        %2800 = vmatprep.subr.mxu0 0.0
        %2801 = vmatpush1.msra.mxu0 0.0
        %2802 = vmatprep.subr.mxu0 0.0
        %2803 = vmatpush1.msra.mxu0 0.0
        %2804 = vmatprep.subr.mxu0 0.0
        %2805 = vmatpush1.msra.mxu0 0.0
        %2806 = vmatprep.subr.mxu0 0.0
        %2807 = vmatpush1.msra.mxu0 0.0
        %2808 = vmatprep.subr.mxu0 0.0
        %2809 = vmatpush1.msra.mxu0 0.0
        %2810 = vmatprep.subr.mxu0 0.0
        %2811 = vmatpush1.msra.mxu0 0.0
        %2812 = vmatprep.subr.mxu0 0.0
        %2813 = vmatpush1.msra.mxu0 0.0
        %2814 = vmatprep.subr.mxu0 0.0
        %2815 = vmatpush1.msra.mxu0 0.0
        %2816 = vmatprep.mubr.f32.mxu0 0.0
        %2817 = vmatmul.mubr.f32.gmra.mrb[0].mxu0 %v2750
        %v2818 = vpop.f32.mrb[0].mxu0
        %v2819 = vadd.f32 %v2746, %v2818
        %v2820 = vpop.f32.mrb[0].mxu0
        %2821 = vdwg.mxu0
        %2822 = vrot.lane.b32.xlu0 %v2350, 112
        %v2823 = vpop.permute.xlu0 %2822
        %2824 = vrot.lane.b32.xlu0 %v2329, 112
        %v2825 = vpop.permute.xlu0 %2824
        %v2826 = vsel %vm1268, %v2823, 0
        %v2828 = vsel %vm1268, %v2825, 0
        %2830 = vmatprep.subr.mxu0 0.0
        %2831 = vmatpush1.xpose.msra.mxu0 %v2828
        %2832 = vmatprep.subr.mxu0 0.0
        %2833 = vmatpush1.xpose.msra.mxu0 0.0
        %2834 = vmatprep.subr.mxu0 0.0
        %2835 = vmatpush1.xpose.msra.mxu0 0.0
        %2836 = vmatprep.subr.mxu0 0.0
        %2837 = vmatpush1.xpose.msra.mxu0 0.0
        %2838 = vmatprep.subr.mxu0 0.0
        %2839 = vmatpush1.xpose.msra.mxu0 0.0
        %2840 = vmatprep.subr.mxu0 0.0
        %2841 = vmatpush1.xpose.msra.mxu0 0.0
        %2842 = vmatprep.subr.mxu0 0.0
        %2843 = vmatpush1.xpose.msra.mxu0 0.0
        %2844 = vmatprep.subr.mxu0 0.0
        %2845 = vmatpush1.xpose.msra.mxu0 0.0
        %2846 = vmatprep.subr.mxu0 0.0
        %2847 = vmatpush1.xpose.msra.mxu0 0.0
        %2848 = vmatprep.subr.mxu0 0.0
        %2849 = vmatpush1.xpose.msra.mxu0 0.0
        %2850 = vmatprep.subr.mxu0 0.0
        %2851 = vmatpush1.xpose.msra.mxu0 0.0
        %2852 = vmatprep.subr.mxu0 0.0
        %2853 = vmatpush1.xpose.msra.mxu0 0.0
        %2854 = vmatprep.subr.mxu0 0.0
        %2855 = vmatpush1.xpose.msra.mxu0 0.0
        %2856 = vmatprep.subr.mxu0 0.0
        %2857 = vmatpush1.xpose.msra.mxu0 0.0
        %2858 = vmatprep.subr.mxu0 0.0
        %2859 = vmatpush1.xpose.msra.mxu0 0.0
        %2860 = vmatprep.subr.mxu0 0.0
        %2861 = vmatpush1.xpose.msra.mxu0 0.0
        %2862 = vmatprep.subr.mxu0 0.0
        %2863 = vmatpush1.xpose.msra.mxu0 0.0
        %2864 = vmatprep.subr.mxu0 0.0
        %2865 = vmatpush1.xpose.msra.mxu0 0.0
        %2866 = vmatprep.subr.mxu0 0.0
        %2867 = vmatpush1.xpose.msra.mxu0 0.0
        %2868 = vmatprep.subr.mxu0 0.0
        %2869 = vmatpush1.xpose.msra.mxu0 0.0
        %2870 = vmatprep.subr.mxu0 0.0
        %2871 = vmatpush1.xpose.msra.mxu0 0.0
        %2872 = vmatprep.subr.mxu0 0.0
        %2873 = vmatpush1.xpose.msra.mxu0 0.0
        %2874 = vmatprep.subr.mxu0 0.0
        %2875 = vmatpush1.xpose.msra.mxu0 0.0
        %2876 = vmatprep.subr.mxu0 0.0
        %2877 = vmatpush1.xpose.msra.mxu0 0.0
        %2878 = vmatprep.subr.mxu0 0.0
        %2879 = vmatpush1.xpose.msra.mxu0 0.0
        %2880 = vmatprep.subr.mxu0 0.0
        %2881 = vmatpush1.xpose.msra.mxu0 0.0
        %2882 = vmatprep.subr.mxu0 0.0
        %2883 = vmatpush1.xpose.msra.mxu0 0.0
        %2884 = vmatprep.subr.mxu0 0.0
        %2885 = vmatpush1.xpose.msra.mxu0 0.0
        %2886 = vmatprep.subr.mxu0 0.0
        %2887 = vmatpush1.xpose.msra.mxu0 0.0
        %2888 = vmatprep.subr.mxu0 0.0
        %2889 = vmatpush1.xpose.msra.mxu0 0.0
        %2890 = vmatprep.subr.mxu0 0.0
        %2891 = vmatpush1.xpose.msra.mxu0 0.0
        %2892 = vmatprep.subr.mxu0 0.0
        %2893 = vmatpush1.xpose.msra.mxu0 0.0
        %2894 = vmatprep.mubr.f32.mxu0 0.0
        %2895 = vmatmul.mubr.f32.gmra.mrb[0].mxu0 %v2826
        %v2896 = vpop.f32.mrb[0].mxu0
        %v2897 = vadd.f32 0.0, %v2896
        %v2898 = vpop.f32.mrb[0].mxu0
        %2899 = vdwg.mxu0
        %v2900 = vsel %vm1344, %v2897, -inf
        %2901 = vmax.xlane.f32.xlu0 %v2900
        %v2902 = vpop.xlane.xlu0 %2901
        %v2903 = vsub.f32 %v2897, %v2902
        %v2904 = vmul.f32 %v2903, 1.442695
        %v2905 = vpow.pop %v2904
        %v2906 = vsel %vm1344, %v2905, 0.0
        %2907 = vadd.xlane.f32.xlu0 %v2906
        %v2908 = vpop.xlane.xlu0 %2907
        %2909 = vrot.lane.b32.xlu0 %v2331, 112
        %v2910 = vpop.permute.xlu0 %2909
        %v2913 = vsel %vm1268, %v2905, 0
        %2915 = vmatprep.subr.mxu0 0.0
        %2916 = vmatpush1.msra.mxu0 %v2910
        %2917 = vmatprep.subr.mxu0 0.0
        %2918 = vmatpush1.msra.mxu0 0.0
        %2919 = vmatprep.subr.mxu0 0.0
        %2920 = vmatpush1.msra.mxu0 0.0
        %2921 = vmatprep.subr.mxu0 0.0
        %2922 = vmatpush1.msra.mxu0 0.0
        %2923 = vmatprep.subr.mxu0 0.0
        %2924 = vmatpush1.msra.mxu0 0.0
        %2925 = vmatprep.subr.mxu0 0.0
        %2926 = vmatpush1.msra.mxu0 0.0
        %2927 = vmatprep.subr.mxu0 0.0
        %2928 = vmatpush1.msra.mxu0 0.0
        %2929 = vmatprep.subr.mxu0 0.0
        %2930 = vmatpush1.msra.mxu0 0.0
        %2931 = vmatprep.subr.mxu0 0.0
        %2932 = vmatpush1.msra.mxu0 0.0
        %2933 = vmatprep.subr.mxu0 0.0
        %2934 = vmatpush1.msra.mxu0 0.0
        %2935 = vmatprep.subr.mxu0 0.0
        %2936 = vmatpush1.msra.mxu0 0.0
        %2937 = vmatprep.subr.mxu0 0.0
        %2938 = vmatpush1.msra.mxu0 0.0
        %2939 = vmatprep.subr.mxu0 0.0
        %2940 = vmatpush1.msra.mxu0 0.0
        %2941 = vmatprep.subr.mxu0 0.0
        %2942 = vmatpush1.msra.mxu0 0.0
        %2943 = vmatprep.subr.mxu0 0.0
        %2944 = vmatpush1.msra.mxu0 0.0
        %2945 = vmatprep.subr.mxu0 0.0
        %2946 = vmatpush1.msra.mxu0 0.0
        %2947 = vmatprep.subr.mxu0 0.0
        %2948 = vmatpush1.msra.mxu0 0.0
        %2949 = vmatprep.subr.mxu0 0.0
        %2950 = vmatpush1.msra.mxu0 0.0
        %2951 = vmatprep.subr.mxu0 0.0
        %2952 = vmatpush1.msra.mxu0 0.0
        %2953 = vmatprep.subr.mxu0 0.0
        %2954 = vmatpush1.msra.mxu0 0.0
        %2955 = vmatprep.subr.mxu0 0.0
        %2956 = vmatpush1.msra.mxu0 0.0
        %2957 = vmatprep.subr.mxu0 0.0
        %2958 = vmatpush1.msra.mxu0 0.0
        %2959 = vmatprep.subr.mxu0 0.0
        %2960 = vmatpush1.msra.mxu0 0.0
        %2961 = vmatprep.subr.mxu0 0.0
        %2962 = vmatpush1.msra.mxu0 0.0
        %2963 = vmatprep.subr.mxu0 0.0
        %2964 = vmatpush1.msra.mxu0 0.0
        %2965 = vmatprep.subr.mxu0 0.0
        %2966 = vmatpush1.msra.mxu0 0.0
        %2967 = vmatprep.subr.mxu0 0.0
        %2968 = vmatpush1.msra.mxu0 0.0
        %2969 = vmatprep.subr.mxu0 0.0
        %2970 = vmatpush1.msra.mxu0 0.0
        %2971 = vmatprep.subr.mxu0 0.0
        %2972 = vmatpush1.msra.mxu0 0.0
        %2973 = vmatprep.subr.mxu0 0.0
        %2974 = vmatpush1.msra.mxu0 0.0
        %2975 = vmatprep.subr.mxu0 0.0
        %2976 = vmatpush1.msra.mxu0 0.0
        %2977 = vmatprep.subr.mxu0 0.0
        %2978 = vmatpush1.msra.mxu0 0.0
        %2979 = vmatprep.mubr.f32.mxu0 0.0
        %2980 = vmatmul.mubr.f32.gmra.mrb[0].mxu0 %v2913
        %v2981 = vpop.f32.mrb[0].mxu0
        %v2982 = vadd.f32 0.0, %v2981
        %v2983 = vpop.f32.mrb[0].mxu0
        %2984 = vdwg.mxu0
        %v2985 = vrcp.pop %v2908
        %v2986 = vmul.f32 %v2982, %v2985
        %v2988 = vsel %vm1268, %v2986, 0
        %2990 = vmatprep.subr.mxu0 0.0
        %2991 = vmatpush1.msra.mxu0 %v1239
        %2992 = vmatprep.subr.mxu0 0.0
        %2993 = vmatpush1.msra.mxu0 0.0
        %2994 = vmatprep.subr.mxu0 0.0
        %2995 = vmatpush1.msra.mxu0 0.0
        %2996 = vmatprep.subr.mxu0 0.0
        %2997 = vmatpush1.msra.mxu0 0.0
        %2998 = vmatprep.subr.mxu0 0.0
        %2999 = vmatpush1.msra.mxu0 0.0
        %3000 = vmatprep.subr.mxu0 0.0
        %3001 = vmatpush1.msra.mxu0 0.0
        %3002 = vmatprep.subr.mxu0 0.0
        %3003 = vmatpush1.msra.mxu0 0.0
        %3004 = vmatprep.subr.mxu0 0.0
        %3005 = vmatpush1.msra.mxu0 0.0
        %3006 = vmatprep.subr.mxu0 0.0
        %3007 = vmatpush1.msra.mxu0 0.0
        %3008 = vmatprep.subr.mxu0 0.0
        %3009 = vmatpush1.msra.mxu0 0.0
        %3010 = vmatprep.subr.mxu0 0.0
        %3011 = vmatpush1.msra.mxu0 0.0
        %3012 = vmatprep.subr.mxu0 0.0
        %3013 = vmatpush1.msra.mxu0 0.0
        %3014 = vmatprep.subr.mxu0 0.0
        %3015 = vmatpush1.msra.mxu0 0.0
        %3016 = vmatprep.subr.mxu0 0.0
        %3017 = vmatpush1.msra.mxu0 0.0
        %3018 = vmatprep.subr.mxu0 0.0
        %3019 = vmatpush1.msra.mxu0 0.0
        %3020 = vmatprep.subr.mxu0 0.0
        %3021 = vmatpush1.msra.mxu0 0.0
        %3022 = vmatprep.subr.mxu0 0.0
        %3023 = vmatpush1.msra.mxu0 0.0
        %3024 = vmatprep.subr.mxu0 0.0
        %3025 = vmatpush1.msra.mxu0 0.0
        %3026 = vmatprep.subr.mxu0 0.0
        %3027 = vmatpush1.msra.mxu0 0.0
        %3028 = vmatprep.subr.mxu0 0.0
        %3029 = vmatpush1.msra.mxu0 0.0
        %3030 = vmatprep.subr.mxu0 0.0
        %3031 = vmatpush1.msra.mxu0 0.0
        %3032 = vmatprep.subr.mxu0 0.0
        %3033 = vmatpush1.msra.mxu0 0.0
        %3034 = vmatprep.subr.mxu0 0.0
        %3035 = vmatpush1.msra.mxu0 0.0
        %3036 = vmatprep.subr.mxu0 0.0
        %3037 = vmatpush1.msra.mxu0 0.0
        %3038 = vmatprep.subr.mxu0 0.0
        %3039 = vmatpush1.msra.mxu0 0.0
        %3040 = vmatprep.subr.mxu0 0.0
        %3041 = vmatpush1.msra.mxu0 0.0
        %3042 = vmatprep.subr.mxu0 0.0
        %3043 = vmatpush1.msra.mxu0 0.0
        %3044 = vmatprep.subr.mxu0 0.0
        %3045 = vmatpush1.msra.mxu0 0.0
        %3046 = vmatprep.subr.mxu0 0.0
        %3047 = vmatpush1.msra.mxu0 0.0
        %3048 = vmatprep.subr.mxu0 0.0
        %3049 = vmatpush1.msra.mxu0 0.0
        %3050 = vmatprep.subr.mxu0 0.0
        %3051 = vmatpush1.msra.mxu0 0.0
        %3052 = vmatprep.subr.mxu0 0.0
        %3053 = vmatpush1.msra.mxu0 0.0
        %3054 = vmatprep.mubr.f32.mxu0 0.0
        %3055 = vmatmul.mubr.f32.gmra.mrb[0].mxu0 %v2988
        %v3056 = vpop.f32.mrb[0].mxu0
        %v3057 = vadd.f32 0.0, %v3056
        %v3058 = vpop.f32.mrb[0].mxu0
        %3059 = vdwg.mxu0
        %v3060 = vadd.f32 %v2819, %v3057
        %3061 = vrot.lane.b32.xlu0 %v2350, 104
        %v3062 = vpop.permute.xlu0 %3061
        %3063 = vrot.lane.b32.xlu0 %v2329, 104
        %v3064 = vpop.permute.xlu0 %3063
        %v3065 = vsel %vm1268, %v3062, 0
        %v3067 = vsel %vm1268, %v3064, 0
        %3069 = vmatprep.subr.mxu0 0.0
        %3070 = vmatpush1.xpose.msra.mxu0 %v3067
        %3071 = vmatprep.subr.mxu0 0.0
        %3072 = vmatpush1.xpose.msra.mxu0 0.0
        %3073 = vmatprep.subr.mxu0 0.0
        %3074 = vmatpush1.xpose.msra.mxu0 0.0
        %3075 = vmatprep.subr.mxu0 0.0
        %3076 = vmatpush1.xpose.msra.mxu0 0.0
        %3077 = vmatprep.subr.mxu0 0.0
        %3078 = vmatpush1.xpose.msra.mxu0 0.0
        %3079 = vmatprep.subr.mxu0 0.0
        %3080 = vmatpush1.xpose.msra.mxu0 0.0
        %3081 = vmatprep.subr.mxu0 0.0
        %3082 = vmatpush1.xpose.msra.mxu0 0.0
        %3083 = vmatprep.subr.mxu0 0.0
        %3084 = vmatpush1.xpose.msra.mxu0 0.0
        %3085 = vmatprep.subr.mxu0 0.0
        %3086 = vmatpush1.xpose.msra.mxu0 0.0
        %3087 = vmatprep.subr.mxu0 0.0
        %3088 = vmatpush1.xpose.msra.mxu0 0.0
        %3089 = vmatprep.subr.mxu0 0.0
        %3090 = vmatpush1.xpose.msra.mxu0 0.0
        %3091 = vmatprep.subr.mxu0 0.0
        %3092 = vmatpush1.xpose.msra.mxu0 0.0
        %3093 = vmatprep.subr.mxu0 0.0
        %3094 = vmatpush1.xpose.msra.mxu0 0.0
        %3095 = vmatprep.subr.mxu0 0.0
        %3096 = vmatpush1.xpose.msra.mxu0 0.0
        %3097 = vmatprep.subr.mxu0 0.0
        %3098 = vmatpush1.xpose.msra.mxu0 0.0
        %3099 = vmatprep.subr.mxu0 0.0
        %3100 = vmatpush1.xpose.msra.mxu0 0.0
        %3101 = vmatprep.subr.mxu0 0.0
        %3102 = vmatpush1.xpose.msra.mxu0 0.0
        %3103 = vmatprep.subr.mxu0 0.0
        %3104 = vmatpush1.xpose.msra.mxu0 0.0
        %3105 = vmatprep.subr.mxu0 0.0
        %3106 = vmatpush1.xpose.msra.mxu0 0.0
        %3107 = vmatprep.subr.mxu0 0.0
        %3108 = vmatpush1.xpose.msra.mxu0 0.0
        %3109 = vmatprep.subr.mxu0 0.0
        %3110 = vmatpush1.xpose.msra.mxu0 0.0
        %3111 = vmatprep.subr.mxu0 0.0
        %3112 = vmatpush1.xpose.msra.mxu0 0.0
        %3113 = vmatprep.subr.mxu0 0.0
        %3114 = vmatpush1.xpose.msra.mxu0 0.0
        %3115 = vmatprep.subr.mxu0 0.0
        %3116 = vmatpush1.xpose.msra.mxu0 0.0
        %3117 = vmatprep.subr.mxu0 0.0
        %3118 = vmatpush1.xpose.msra.mxu0 0.0
        %3119 = vmatprep.subr.mxu0 0.0
        %3120 = vmatpush1.xpose.msra.mxu0 0.0
        %3121 = vmatprep.subr.mxu0 0.0
        %3122 = vmatpush1.xpose.msra.mxu0 0.0
        %3123 = vmatprep.subr.mxu0 0.0
        %3124 = vmatpush1.xpose.msra.mxu0 0.0
        %3125 = vmatprep.subr.mxu0 0.0
        %3126 = vmatpush1.xpose.msra.mxu0 0.0
        %3127 = vmatprep.subr.mxu0 0.0
        %3128 = vmatpush1.xpose.msra.mxu0 0.0
        %3129 = vmatprep.subr.mxu0 0.0
        %3130 = vmatpush1.xpose.msra.mxu0 0.0
        %3131 = vmatprep.subr.mxu0 0.0
        %3132 = vmatpush1.xpose.msra.mxu0 0.0
        %3133 = vmatprep.mubr.f32.mxu0 0.0
        %3134 = vmatmul.mubr.f32.gmra.mrb[0].mxu0 %v3065
        %v3135 = vpop.f32.mrb[0].mxu0
        %v3136 = vadd.f32 0.0, %v3135
        %v3137 = vpop.f32.mrb[0].mxu0
        %3138 = vdwg.mxu0
        %v3139 = vsel %vm1344, %v3136, -inf
        %3140 = vmax.xlane.f32.xlu0 %v3139
        %v3141 = vpop.xlane.xlu0 %3140
        %v3142 = vsub.f32 %v3136, %v3141
        %v3143 = vmul.f32 %v3142, 1.442695
        %v3144 = vpow.pop %v3143
        %v3145 = vsel %vm1344, %v3144, 0.0
        %3146 = vadd.xlane.f32.xlu0 %v3145
        %v3147 = vpop.xlane.xlu0 %3146
        %3148 = vrot.lane.b32.xlu0 %v2331, 104
        %v3149 = vpop.permute.xlu0 %3148
        %v3152 = vsel %vm1268, %v3144, 0
        %3154 = vmatprep.subr.mxu0 0.0
        %3155 = vmatpush1.msra.mxu0 %v3149
        %3156 = vmatprep.subr.mxu0 0.0
        %3157 = vmatpush1.msra.mxu0 0.0
        %3158 = vmatprep.subr.mxu0 0.0
        %3159 = vmatpush1.msra.mxu0 0.0
        %3160 = vmatprep.subr.mxu0 0.0
        %3161 = vmatpush1.msra.mxu0 0.0
        %3162 = vmatprep.subr.mxu0 0.0
        %3163 = vmatpush1.msra.mxu0 0.0
        %3164 = vmatprep.subr.mxu0 0.0
        %3165 = vmatpush1.msra.mxu0 0.0
        %3166 = vmatprep.subr.mxu0 0.0
        %3167 = vmatpush1.msra.mxu0 0.0
        %3168 = vmatprep.subr.mxu0 0.0
        %3169 = vmatpush1.msra.mxu0 0.0
        %3170 = vmatprep.subr.mxu0 0.0
        %3171 = vmatpush1.msra.mxu0 0.0
        %3172 = vmatprep.subr.mxu0 0.0
        %3173 = vmatpush1.msra.mxu0 0.0
        %3174 = vmatprep.subr.mxu0 0.0
        %3175 = vmatpush1.msra.mxu0 0.0
        %3176 = vmatprep.subr.mxu0 0.0
        %3177 = vmatpush1.msra.mxu0 0.0
        %3178 = vmatprep.subr.mxu0 0.0
        %3179 = vmatpush1.msra.mxu0 0.0
        %3180 = vmatprep.subr.mxu0 0.0
        %3181 = vmatpush1.msra.mxu0 0.0
        %3182 = vmatprep.subr.mxu0 0.0
        %3183 = vmatpush1.msra.mxu0 0.0
        %3184 = vmatprep.subr.mxu0 0.0
        %3185 = vmatpush1.msra.mxu0 0.0
        %3186 = vmatprep.subr.mxu0 0.0
        %3187 = vmatpush1.msra.mxu0 0.0
        %3188 = vmatprep.subr.mxu0 0.0
        %3189 = vmatpush1.msra.mxu0 0.0
        %3190 = vmatprep.subr.mxu0 0.0
        %3191 = vmatpush1.msra.mxu0 0.0
        %3192 = vmatprep.subr.mxu0 0.0
        %3193 = vmatpush1.msra.mxu0 0.0
        %3194 = vmatprep.subr.mxu0 0.0
        %3195 = vmatpush1.msra.mxu0 0.0
        %3196 = vmatprep.subr.mxu0 0.0
        %3197 = vmatpush1.msra.mxu0 0.0
        %3198 = vmatprep.subr.mxu0 0.0
        %3199 = vmatpush1.msra.mxu0 0.0
        %3200 = vmatprep.subr.mxu0 0.0
        %3201 = vmatpush1.msra.mxu0 0.0
        %3202 = vmatprep.subr.mxu0 0.0
        %3203 = vmatpush1.msra.mxu0 0.0
        %3204 = vmatprep.subr.mxu0 0.0
        %3205 = vmatpush1.msra.mxu0 0.0
        %3206 = vmatprep.subr.mxu0 0.0
        %3207 = vmatpush1.msra.mxu0 0.0
        %3208 = vmatprep.subr.mxu0 0.0
        %3209 = vmatpush1.msra.mxu0 0.0
        %3210 = vmatprep.subr.mxu0 0.0
        %3211 = vmatpush1.msra.mxu0 0.0
        %3212 = vmatprep.subr.mxu0 0.0
        %3213 = vmatpush1.msra.mxu0 0.0
        %3214 = vmatprep.subr.mxu0 0.0
        %3215 = vmatpush1.msra.mxu0 0.0
        %3216 = vmatprep.subr.mxu0 0.0
        %3217 = vmatpush1.msra.mxu0 0.0
        %3218 = vmatprep.mubr.f32.mxu0 0.0
        %3219 = vmatmul.mubr.f32.gmra.mrb[0].mxu0 %v3152
        %v3220 = vpop.f32.mrb[0].mxu0
        %v3221 = vadd.f32 0.0, %v3220
        %v3222 = vpop.f32.mrb[0].mxu0
        %3223 = vdwg.mxu0
        %v3224 = vrcp.pop %v3147
        %v3225 = vmul.f32 %v3221, %v3224
        %v3227 = vsel %vm1268, %v3225, 0
        %3229 = vmatprep.subr.mxu0 0.0
        %3230 = vmatpush1.msra.mxu0 %v1240
        %3231 = vmatprep.subr.mxu0 0.0
        %3232 = vmatpush1.msra.mxu0 0.0
        %3233 = vmatprep.subr.mxu0 0.0
        %3234 = vmatpush1.msra.mxu0 0.0
        %3235 = vmatprep.subr.mxu0 0.0
        %3236 = vmatpush1.msra.mxu0 0.0
        %3237 = vmatprep.subr.mxu0 0.0
        %3238 = vmatpush1.msra.mxu0 0.0
        %3239 = vmatprep.subr.mxu0 0.0
        %3240 = vmatpush1.msra.mxu0 0.0
        %3241 = vmatprep.subr.mxu0 0.0
        %3242 = vmatpush1.msra.mxu0 0.0
        %3243 = vmatprep.subr.mxu0 0.0
        %3244 = vmatpush1.msra.mxu0 0.0
        %3245 = vmatprep.subr.mxu0 0.0
        %3246 = vmatpush1.msra.mxu0 0.0
        %3247 = vmatprep.subr.mxu0 0.0
        %3248 = vmatpush1.msra.mxu0 0.0
        %3249 = vmatprep.subr.mxu0 0.0
        %3250 = vmatpush1.msra.mxu0 0.0
        %3251 = vmatprep.subr.mxu0 0.0
        %3252 = vmatpush1.msra.mxu0 0.0
        %3253 = vmatprep.subr.mxu0 0.0
        %3254 = vmatpush1.msra.mxu0 0.0
        %3255 = vmatprep.subr.mxu0 0.0
        %3256 = vmatpush1.msra.mxu0 0.0
        %3257 = vmatprep.subr.mxu0 0.0
        %3258 = vmatpush1.msra.mxu0 0.0
        %3259 = vmatprep.subr.mxu0 0.0
        %3260 = vmatpush1.msra.mxu0 0.0
        %3261 = vmatprep.subr.mxu0 0.0
        %3262 = vmatpush1.msra.mxu0 0.0
        %3263 = vmatprep.subr.mxu0 0.0
        %3264 = vmatpush1.msra.mxu0 0.0
        %3265 = vmatprep.subr.mxu0 0.0
        %3266 = vmatpush1.msra.mxu0 0.0
        %3267 = vmatprep.subr.mxu0 0.0
        %3268 = vmatpush1.msra.mxu0 0.0
        %3269 = vmatprep.subr.mxu0 0.0
        %3270 = vmatpush1.msra.mxu0 0.0
        %3271 = vmatprep.subr.mxu0 0.0
        %3272 = vmatpush1.msra.mxu0 0.0
        %3273 = vmatprep.subr.mxu0 0.0
        %3274 = vmatpush1.msra.mxu0 0.0
        %3275 = vmatprep.subr.mxu0 0.0
        %3276 = vmatpush1.msra.mxu0 0.0
        %3277 = vmatprep.subr.mxu0 0.0
        %3278 = vmatpush1.msra.mxu0 0.0
        %3279 = vmatprep.subr.mxu0 0.0
        %3280 = vmatpush1.msra.mxu0 0.0
        %3281 = vmatprep.subr.mxu0 0.0
        %3282 = vmatpush1.msra.mxu0 0.0
        %3283 = vmatprep.subr.mxu0 0.0
        %3284 = vmatpush1.msra.mxu0 0.0
        %3285 = vmatprep.subr.mxu0 0.0
        %3286 = vmatpush1.msra.mxu0 0.0
        %3287 = vmatprep.subr.mxu0 0.0
        %3288 = vmatpush1.msra.mxu0 0.0
        %3289 = vmatprep.subr.mxu0 0.0
        %3290 = vmatpush1.msra.mxu0 0.0
        %3291 = vmatprep.subr.mxu0 0.0
        %3292 = vmatpush1.msra.mxu0 0.0
        %3293 = vmatprep.mubr.f32.mxu0 0.0
        %3294 = vmatmul.mubr.f32.gmra.mrb[0].mxu0 %v3227
        %v3295 = vpop.f32.mrb[0].mxu0
        %v3296 = vadd.f32 0.0, %v3295
        %v3297 = vpop.f32.mrb[0].mxu0
        %3298 = vdwg.mxu0
        %v3299 = vadd.f32 %v3060, %v3296
        %v3301 = vrot.slane %v3299, 7
        %v3302 = vrot.slane %v3299, 1
        %v3303 = vrot.slane %v3299, 2
        %v3308 = vadd.f32 %v1101, %v3301
        %v3309 = vadd.f32 %v1102, %v3299
        %v3310 = vadd.f32 %v1103, %v3302
        %v3311 = vadd.f32 %v1104, %v3303
        %v3312 = vadd.f32 %v3308, %v2235
        %v3313 = vadd.f32 %v3309, %v2235
        %v3314 = vadd.f32 %v3310, %v2235
        %v3315 = vadd.f32 %v3311, %v2235
        %v3320 = vrot.slane %v3313, 7
        %v3321 = vsel %vm1264, %v3320, %v3312
        %v3322 = vrot.slane %v3314, 6
        %v3323 = vsel %vm1266, %v3322, %v3321
        %v3324 = vrot.slane %v3315, 5
        %vm3325 = vcmask 1044484
        %v3326 = vsel %vm3325, %v3324, %v3323
        %vm3328 = vcmask 258049
        %v3329 = vsel %vm3328, %v3326, 0.0
        %3330 = vadd.xlane.f32.xlu0 %v3329
        %v3331 = vpop.xlane.xlu0 %3330
        %v3332 = vmul.f32 %v3331, %v2256
        %v3334 = vrot.slane %v3332, 1
        %v3335 = vrot.slane %v3332, 2
        %v3336 = vrot.slane %v3332, 3
        %v3341 = vsub.f32 %v3312, %v3332
        %v3342 = vsub.f32 %v3313, %v3334
        %v3343 = vsub.f32 %v3314, %v3335
        %v3344 = vsub.f32 %v3315, %v3336
        %v3345 = vmul.f32 %v3341, %v3341
        %v3346 = vmul.f32 %v3342, %v3342
        %v3347 = vmul.f32 %v3343, %v3343
        %v3348 = vmul.f32 %v3344, %v3344
        %v3353 = vrot.slane %v3346, 7
        %v3354 = vsel %vm1264, %v3353, %v3345
        %v3355 = vrot.slane %v3347, 6
        %v3356 = vsel %vm1266, %v3355, %v3354
        %v3357 = vrot.slane %v3348, 5
        %v3358 = vsel %vm3325, %v3357, %v3356
        %v3360 = vsel %vm3328, %v3358, 0.0
        %3361 = vadd.xlane.f32.xlu0 %v3360
        %v3362 = vpop.xlane.xlu0 %3361
        %v3363 = vmul.f32 %v3362, %v2256
        %v3364 = vadd.f32 %v3363, 1e-05
        %v3365 = vrsqrt.pop %v3364
        %v3367 = vrot.slane %v3365, 1
        %v3368 = vrot.slane %v3365, 2
        %v3369 = vrot.slane %v3365, 3
        %v3374 = vmul.f32 %v3341, %v3365
        %v3375 = vmul.f32 %v3342, %v3367
        %v3376 = vmul.f32 %v3343, %v3368
        %v3377 = vmul.f32 %v3344, %v3369
        %v3378 = vmul.f32 %v3374, %v2307
        %v3379 = vmul.f32 %v3375, %v2307
        %v3380 = vmul.f32 %v3376, %v2307
        %v3381 = vmul.f32 %v3377, %v2307
        %v3382 = vadd.f32 %v3378, %v2317
        %v3383 = vadd.f32 %v3379, %v2317
        %v3384 = vadd.f32 %v3380, %v2317
        %v3385 = vadd.f32 %v3381, %v2317
        %vm3386 = vcmask 254977
        %3387 = vst.msk [vmem:[%s554] sm:$0x2] %vm3386, %v3382
        %3388 = vst.msk [vmem:[%s554 + $0x2] sm:$0x2] %vm3386, %v3383
        %3389 = vst.msk [vmem:[%s554 + $0x4] sm:$0x2] %vm3386, %v3384
        %3390 = vst.msk [vmem:[%s554 + $0x6] sm:$0x2] %vm3386, %v3385
        %s3391 = sand.u32 %s293, 1
        %s3392 = scalar_lea.sflag [#allocation6], %s3391
        %s3393 = sand.u32 %s293, 1
        %s3394 = smul.addr %s3393, 8
        %s3395 = scalar_lea.vmem [#allocation24], %s3394
        // Predicated region
        $region121: #{tpu_custom_call.1} parent=67 // pred_check
          %p3396 = pneg %p303
        $region122: #{tpu_custom_call.1} parent=67 // pred_check_branch
          %3398 = sbr.rel (%p3396) target = $region124
        $region123: #{tpu_custom_call.1} parent=67 // pred_region
          %s3399 = smul.u32 4, %s33
          %s3401 = ssub.s32 128, 128
          %3402 = vsyncadd %s3392, %s3401
          %s3403 = smul.addr %s3399, 32
          %s3404 = scalar_lea.hbm %s12, %s3403
          %s3405 = sshll.u32 %s3395, 4
          %s3406 = int_to_ptr.vmem [resolvable:$true] %s3405
          %3411 = dma.vmem_to_hbm [thread:$0]  %s3406, 128, %s3404, %s3392, 32, 32, 2
        $region124: #{tpu_custom_call.1} parent=67 // pred_fallthru
          _
      $region68: #{tpu_custom_call.1} parent=5 // pred_fallthru
        _
      %p3412 = scmp.le.s32.totalorder 2, %s28
      // Predicated region
      $region125: #{tpu_custom_call.1} parent=5 // pred_check
        %p3413 = pneg %p3412
      $region126: #{tpu_custom_call.1} parent=5 // pred_check_branch
        %3415 = sbr.rel (%p3413) target = $region128
      $region127: #{tpu_custom_call.1} parent=5 // pred_region
        %s3416 = ssub.s32 %s28, 2
        // Predicated region
        $region129: #{tpu_custom_call.1} parent=127 // pred_check
          %p3417 = pneg %p309
        $region130: #{tpu_custom_call.1} parent=127 // pred_check_branch
          %3419 = sbr.rel (%p3417) target = $region132
        $region131: #{tpu_custom_call.1} parent=127 // pred_region
          %s3420 = sand.u32 %s294, 1
          %s3421 = scalar_lea.sflag [#allocation6], %s3420
          %s3422 = sand.u32 %s294, 1
          %s3423 = smul.addr %s3422, 8
          %s3424 = scalar_lea.vmem [#allocation24], %s3423
          %3425 = dma.done %s3421, 128
        $region132: #{tpu_custom_call.1} parent=127 // pred_fallthru
          _
      $region128: #{tpu_custom_call.1} parent=5 // pred_fallthru
        _
    $region6: #{tpu_custom_call.1} parent=1 // loop_footer
      %s32 = sadd.s32 1, %s28
    $region7: #{tpu_custom_call.1} parent=1 // loop_footer_branch
      %27 = sbr.rel target = $region3
    $region8: #{tpu_custom_call.1} parent=1 // loop_exit
      _
    %3426 = vsyncpa [#allocation5], 1
    %s3427 = scalar_lea.sflag [#allocation5], 1
    %3428 = vsyncpa %s3427, 1
    %3429 = vsyncpa [#allocation8], 1
    %3430 = vsyncpa [#allocation11], 1
    %3431 = vsyncpa [#allocation14], 1
    %3432 = vsyncpa [#allocation17], 1
    %3433 = vsyncpa [#allocation20], 1
    %3434 = vsyncpa [#allocation23], 1
    %3435 = vsyncpa [#allocation6], 1
    %s3436 = scalar_lea.sflag [#allocation6], 1
    %3437 = vsyncpa %s3436, 1

</llo_original>
